<compile_context>
chip_gen: v5e
topology: v5e:2x2
jax: 0.10.0
libtpu: 0.0.40
codegen_flags: <defaults>
</compile_context>

<pallas_src>
import functools

import numpy as np

import jax
import jax.numpy as jnp
from jax.experimental import pallas as pl
from jax.experimental.pallas import tpu as pltpu


def _round_up(x, m):
    return (x + m - 1) // m * m


# ----------------------------------------------------------------------------
# Pallas kernel
# ----------------------------------------------------------------------------
def bilstm_kernel(xcat_ref,   # (T*BP, KP)     bf16  [x_t | x_{T-1-t}] padded
                  wx_ref,     # (KP, 8*HP)     bf16  input-proj weights (both dirs)
                  bx_ref,     # (1, 8*HP)      f32   folded b_ih + b_hh (both dirs)
                  wh_ref,     # (2*HP, 8*HP)   bf16  recurrent weights (both dirs)
                  wemb_ref,   # (2*HP, 2*OP)   bf16  embedding weights (fwd|bwd blocks)
                  bemb_ref,   # (1, OP)        f32   embedding bias
                  out_ref,    # (T*BP, OP)     f32   output slab (lane-dense)
                  gx_ref,     # (T*BP, 8*HP)   f32   scratch: hoisted x-gates
                  hs_ref,     # (T*BP, 2*HP)   f32   scratch: h history slab
                  h_ref,      # (BP, 2*HP)     bf16  scratch: carry [h_f | h_b]
                  c_ref,      # (BP, 2*HP)     f32   scratch: [c_f | c_b]
                  emb_ref,    # (T*BP, 2*OP)   f32   scratch: embedding contribs
                  *, T, BP):
    HP2 = wh_ref.shape[0]          # 2*HP — one gate block (128 lanes for H<=64)
    OP = out_ref.shape[1]
    unroll = True if T <= 16 else 8

    # (1) Hoisted input projection (both directions, biases folded in):
    #     one large-M MXU matmul instead of 2*T tiny ones inside the loop.
    gx_ref[...] = (
        jnp.dot(xcat_ref[...], wx_ref[...], preferred_element_type=jnp.float32)
        + bx_ref[...])

    # (2) Zero initial hidden/cell state (PyTorch default).
    h_ref[...] = jnp.zeros_like(h_ref)
    c_ref[...] = jnp.zeros_like(c_ref)

    def step(t, carry):
        rf = pl.multiple_of(t * BP, BP)     # rows for loop iteration t

        # The ONLY op on the serial h->h dependency chain: one fused fwd+bwd
        # recurrent matmul.  x-gates come from VMEM scratch (off-path).
        gates = gx_ref[pl.ds(rf, BP), :] + jnp.dot(
            h_ref[...], wh_ref[...], preferred_element_type=jnp.float32)

        # Gate layout: [i_f i_b | f_f f_b | g_f g_b | o_f o_b], each block
        # 2*HP lanes wide -> both directions share one set of VPU/EUP ops.
        i_g = jax.nn.sigmoid(gates[:, 0 * HP2:1 * HP2])
        f_g = jax.nn.sigmoid(gates[:, 1 * HP2:2 * HP2])
        g_g = jnp.tanh(gates[:, 2 * HP2:3 * HP2])
        o_g = jax.nn.sigmoid(gates[:, 3 * HP2:4 * HP2])
        c_new = f_g * c_ref[...] + i_g * g_g
        h_new = o_g * jnp.tanh(c_new)

        c_ref[...] = c_new
        h_ref[...] = h_new.astype(jnp.bfloat16)      # single cast per step
        hs_ref[pl.ds(rf, BP), :] = h_new             # lane-dense pure store
        return carry

    jax.lax.fori_loop(0, T, step, 0, unroll=unroll)

    # (3) Hoisted embedding: ONE large-M matmul for all timesteps and both
    #     directions (fwd contribution -> lanes [0:OP] of loop-row t, bwd
    #     contribution for original time T-1-t -> lanes [OP:2*OP]).
    emb_ref[...] = jnp.dot(hs_ref[...].astype(jnp.bfloat16), wemb_ref[...],
                           preferred_element_type=jnp.float32)

    # (4) Recombine: out[t] = emb_fwd[t] + emb_bwd[T-1-t] + bias.  Pure stores
    #     into a lane-dense output slab (no read-modify-write, no aliasing).
    def combine(t, carry):
        rf = pl.multiple_of(t * BP, BP)
        rb = pl.multiple_of((T - 1 - t) * BP, BP)
        ef = emb_ref[pl.ds(rf, BP), :]
        eb = emb_ref[pl.ds(rb, BP), :]
        out_ref[pl.ds(rf, BP), :] = ef[:, 0:OP] + eb[:, OP:2 * OP] + bemb_ref[...]
        return carry

    jax.lax.fori_loop(0, T, combine, 0, unroll=unroll)


# ----------------------------------------------------------------------------
# one-time weight packing (outside the per-call jitted path)
# ----------------------------------------------------------------------------
def pack_bilstm_params(params, n_input, n_hidden, n_output):
    """Transpose / pad / interleave the LSTM + Linear weights once (numpy)."""
    I, H, O = n_input, n_hidden, n_output
    HP = _round_up(H, 64)          # per-gate/per-direction width (2*HP % 128 == 0)
    OP = _round_up(O, 128)
    KP = _round_up(2 * I, 128)

    def npf(a):
        return np.asarray(a, dtype=np.float32)

    wih_f = npf(params["w_ih_f"]).T    # (I, 4H), gate order [i|f|g|o]
    wih_b = npf(params["w_ih_b"]).T
    whh_f = npf(params["w_hh_f"]).T    # (H, 4H)
    whh_b = npf(params["w_hh_b"]).T
    bias_f = npf(params["b_ih_f"]) + npf(params["b_hh_f"])
    bias_b = npf(params["b_ih_b"]) + npf(params["b_hh_b"])

    wx = np.zeros((KP, 8 * HP), np.float32)
    wh = np.zeros((2 * HP, 8 * HP), np.float32)
    bx = np.zeros((1, 8 * HP), np.float32)
    for g in range(4):
        cf = 2 * g * HP            # forward sub-block of gate g
        cb = cf + HP               # backward sub-block of gate g
        wx[0:I, cf:cf + H] = wih_f[:, g * H:(g + 1) * H]
        wx[I:2 * I, cb:cb + H] = wih_b[:, g * H:(g + 1) * H]
        wh[0:H, cf:cf + H] = whh_f[:, g * H:(g + 1) * H]
        wh[HP:HP + H, cb:cb + H] = whh_b[:, g * H:(g + 1) * H]
        bx[0, cf:cf + H] = bias_f[g * H:(g + 1) * H]
        bx[0, cb:cb + H] = bias_b[g * H:(g + 1) * H]

    wemb_t = npf(params["w_emb"]).T    # (2H, O): rows [fwd | bwd]
    wemb = np.zeros((2 * HP, 2 * OP), np.float32)
    wemb[0:H, 0:O] = wemb_t[0:H, :]
    wemb[HP:HP + H, OP:OP + O] = wemb_t[H:2 * H, :]
    bemb = np.zeros((1, OP), np.float32)
    bemb[0, 0:O] = npf(params["b_emb"])

    return {
        "wx": jnp.asarray(wx, jnp.bfloat16),
        "wh": jnp.asarray(wh, jnp.bfloat16),
        "wemb": jnp.asarray(wemb, jnp.bfloat16),
        "bx": jnp.asarray(bx),
        "bemb": jnp.asarray(bemb),
    }


# ----------------------------------------------------------------------------
# wrapper (jit-friendly; only input packing + pallas_call per call)
# ----------------------------------------------------------------------------
def bidirectional_lstm(x, packed, *, n_hidden, n_output):
    T, B, I = x.shape
    H, O = n_hidden, n_output
    f32 = jnp.float32

    HP = _round_up(H, 64)
    OP = _round_up(O, 128)
    KP = _round_up(2 * I, 128)
    BP = _round_up(B, 8)

    # ---- input: pad batch to BP and pack [x_t | x_{T-1-t}] so the backward
    #      direction's hoisted projection is already time-reversed ----
    xp = jnp.zeros((T, BP, I), f32).at[:, 0:B, :].set(x.astype(f32))
    xcat = jnp.zeros((T, BP, KP), jnp.bfloat16)
    xcat = xcat.at[:, :, 0:I].set(xp.astype(jnp.bfloat16))
    xcat = xcat.at[:, :, I:2 * I].set(xp[::-1].astype(jnp.bfloat16))
    xcat2d = xcat.reshape(T * BP, KP)

    # ---- explicit VMEM budget; cap at 56 MiB (valid on v7x's 64 MiB/TC) ----
    in_bytes = (xcat2d.size + packed["wx"].size + packed["wh"].size
                + packed["wemb"].size) * 2 \
               + (packed["bx"].size + packed["bemb"].size) * 4
    out_bytes = T * BP * OP * 4
    scratch_bytes = (T * BP * 8 * HP * 4          # gx
                     + T * BP * 2 * HP * 4        # hs
                     + BP * 2 * HP * 2            # h (bf16)
                     + BP * 2 * HP * 4            # c
                     + T * BP * 2 * OP * 4)       # emb
    vmem_limit = min(max(int(1.5 * (in_bytes + out_bytes + scratch_bytes))
                         + (4 << 20), 16 << 20),
                     56 << 20)

    vmem = pl.BlockSpec(memory_space=pltpu.MemorySpace.VMEM)

    out2d = pl.pallas_call(
        functools.partial(bilstm_kernel, T=T, BP=BP),
        out_shape=jax.ShapeDtypeStruct((T * BP, OP), f32),
        in_specs=[vmem] * 6,
        out_specs=vmem,
        scratch_shapes=[
            pltpu.VMEM((T * BP, 8 * HP), f32),        # gx (hoisted x-gates)
            pltpu.VMEM((T * BP, 2 * HP), f32),        # hs (h history slab)
            pltpu.VMEM((BP, 2 * HP), jnp.bfloat16),   # h carry [h_f | h_b]
            pltpu.VMEM((BP, 2 * HP), f32),            # c      [c_f | c_b]
            pltpu.VMEM((T * BP, 2 * OP), f32),        # emb contributions
        ],
        compiler_params=pltpu.CompilerParams(vmem_limit_bytes=vmem_limit),
    )(xcat2d, packed["wx"], packed["bx"], packed["wh"],
      packed["wemb"], packed["bemb"])

    return out2d.reshape(T, BP, OP)[:, 0:B, 0:O]


# ----------------------------------------------------------------------------
# pure-JAX reference (mirrors PyTorch nn.LSTM + nn.Linear semantics)
# ----------------------------------------------------------------------------
def _lstm_direction_ref(x, w_ih, w_hh, b_ih, b_hh, reverse):
    T, B, I = x.shape
    H = w_hh.shape[1]

    def cell(carry, x_t):
        h, c = carry
        gates = x_t @ w_ih.T + b_ih + h @ w_hh.T + b_hh
        i, f, g, o = jnp.split(gates, 4, axis=-1)
        i = jax.nn.sigmoid(i)
        f = jax.nn.sigmoid(f)
        g = jnp.tanh(g)
        o = jax.nn.sigmoid(o)
        c = f * c + i * g
        h = o * jnp.tanh(c)
        return (h, c), h

    xs = x[::-1] if reverse else x
    init = (jnp.zeros((B, H), jnp.float32), jnp.zeros((B, H), jnp.float32))
    _, hs = jax.lax.scan(cell, init, xs)
    return hs[::-1] if reverse else hs


def bidirectional_lstm_ref(x, params, n_hidden, n_output):
    T, B, I = x.shape
    h_f = _lstm_direction_ref(x, params["w_ih_f"], params["w_hh_f"],
                              params["b_ih_f"], params["b_hh_f"], reverse=False)
    h_b = _lstm_direction_ref(x, params["w_ih_b"], params["w_hh_b"],
                              params["b_ih_b"], params["b_hh_b"], reverse=True)
    rec = jnp.concatenate([h_f, h_b], axis=-1)          # (T, B, 2H)
    flat = rec.reshape(T * B, 2 * n_hidden)
    out = flat @ params["w_emb"].T + params["b_emb"]
    return out.reshape(T, B, n_output)


# ----------------------------------------------------------------------------
# main
# ----------------------------------------------------------------------------
if __name__ == "__main__":
    n_input, n_hidden, n_output = 32, 32, 16

    key = jax.random.PRNGKey(0)
    keys = jax.random.split(key, 12)
    scale = 0.1

    params = {
        "w_ih_f": scale * jax.random.normal(keys[0], (4 * n_hidden, n_input), jnp.float32),
        "w_hh_f": scale * jax.random.normal(keys[1], (4 * n_hidden, n_hidden), jnp.float32),
        "b_ih_f": scale * jax.random.normal(keys[2], (4 * n_hidden,), jnp.float32),
        "b_hh_f": scale * jax.random.normal(keys[3], (4 * n_hidden,), jnp.float32),
        "w_ih_b": scale * jax.random.normal(keys[4], (4 * n_hidden, n_input), jnp.float32),
        "w_hh_b": scale * jax.random.normal(keys[5], (4 * n_hidden, n_hidden), jnp.float32),
        "b_ih_b": scale * jax.random.normal(keys[6], (4 * n_hidden,), jnp.float32),
        "b_hh_b": scale * jax.random.normal(keys[7], (4 * n_hidden,), jnp.float32),
        "w_emb": scale * jax.random.normal(keys[8], (n_output, 2 * n_hidden), jnp.float32),
        "b_emb": scale * jax.random.normal(keys[9], (n_output,), jnp.float32),
    }

    # Pack weights ONCE, outside the jitted per-call path.
    packed = pack_bilstm_params(params, n_input, n_hidden, n_output)

    run = jax.jit(functools.partial(bidirectional_lstm,
                                    n_hidden=n_hidden, n_output=n_output))

    # Main test: even T.
    T, B = 8, 2
    x = jax.random.normal(keys[10], (T, B, n_input), jnp.float32)
    out = jax.block_until_ready(run(x, packed))
    ref = bidirectional_lstm_ref(x, params, n_hidden, n_output)
    assert out.shape == (T, B, n_output), out.shape
    # bf16 weights on the MXU -> slightly looser tolerance than pure f32.
    assert jnp.allclose(out, ref, rtol=2e-2, atol=2e-2), \
        float(jnp.max(jnp.abs(out - ref)))

    # Extra test: odd T and non-multiple-of-8 batch (padding / middle-step paths).
    T2, B2 = 5, 3
    x2 = jax.random.normal(keys[11], (T2, B2, n_input), jnp.float32)
    out2 = jax.block_until_ready(run(x2, packed))
    ref2 = bidirectional_lstm_ref(x2, params, n_hidden, n_output)
    assert out2.shape == (T2, B2, n_output), out2.shape
    assert jnp.allclose(out2, ref2, rtol=2e-2, atol=2e-2), \
        float(jnp.max(jnp.abs(out2 - ref2)))

    print("KERNEL_OK")
</pallas_src>

<mosaic_0001>
module attributes {stable_mosaic.version = 11 : i64} {
  func.func @bilstm_kernel(%arg0: memref<64x128xbf16, #tpu.memory_space<vmem>>, %arg1: memref<128x512xbf16, #tpu.memory_space<vmem>>, %arg2: memref<1x512xf32, #tpu.memory_space<vmem>>, %arg3: memref<128x512xbf16, #tpu.memory_space<vmem>>, %arg4: memref<128x256xbf16, #tpu.memory_space<vmem>>, %arg5: memref<1x128xf32, #tpu.memory_space<vmem>>, %arg6: memref<64x128xf32, #tpu.memory_space<vmem>>, %arg7: memref<64x512xf32, #tpu.memory_space<vmem>>, %arg8: memref<64x128xf32, #tpu.memory_space<vmem>>, %arg9: memref<8x128xbf16, #tpu.memory_space<vmem>>, %arg10: memref<8x128xf32, #tpu.memory_space<vmem>>, %arg11: memref<64x256xf32, #tpu.memory_space<vmem>>) attributes {dimension_semantics = [], scalar_prefetch = 0 : i64, scratch_operands = 5 : i64, tpu.core_type = #tpu.core_type<tc>} {
    %c0 = arith.constant 0 : index
    %c0_0 = arith.constant 0 : index
    %0 = vector.load %arg0[%c0, %c0_0] : memref<64x128xbf16, #tpu.memory_space<vmem>>, vector<64x128xbf16>
    %c0_1 = arith.constant 0 : index
    %c0_2 = arith.constant 0 : index
    %1 = vector.load %arg1[%c0_1, %c0_2] : memref<128x512xbf16, #tpu.memory_space<vmem>>, vector<128x512xbf16>
    %cst = arith.constant dense<0.000000e+00> : vector<64x512xf32>
    %2 = tpu.matmul %0, %1, %cst {dimension_numbers = #tpu.dot_dimension_numbers<[1], [0], [0], [1], [0, 0, 1, 1], [], []>} : vector<64x128xbf16>, vector<128x512xbf16>, vector<64x512xf32> -> vector<64x512xf32>
    %c0_3 = arith.constant 0 : index
    %c0_4 = arith.constant 0 : index
    %3 = vector.load %arg2[%c0_3, %c0_4] : memref<1x512xf32, #tpu.memory_space<vmem>>, vector<1x512xf32>
    %4 = vector.broadcast %3 : vector<1x512xf32> to vector<64x512xf32>
    %5 = arith.addf %2, %4 : vector<64x512xf32>
    %c0_5 = arith.constant 0 : index
    %c0_6 = arith.constant 0 : index
    %6 = vector.load %arg7[%c0_5, %c0_6] : memref<64x512xf32, #tpu.memory_space<vmem>>, vector<64x512xf32>
    tpu.vector_store %arg7[%c0_5, %c0_6], %5 {strides = array<i32>} : memref<64x512xf32, #tpu.memory_space<vmem>>, vector<64x512xf32>,
    %cst_7 = arith.constant 0.000000e+00 : bf16
    %7 = vector.broadcast %cst_7 : bf16 to vector<8x128xbf16>
    %c0_8 = arith.constant 0 : index
    %c0_9 = arith.constant 0 : index
    %8 = vector.load %arg9[%c0_8, %c0_9] : memref<8x128xbf16, #tpu.memory_space<vmem>>, vector<8x128xbf16>
    tpu.vector_store %arg9[%c0_8, %c0_9], %7 {strides = array<i32>} : memref<8x128xbf16, #tpu.memory_space<vmem>>, vector<8x128xbf16>,
    %cst_10 = arith.constant 0.000000e+00 : f32
    %9 = vector.broadcast %cst_10 : f32 to vector<8x128xf32>
    %c0_11 = arith.constant 0 : index
    %c0_12 = arith.constant 0 : index
    %10 = vector.load %arg10[%c0_11, %c0_12] : memref<8x128xf32, #tpu.memory_space<vmem>>, vector<8x128xf32>
    tpu.vector_store %arg10[%c0_11, %c0_12], %9 {strides = array<i32>} : memref<8x128xf32, #tpu.memory_space<vmem>>, vector<8x128xf32>,
    %c0_i32 = arith.constant 0 : i32
    %c8_i32 = arith.constant 8 : i32
    %11 = arith.muli %c0_i32, %c8_i32 : i32
    %12 = tpu.assume_multiple %11, 8 : i32
    %13 = arith.index_cast %12 : i32 to index
    %c0_13 = arith.constant 0 : index
    %14 = vector.load %arg7[%13, %c0_13] : memref<64x512xf32, #tpu.memory_space<vmem>>, vector<8x512xf32>
    %c0_14 = arith.constant 0 : index
    %c0_15 = arith.constant 0 : index
    %15 = vector.load %arg9[%c0_14, %c0_15] : memref<8x128xbf16, #tpu.memory_space<vmem>>, vector<8x128xbf16>
    %c0_16 = arith.constant 0 : index
    %c0_17 = arith.constant 0 : index
    %16 = vector.load %arg3[%c0_16, %c0_17] : memref<128x512xbf16, #tpu.memory_space<vmem>>, vector<128x512xbf16>
    %cst_18 = arith.constant dense<0.000000e+00> : vector<8x512xf32>
    %17 = tpu.matmul %15, %16, %cst_18 {dimension_numbers = #tpu.dot_dimension_numbers<[1], [0], [0], [1], [0, 0, 1, 1], [], []>} : vector<8x128xbf16>, vector<128x512xbf16>, vector<8x512xf32> -> vector<8x512xf32>
    %18 = arith.addf %14, %17 : vector<8x512xf32>
    %19 = vector.extract_strided_slice %18 {offsets = [0, 0], sizes = [8, 128], strides = [1, 1]} : vector<8x512xf32> to vector<8x128xf32>
    %20 = arith.negf %19 : vector<8x128xf32>
    %21 = math.exp %20 : vector<8x128xf32>
    %cst_19 = arith.constant 1.000000e+00 : f32
    %22 = vector.broadcast %cst_19 : f32 to vector<8x128xf32>
    %23 = arith.addf %22, %21 : vector<8x128xf32>
    %24 = arith.divf %22, %23 : vector<8x128xf32>
    %25 = vector.extract_strided_slice %18 {offsets = [0, 128], sizes = [8, 128], strides = [1, 1]} : vector<8x512xf32> to vector<8x128xf32>
    %26 = arith.negf %25 : vector<8x128xf32>
    %27 = math.exp %26 : vector<8x128xf32>
    %cst_20 = arith.constant 1.000000e+00 : f32
    %28 = vector.broadcast %cst_20 : f32 to vector<8x128xf32>
    %29 = arith.addf %28, %27 : vector<8x128xf32>
    %30 = arith.divf %28, %29 : vector<8x128xf32>
    %31 = vector.extract_strided_slice %18 {offsets = [0, 256], sizes = [8, 128], strides = [1, 1]} : vector<8x512xf32> to vector<8x128xf32>
    %32 = math.tanh %31 : vector<8x128xf32>
    %33 = vector.extract_strided_slice %18 {offsets = [0, 384], sizes = [8, 128], strides = [1, 1]} : vector<8x512xf32> to vector<8x128xf32>
    %34 = arith.negf %33 : vector<8x128xf32>
    %35 = math.exp %34 : vector<8x128xf32>
    %cst_21 = arith.constant 1.000000e+00 : f32
    %36 = vector.broadcast %cst_21 : f32 to vector<8x128xf32>
    %37 = arith.addf %36, %35 : vector<8x128xf32>
    %38 = arith.divf %36, %37 : vector<8x128xf32>
    %c0_22 = arith.constant 0 : index
    %c0_23 = arith.constant 0 : index
    %39 = vector.load %arg10[%c0_22, %c0_23] : memref<8x128xf32, #tpu.memory_space<vmem>>, vector<8x128xf32>
    %40 = arith.mulf %30, %39 : vector<8x128xf32>
    %41 = arith.mulf %24, %32 : vector<8x128xf32>
    %42 = arith.addf %40, %41 : vector<8x128xf32>
    %43 = math.tanh %42 : vector<8x128xf32>
    %44 = arith.mulf %38, %43 : vector<8x128xf32>
    %c0_24 = arith.constant 0 : index
    %c0_25 = arith.constant 0 : index
    %45 = vector.load %arg10[%c0_24, %c0_25] : memref<8x128xf32, #tpu.memory_space<vmem>>, vector<8x128xf32>
    tpu.vector_store %arg10[%c0_24, %c0_25], %42 {strides = array<i32>} : memref<8x128xf32, #tpu.memory_space<vmem>>, vector<8x128xf32>,
    %46 = arith.truncf %44 : vector<8x128xf32> to vector<8x128xbf16>
    %c0_26 = arith.constant 0 : index
    %c0_27 = arith.constant 0 : index
    %47 = vector.load %arg9[%c0_26, %c0_27] : memref<8x128xbf16, #tpu.memory_space<vmem>>, vector<8x128xbf16>
    tpu.vector_store %arg9[%c0_26, %c0_27], %46 {strides = array<i32>} : memref<8x128xbf16, #tpu.memory_space<vmem>>, vector<8x128xbf16>,
    %48 = arith.index_cast %12 : i32 to index
    %c0_28 = arith.constant 0 : index
    %49 = vector.load %arg8[%48, %c0_28] : memref<64x128xf32, #tpu.memory_space<vmem>>, vector<8x128xf32>
    tpu.vector_store %arg8[%48, %c0_28], %44 {strides = array<i32>} : memref<64x128xf32, #tpu.memory_space<vmem>>, vector<8x128xf32>,
    %c1_i32 = arith.constant 1 : i32
    %c8_i32_29 = arith.constant 8 : i32
    %50 = arith.muli %c1_i32, %c8_i32_29 : i32
    %51 = tpu.assume_multiple %50, 8 : i32
    %52 = arith.index_cast %51 : i32 to index
    %c0_30 = arith.constant 0 : index
    %53 = vector.load %arg7[%52, %c0_30] : memref<64x512xf32, #tpu.memory_space<vmem>>, vector<8x512xf32>
    %c0_31 = arith.constant 0 : index
    %c0_32 = arith.constant 0 : index
    %54 = vector.load %arg9[%c0_31, %c0_32] : memref<8x128xbf16, #tpu.memory_space<vmem>>, vector<8x128xbf16>
    %c0_33 = arith.constant 0 : index
    %c0_34 = arith.constant 0 : index
    %55 = vector.load %arg3[%c0_33, %c0_34] : memref<128x512xbf16, #tpu.memory_space<vmem>>, vector<128x512xbf16>
    %cst_35 = arith.constant dense<0.000000e+00> : vector<8x512xf32>
    %56 = tpu.matmul %54, %55, %cst_35 {dimension_numbers = #tpu.dot_dimension_numbers<[1], [0], [0], [1], [0, 0, 1, 1], [], []>} : vector<8x128xbf16>, vector<128x512xbf16>, vector<8x512xf32> -> vector<8x512xf32>
    %57 = arith.addf %53, %56 : vector<8x512xf32>
    %58 = vector.extract_strided_slice %57 {offsets = [0, 0], sizes = [8, 128], strides = [1, 1]} : vector<8x512xf32> to vector<8x128xf32>
    %59 = arith.negf %58 : vector<8x128xf32>
    %60 = math.exp %59 : vector<8x128xf32>
    %cst_36 = arith.constant 1.000000e+00 : f32
    %61 = vector.broadcast %cst_36 : f32 to vector<8x128xf32>
    %62 = arith.addf %61, %60 : vector<8x128xf32>
    %63 = arith.divf %61, %62 : vector<8x128xf32>
    %64 = vector.extract_strided_slice %57 {offsets = [0, 128], sizes = [8, 128], strides = [1, 1]} : vector<8x512xf32> to vector<8x128xf32>
    %65 = arith.negf %64 : vector<8x128xf32>
    %66 = math.exp %65 : vector<8x128xf32>
    %cst_37 = arith.constant 1.000000e+00 : f32
    %67 = vector.broadcast %cst_37 : f32 to vector<8x128xf32>
    %68 = arith.addf %67, %66 : vector<8x128xf32>
    %69 = arith.divf %67, %68 : vector<8x128xf32>
    %70 = vector.extract_strided_slice %57 {offsets = [0, 256], sizes = [8, 128], strides = [1, 1]} : vector<8x512xf32> to vector<8x128xf32>
    %71 = math.tanh %70 : vector<8x128xf32>
    %72 = vector.extract_strided_slice %57 {offsets = [0, 384], sizes = [8, 128], strides = [1, 1]} : vector<8x512xf32> to vector<8x128xf32>
    %73 = arith.negf %72 : vector<8x128xf32>
    %74 = math.exp %73 : vector<8x128xf32>
    %cst_38 = arith.constant 1.000000e+00 : f32
    %75 = vector.broadcast %cst_38 : f32 to vector<8x128xf32>
    %76 = arith.addf %75, %74 : vector<8x128xf32>
    %77 = arith.divf %75, %76 : vector<8x128xf32>
    %c0_39 = arith.constant 0 : index
    %c0_40 = arith.constant 0 : index
    %78 = vector.load %arg10[%c0_39, %c0_40] : memref<8x128xf32, #tpu.memory_space<vmem>>, vector<8x128xf32>
    %79 = arith.mulf %69, %78 : vector<8x128xf32>
    %80 = arith.mulf %63, %71 : vector<8x128xf32>
    %81 = arith.addf %79, %80 : vector<8x128xf32>
    %82 = math.tanh %81 : vector<8x128xf32>
    %83 = arith.mulf %77, %82 : vector<8x128xf32>
    %c0_41 = arith.constant 0 : index
    %c0_42 = arith.constant 0 : index
    %84 = vector.load %arg10[%c0_41, %c0_42] : memref<8x128xf32, #tpu.memory_space<vmem>>, vector<8x128xf32>
    tpu.vector_store %arg10[%c0_41, %c0_42], %81 {strides = array<i32>} : memref<8x128xf32, #tpu.memory_space<vmem>>, vector<8x128xf32>,
    %85 = arith.truncf %83 : vector<8x128xf32> to vector<8x128xbf16>
    %c0_43 = arith.constant 0 : index
    %c0_44 = arith.constant 0 : index
    %86 = vector.load %arg9[%c0_43, %c0_44] : memref<8x128xbf16, #tpu.memory_space<vmem>>, vector<8x128xbf16>
    tpu.vector_store %arg9[%c0_43, %c0_44], %85 {strides = array<i32>} : memref<8x128xbf16, #tpu.memory_space<vmem>>, vector<8x128xbf16>,
    %87 = arith.index_cast %51 : i32 to index
    %c0_45 = arith.constant 0 : index
    %88 = vector.load %arg8[%87, %c0_45] : memref<64x128xf32, #tpu.memory_space<vmem>>, vector<8x128xf32>
    tpu.vector_store %arg8[%87, %c0_45], %83 {strides = array<i32>} : memref<64x128xf32, #tpu.memory_space<vmem>>, vector<8x128xf32>,
    %c2_i32 = arith.constant 2 : i32
    %c8_i32_46 = arith.constant 8 : i32
    %89 = arith.muli %c2_i32, %c8_i32_46 : i32
    %90 = tpu.assume_multiple %89, 8 : i32
    %91 = arith.index_cast %90 : i32 to index
    %c0_47 = arith.constant 0 : index
    %92 = vector.load %arg7[%91, %c0_47] : memref<64x512xf32, #tpu.memory_space<vmem>>, vector<8x512xf32>
    %c0_48 = arith.constant 0 : index
    %c0_49 = arith.constant 0 : index
    %93 = vector.load %arg9[%c0_48, %c0_49] : memref<8x128xbf16, #tpu.memory_space<vmem>>, vector<8x128xbf16>
    %c0_50 = arith.constant 0 : index
    %c0_51 = arith.constant 0 : index
    %94 = vector.load %arg3[%c0_50, %c0_51] : memref<128x512xbf16, #tpu.memory_space<vmem>>, vector<128x512xbf16>
    %cst_52 = arith.constant dense<0.000000e+00> : vector<8x512xf32>
    %95 = tpu.matmul %93, %94, %cst_52 {dimension_numbers = #tpu.dot_dimension_numbers<[1], [0], [0], [1], [0, 0, 1, 1], [], []>} : vector<8x128xbf16>, vector<128x512xbf16>, vector<8x512xf32> -> vector<8x512xf32>
    %96 = arith.addf %92, %95 : vector<8x512xf32>
    %97 = vector.extract_strided_slice %96 {offsets = [0, 0], sizes = [8, 128], strides = [1, 1]} : vector<8x512xf32> to vector<8x128xf32>
    %98 = arith.negf %97 : vector<8x128xf32>
    %99 = math.exp %98 : vector<8x128xf32>
    %cst_53 = arith.constant 1.000000e+00 : f32
    %100 = vector.broadcast %cst_53 : f32 to vector<8x128xf32>
    %101 = arith.addf %100, %99 : vector<8x128xf32>
    %102 = arith.divf %100, %101 : vector<8x128xf32>
    %103 = vector.extract_strided_slice %96 {offsets = [0, 128], sizes = [8, 128], strides = [1, 1]} : vector<8x512xf32> to vector<8x128xf32>
    %104 = arith.negf %103 : vector<8x128xf32>
    %105 = math.exp %104 : vector<8x128xf32>
    %cst_54 = arith.constant 1.000000e+00 : f32
    %106 = vector.broadcast %cst_54 : f32 to vector<8x128xf32>
    %107 = arith.addf %106, %105 : vector<8x128xf32>
    %108 = arith.divf %106, %107 : vector<8x128xf32>
    %109 = vector.extract_strided_slice %96 {offsets = [0, 256], sizes = [8, 128], strides = [1, 1]} : vector<8x512xf32> to vector<8x128xf32>
    %110 = math.tanh %109 : vector<8x128xf32>
    %111 = vector.extract_strided_slice %96 {offsets = [0, 384], sizes = [8, 128], strides = [1, 1]} : vector<8x512xf32> to vector<8x128xf32>
    %112 = arith.negf %111 : vector<8x128xf32>
    %113 = math.exp %112 : vector<8x128xf32>
    %cst_55 = arith.constant 1.000000e+00 : f32
    %114 = vector.broadcast %cst_55 : f32 to vector<8x128xf32>
    %115 = arith.addf %114, %113 : vector<8x128xf32>
    %116 = arith.divf %114, %115 : vector<8x128xf32>
    %c0_56 = arith.constant 0 : index
    %c0_57 = arith.constant 0 : index
    %117 = vector.load %arg10[%c0_56, %c0_57] : memref<8x128xf32, #tpu.memory_space<vmem>>, vector<8x128xf32>
    %118 = arith.mulf %108, %117 : vector<8x128xf32>
    %119 = arith.mulf %102, %110 : vector<8x128xf32>
    %120 = arith.addf %118, %119 : vector<8x128xf32>
    %121 = math.tanh %120 : vector<8x128xf32>
    %122 = arith.mulf %116, %121 : vector<8x128xf32>
    %c0_58 = arith.constant 0 : index
    %c0_59 = arith.constant 0 : index
    %123 = vector.load %arg10[%c0_58, %c0_59] : memref<8x128xf32, #tpu.memory_space<vmem>>, vector<8x128xf32>
    tpu.vector_store %arg10[%c0_58, %c0_59], %120 {strides = array<i32>} : memref<8x128xf32, #tpu.memory_space<vmem>>, vector<8x128xf32>,
    %124 = arith.truncf %122 : vector<8x128xf32> to vector<8x128xbf16>
    %c0_60 = arith.constant 0 : index
    %c0_61 = arith.constant 0 : index
    %125 = vector.load %arg9[%c0_60, %c0_61] : memref<8x128xbf16, #tpu.memory_space<vmem>>, vector<8x128xbf16>
    tpu.vector_store %arg9[%c0_60, %c0_61], %124 {strides = array<i32>} : memref<8x128xbf16, #tpu.memory_space<vmem>>, vector<8x128xbf16>,
    %126 = arith.index_cast %90 : i32 to index
    %c0_62 = arith.constant 0 : index
    %127 = vector.load %arg8[%126, %c0_62] : memref<64x128xf32, #tpu.memory_space<vmem>>, vector<8x128xf32>
    tpu.vector_store %arg8[%126, %c0_62], %122 {strides = array<i32>} : memref<64x128xf32, #tpu.memory_space<vmem>>, vector<8x128xf32>,
    %c3_i32 = arith.constant 3 : i32
    %c8_i32_63 = arith.constant 8 : i32
    %128 = arith.muli %c3_i32, %c8_i32_63 : i32
    %129 = tpu.assume_multiple %128, 8 : i32
    %130 = arith.index_cast %129 : i32 to index
    %c0_64 = arith.constant 0 : index
    %131 = vector.load %arg7[%130, %c0_64] : memref<64x512xf32, #tpu.memory_space<vmem>>, vector<8x512xf32>
    %c0_65 = arith.constant 0 : index
    %c0_66 = arith.constant 0 : index
    %132 = vector.load %arg9[%c0_65, %c0_66] : memref<8x128xbf16, #tpu.memory_space<vmem>>, vector<8x128xbf16>
    %c0_67 = arith.constant 0 : index
    %c0_68 = arith.constant 0 : index
    %133 = vector.load %arg3[%c0_67, %c0_68] : memref<128x512xbf16, #tpu.memory_space<vmem>>, vector<128x512xbf16>
    %cst_69 = arith.constant dense<0.000000e+00> : vector<8x512xf32>
    %134 = tpu.matmul %132, %133, %cst_69 {dimension_numbers = #tpu.dot_dimension_numbers<[1], [0], [0], [1], [0, 0, 1, 1], [], []>} : vector<8x128xbf16>, vector<128x512xbf16>, vector<8x512xf32> -> vector<8x512xf32>
    %135 = arith.addf %131, %134 : vector<8x512xf32>
    %136 = vector.extract_strided_slice %135 {offsets = [0, 0], sizes = [8, 128], strides = [1, 1]} : vector<8x512xf32> to vector<8x128xf32>
    %137 = arith.negf %136 : vector<8x128xf32>
    %138 = math.exp %137 : vector<8x128xf32>
    %cst_70 = arith.constant 1.000000e+00 : f32
    %139 = vector.broadcast %cst_70 : f32 to vector<8x128xf32>
    %140 = arith.addf %139, %138 : vector<8x128xf32>
    %141 = arith.divf %139, %140 : vector<8x128xf32>
    %142 = vector.extract_strided_slice %135 {offsets = [0, 128], sizes = [8, 128], strides = [1, 1]} : vector<8x512xf32> to vector<8x128xf32>
    %143 = arith.negf %142 : vector<8x128xf32>
    %144 = math.exp %143 : vector<8x128xf32>
    %cst_71 = arith.constant 1.000000e+00 : f32
    %145 = vector.broadcast %cst_71 : f32 to vector<8x128xf32>
    %146 = arith.addf %145, %144 : vector<8x128xf32>
    %147 = arith.divf %145, %146 : vector<8x128xf32>
    %148 = vector.extract_strided_slice %135 {offsets = [0, 256], sizes = [8, 128], strides = [1, 1]} : vector<8x512xf32> to vector<8x128xf32>
    %149 = math.tanh %148 : vector<8x128xf32>
    %150 = vector.extract_strided_slice %135 {offsets = [0, 384], sizes = [8, 128], strides = [1, 1]} : vector<8x512xf32> to vector<8x128xf32>
    %151 = arith.negf %150 : vector<8x128xf32>
    %152 = math.exp %151 : vector<8x128xf32>
    %cst_72 = arith.constant 1.000000e+00 : f32
    %153 = vector.broadcast %cst_72 : f32 to vector<8x128xf32>
    %154 = arith.addf %153, %152 : vector<8x128xf32>
    %155 = arith.divf %153, %154 : vector<8x128xf32>
    %c0_73 = arith.constant 0 : index
    %c0_74 = arith.constant 0 : index
    %156 = vector.load %arg10[%c0_73, %c0_74] : memref<8x128xf32, #tpu.memory_space<vmem>>, vector<8x128xf32>
    %157 = arith.mulf %147, %156 : vector<8x128xf32>
    %158 = arith.mulf %141, %149 : vector<8x128xf32>
    %159 = arith.addf %157, %158 : vector<8x128xf32>
    %160 = math.tanh %159 : vector<8x128xf32>
    %161 = arith.mulf %155, %160 : vector<8x128xf32>
    %c0_75 = arith.constant 0 : index
    %c0_76 = arith.constant 0 : index
    %162 = vector.load %arg10[%c0_75, %c0_76] : memref<8x128xf32, #tpu.memory_space<vmem>>, vector<8x128xf32>
    tpu.vector_store %arg10[%c0_75, %c0_76], %159 {strides = array<i32>} : memref<8x128xf32, #tpu.memory_space<vmem>>, vector<8x128xf32>,
    %163 = arith.truncf %161 : vector<8x128xf32> to vector<8x128xbf16>
    %c0_77 = arith.constant 0 : index
    %c0_78 = arith.constant 0 : index
    %164 = vector.load %arg9[%c0_77, %c0_78] : memref<8x128xbf16, #tpu.memory_space<vmem>>, vector<8x128xbf16>
    tpu.vector_store %arg9[%c0_77, %c0_78], %163 {strides = array<i32>} : memref<8x128xbf16, #tpu.memory_space<vmem>>, vector<8x128xbf16>,
    %165 = arith.index_cast %129 : i32 to index
    %c0_79 = arith.constant 0 : index
    %166 = vector.load %arg8[%165, %c0_79] : memref<64x128xf32, #tpu.memory_space<vmem>>, vector<8x128xf32>
    tpu.vector_store %arg8[%165, %c0_79], %161 {strides = array<i32>} : memref<64x128xf32, #tpu.memory_space<vmem>>, vector<8x128xf32>,
    %c4_i32 = arith.constant 4 : i32
    %c8_i32_80 = arith.constant 8 : i32
    %167 = arith.muli %c4_i32, %c8_i32_80 : i32
    %168 = tpu.assume_multiple %167, 8 : i32
    %169 = arith.index_cast %168 : i32 to index
    %c0_81 = arith.constant 0 : index
    %170 = vector.load %arg7[%169, %c0_81] : memref<64x512xf32, #tpu.memory_space<vmem>>, vector<8x512xf32>
    %c0_82 = arith.constant 0 : index
    %c0_83 = arith.constant 0 : index
    %171 = vector.load %arg9[%c0_82, %c0_83] : memref<8x128xbf16, #tpu.memory_space<vmem>>, vector<8x128xbf16>
    %c0_84 = arith.constant 0 : index
    %c0_85 = arith.constant 0 : index
    %172 = vector.load %arg3[%c0_84, %c0_85] : memref<128x512xbf16, #tpu.memory_space<vmem>>, vector<128x512xbf16>
    %cst_86 = arith.constant dense<0.000000e+00> : vector<8x512xf32>
    %173 = tpu.matmul %171, %172, %cst_86 {dimension_numbers = #tpu.dot_dimension_numbers<[1], [0], [0], [1], [0, 0, 1, 1], [], []>} : vector<8x128xbf16>, vector<128x512xbf16>, vector<8x512xf32> -> vector<8x512xf32>
    %174 = arith.addf %170, %173 : vector<8x512xf32>
    %175 = vector.extract_strided_slice %174 {offsets = [0, 0], sizes = [8, 128], strides = [1, 1]} : vector<8x512xf32> to vector<8x128xf32>
    %176 = arith.negf %175 : vector<8x128xf32>
    %177 = math.exp %176 : vector<8x128xf32>
    %cst_87 = arith.constant 1.000000e+00 : f32
    %178 = vector.broadcast %cst_87 : f32 to vector<8x128xf32>
    %179 = arith.addf %178, %177 : vector<8x128xf32>
    %180 = arith.divf %178, %179 : vector<8x128xf32>
    %181 = vector.extract_strided_slice %174 {offsets = [0, 128], sizes = [8, 128], strides = [1, 1]} : vector<8x512xf32> to vector<8x128xf32>
    %182 = arith.negf %181 : vector<8x128xf32>
    %183 = math.exp %182 : vector<8x128xf32>
    %cst_88 = arith.constant 1.000000e+00 : f32
    %184 = vector.broadcast %cst_88 : f32 to vector<8x128xf32>
    %185 = arith.addf %184, %183 : vector<8x128xf32>
    %186 = arith.divf %184, %185 : vector<8x128xf32>
    %187 = vector.extract_strided_slice %174 {offsets = [0, 256], sizes = [8, 128], strides = [1, 1]} : vector<8x512xf32> to vector<8x128xf32>
    %188 = math.tanh %187 : vector<8x128xf32>
    %189 = vector.extract_strided_slice %174 {offsets = [0, 384], sizes = [8, 128], strides = [1, 1]} : vector<8x512xf32> to vector<8x128xf32>
    %190 = arith.negf %189 : vector<8x128xf32>
    %191 = math.exp %190 : vector<8x128xf32>
    %cst_89 = arith.constant 1.000000e+00 : f32
    %192 = vector.broadcast %cst_89 : f32 to vector<8x128xf32>
    %193 = arith.addf %192, %191 : vector<8x128xf32>
    %194 = arith.divf %192, %193 : vector<8x128xf32>
    %c0_90 = arith.constant 0 : index
    %c0_91 = arith.constant 0 : index
    %195 = vector.load %arg10[%c0_90, %c0_91] : memref<8x128xf32, #tpu.memory_space<vmem>>, vector<8x128xf32>
    %196 = arith.mulf %186, %195 : vector<8x128xf32>
    %197 = arith.mulf %180, %188 : vector<8x128xf32>
    %198 = arith.addf %196, %197 : vector<8x128xf32>
    %199 = math.tanh %198 : vector<8x128xf32>
    %200 = arith.mulf %194, %199 : vector<8x128xf32>
    %c0_92 = arith.constant 0 : index
    %c0_93 = arith.constant 0 : index
    %201 = vector.load %arg10[%c0_92, %c0_93] : memref<8x128xf32, #tpu.memory_space<vmem>>, vector<8x128xf32>
    tpu.vector_store %arg10[%c0_92, %c0_93], %198 {strides = array<i32>} : memref<8x128xf32, #tpu.memory_space<vmem>>, vector<8x128xf32>,
    %202 = arith.truncf %200 : vector<8x128xf32> to vector<8x128xbf16>
    %c0_94 = arith.constant 0 : index
    %c0_95 = arith.constant 0 : index
    %203 = vector.load %arg9[%c0_94, %c0_95] : memref<8x128xbf16, #tpu.memory_space<vmem>>, vector<8x128xbf16>
    tpu.vector_store %arg9[%c0_94, %c0_95], %202 {strides = array<i32>} : memref<8x128xbf16, #tpu.memory_space<vmem>>, vector<8x128xbf16>,
    %204 = arith.index_cast %168 : i32 to index
    %c0_96 = arith.constant 0 : index
    %205 = vector.load %arg8[%204, %c0_96] : memref<64x128xf32, #tpu.memory_space<vmem>>, vector<8x128xf32>
    tpu.vector_store %arg8[%204, %c0_96], %200 {strides = array<i32>} : memref<64x128xf32, #tpu.memory_space<vmem>>, vector<8x128xf32>,
    %c5_i32 = arith.constant 5 : i32
    %c8_i32_97 = arith.constant 8 : i32
    %206 = arith.muli %c5_i32, %c8_i32_97 : i32
    %207 = tpu.assume_multiple %206, 8 : i32
    %208 = arith.index_cast %207 : i32 to index
    %c0_98 = arith.constant 0 : index
    %209 = vector.load %arg7[%208, %c0_98] : memref<64x512xf32, #tpu.memory_space<vmem>>, vector<8x512xf32>
    %c0_99 = arith.constant 0 : index
    %c0_100 = arith.constant 0 : index
    %210 = vector.load %arg9[%c0_99, %c0_100] : memref<8x128xbf16, #tpu.memory_space<vmem>>, vector<8x128xbf16>
    %c0_101 = arith.constant 0 : index
    %c0_102 = arith.constant 0 : index
    %211 = vector.load %arg3[%c0_101, %c0_102] : memref<128x512xbf16, #tpu.memory_space<vmem>>, vector<128x512xbf16>
    %cst_103 = arith.constant dense<0.000000e+00> : vector<8x512xf32>
    %212 = tpu.matmul %210, %211, %cst_103 {dimension_numbers = #tpu.dot_dimension_numbers<[1], [0], [0], [1], [0, 0, 1, 1], [], []>} : vector<8x128xbf16>, vector<128x512xbf16>, vector<8x512xf32> -> vector<8x512xf32>
    %213 = arith.addf %209, %212 : vector<8x512xf32>
    %214 = vector.extract_strided_slice %213 {offsets = [0, 0], sizes = [8, 128], strides = [1, 1]} : vector<8x512xf32> to vector<8x128xf32>
    %215 = arith.negf %214 : vector<8x128xf32>
    %216 = math.exp %215 : vector<8x128xf32>
    %cst_104 = arith.constant 1.000000e+00 : f32
    %217 = vector.broadcast %cst_104 : f32 to vector<8x128xf32>
    %218 = arith.addf %217, %216 : vector<8x128xf32>
    %219 = arith.divf %217, %218 : vector<8x128xf32>
    %220 = vector.extract_strided_slice %213 {offsets = [0, 128], sizes = [8, 128], strides = [1, 1]} : vector<8x512xf32> to vector<8x128xf32>
    %221 = arith.negf %220 : vector<8x128xf32>
    %222 = math.exp %221 : vector<8x128xf32>
    %cst_105 = arith.constant 1.000000e+00 : f32
    %223 = vector.broadcast %cst_105 : f32 to vector<8x128xf32>
    %224 = arith.addf %223, %222 : vector<8x128xf32>
    %225 = arith.divf %223, %224 : vector<8x128xf32>
    %226 = vector.extract_strided_slice %213 {offsets = [0, 256], sizes = [8, 128], strides = [1, 1]} : vector<8x512xf32> to vector<8x128xf32>
    %227 = math.tanh %226 : vector<8x128xf32>
    %228 = vector.extract_strided_slice %213 {offsets = [0, 384], sizes = [8, 128], strides = [1, 1]} : vector<8x512xf32> to vector<8x128xf32>
    %229 = arith.negf %228 : vector<8x128xf32>
    %230 = math.exp %229 : vector<8x128xf32>
    %cst_106 = arith.constant 1.000000e+00 : f32
    %231 = vector.broadcast %cst_106 : f32 to vector<8x128xf32>
    %232 = arith.addf %231, %230 : vector<8x128xf32>
    %233 = arith.divf %231, %232 : vector<8x128xf32>
    %c0_107 = arith.constant 0 : index
    %c0_108 = arith.constant 0 : index
    %234 = vector.load %arg10[%c0_107, %c0_108] : memref<8x128xf32, #tpu.memory_space<vmem>>, vector<8x128xf32>
    %235 = arith.mulf %225, %234 : vector<8x128xf32>
    %236 = arith.mulf %219, %227 : vector<8x128xf32>
    %237 = arith.addf %235, %236 : vector<8x128xf32>
    %238 = math.tanh %237 : vector<8x128xf32>
    %239 = arith.mulf %233, %238 : vector<8x128xf32>
    %c0_109 = arith.constant 0 : index
    %c0_110 = arith.constant 0 : index
    %240 = vector.load %arg10[%c0_109, %c0_110] : memref<8x128xf32, #tpu.memory_space<vmem>>, vector<8x128xf32>
    tpu.vector_store %arg10[%c0_109, %c0_110], %237 {strides = array<i32>} : memref<8x128xf32, #tpu.memory_space<vmem>>, vector<8x128xf32>,
    %241 = arith.truncf %239 : vector<8x128xf32> to vector<8x128xbf16>
    %c0_111 = arith.constant 0 : index
    %c0_112 = arith.constant 0 : index
    %242 = vector.load %arg9[%c0_111, %c0_112] : memref<8x128xbf16, #tpu.memory_space<vmem>>, vector<8x128xbf16>
    tpu.vector_store %arg9[%c0_111, %c0_112], %241 {strides = array<i32>} : memref<8x128xbf16, #tpu.memory_space<vmem>>, vector<8x128xbf16>,
    %243 = arith.index_cast %207 : i32 to index
    %c0_113 = arith.constant 0 : index
    %244 = vector.load %arg8[%243, %c0_113] : memref<64x128xf32, #tpu.memory_space<vmem>>, vector<8x128xf32>
    tpu.vector_store %arg8[%243, %c0_113], %239 {strides = array<i32>} : memref<64x128xf32, #tpu.memory_space<vmem>>, vector<8x128xf32>,
    %c6_i32 = arith.constant 6 : i32
    %c8_i32_114 = arith.constant 8 : i32
    %245 = arith.muli %c6_i32, %c8_i32_114 : i32
    %246 = tpu.assume_multiple %245, 8 : i32
    %247 = arith.index_cast %246 : i32 to index
    %c0_115 = arith.constant 0 : index
    %248 = vector.load %arg7[%247, %c0_115] : memref<64x512xf32, #tpu.memory_space<vmem>>, vector<8x512xf32>
    %c0_116 = arith.constant 0 : index
    %c0_117 = arith.constant 0 : index
    %249 = vector.load %arg9[%c0_116, %c0_117] : memref<8x128xbf16, #tpu.memory_space<vmem>>, vector<8x128xbf16>
    %c0_118 = arith.constant 0 : index
    %c0_119 = arith.constant 0 : index
    %250 = vector.load %arg3[%c0_118, %c0_119] : memref<128x512xbf16, #tpu.memory_space<vmem>>, vector<128x512xbf16>
    %cst_120 = arith.constant dense<0.000000e+00> : vector<8x512xf32>
    %251 = tpu.matmul %249, %250, %cst_120 {dimension_numbers = #tpu.dot_dimension_numbers<[1], [0], [0], [1], [0, 0, 1, 1], [], []>} : vector<8x128xbf16>, vector<128x512xbf16>, vector<8x512xf32> -> vector<8x512xf32>
    %252 = arith.addf %248, %251 : vector<8x512xf32>
    %253 = vector.extract_strided_slice %252 {offsets = [0, 0], sizes = [8, 128], strides = [1, 1]} : vector<8x512xf32> to vector<8x128xf32>
    %254 = arith.negf %253 : vector<8x128xf32>
    %255 = math.exp %254 : vector<8x128xf32>
    %cst_121 = arith.constant 1.000000e+00 : f32
    %256 = vector.broadcast %cst_121 : f32 to vector<8x128xf32>
    %257 = arith.addf %256, %255 : vector<8x128xf32>
    %258 = arith.divf %256, %257 : vector<8x128xf32>
    %259 = vector.extract_strided_slice %252 {offsets = [0, 128], sizes = [8, 128], strides = [1, 1]} : vector<8x512xf32> to vector<8x128xf32>
    %260 = arith.negf %259 : vector<8x128xf32>
    %261 = math.exp %260 : vector<8x128xf32>
    %cst_122 = arith.constant 1.000000e+00 : f32
    %262 = vector.broadcast %cst_122 : f32 to vector<8x128xf32>
    %263 = arith.addf %262, %261 : vector<8x128xf32>
    %264 = arith.divf %262, %263 : vector<8x128xf32>
    %265 = vector.extract_strided_slice %252 {offsets = [0, 256], sizes = [8, 128], strides = [1, 1]} : vector<8x512xf32> to vector<8x128xf32>
    %266 = math.tanh %265 : vector<8x128xf32>
    %267 = vector.extract_strided_slice %252 {offsets = [0, 384], sizes = [8, 128], strides = [1, 1]} : vector<8x512xf32> to vector<8x128xf32>
    %268 = arith.negf %267 : vector<8x128xf32>
    %269 = math.exp %268 : vector<8x128xf32>
    %cst_123 = arith.constant 1.000000e+00 : f32
    %270 = vector.broadcast %cst_123 : f32 to vector<8x128xf32>
    %271 = arith.addf %270, %269 : vector<8x128xf32>
    %272 = arith.divf %270, %271 : vector<8x128xf32>
    %c0_124 = arith.constant 0 : index
    %c0_125 = arith.constant 0 : index
    %273 = vector.load %arg10[%c0_124, %c0_125] : memref<8x128xf32, #tpu.memory_space<vmem>>, vector<8x128xf32>
    %274 = arith.mulf %264, %273 : vector<8x128xf32>
    %275 = arith.mulf %258, %266 : vector<8x128xf32>
    %276 = arith.addf %274, %275 : vector<8x128xf32>
    %277 = math.tanh %276 : vector<8x128xf32>
    %278 = arith.mulf %272, %277 : vector<8x128xf32>
    %c0_126 = arith.constant 0 : index
    %c0_127 = arith.constant 0 : index
    %279 = vector.load %arg10[%c0_126, %c0_127] : memref<8x128xf32, #tpu.memory_space<vmem>>, vector<8x128xf32>
    tpu.vector_store %arg10[%c0_126, %c0_127], %276 {strides = array<i32>} : memref<8x128xf32, #tpu.memory_space<vmem>>, vector<8x128xf32>,
    %280 = arith.truncf %278 : vector<8x128xf32> to vector<8x128xbf16>
    %c0_128 = arith.constant 0 : index
    %c0_129 = arith.constant 0 : index
    %281 = vector.load %arg9[%c0_128, %c0_129] : memref<8x128xbf16, #tpu.memory_space<vmem>>, vector<8x128xbf16>
    tpu.vector_store %arg9[%c0_128, %c0_129], %280 {strides = array<i32>} : memref<8x128xbf16, #tpu.memory_space<vmem>>, vector<8x128xbf16>,
    %282 = arith.index_cast %246 : i32 to index
    %c0_130 = arith.constant 0 : index
    %283 = vector.load %arg8[%282, %c0_130] : memref<64x128xf32, #tpu.memory_space<vmem>>, vector<8x128xf32>
    tpu.vector_store %arg8[%282, %c0_130], %278 {strides = array<i32>} : memref<64x128xf32, #tpu.memory_space<vmem>>, vector<8x128xf32>,
    %c7_i32 = arith.constant 7 : i32
    %c8_i32_131 = arith.constant 8 : i32
    %284 = arith.muli %c7_i32, %c8_i32_131 : i32
    %285 = tpu.assume_multiple %284, 8 : i32
    %286 = arith.index_cast %285 : i32 to index
    %c0_132 = arith.constant 0 : index
    %287 = vector.load %arg7[%286, %c0_132] : memref<64x512xf32, #tpu.memory_space<vmem>>, vector<8x512xf32>
    %c0_133 = arith.constant 0 : index
    %c0_134 = arith.constant 0 : index
    %288 = vector.load %arg9[%c0_133, %c0_134] : memref<8x128xbf16, #tpu.memory_space<vmem>>, vector<8x128xbf16>
    %c0_135 = arith.constant 0 : index
    %c0_136 = arith.constant 0 : index
    %289 = vector.load %arg3[%c0_135, %c0_136] : memref<128x512xbf16, #tpu.memory_space<vmem>>, vector<128x512xbf16>
    %cst_137 = arith.constant dense<0.000000e+00> : vector<8x512xf32>
    %290 = tpu.matmul %288, %289, %cst_137 {dimension_numbers = #tpu.dot_dimension_numbers<[1], [0], [0], [1], [0, 0, 1, 1], [], []>} : vector<8x128xbf16>, vector<128x512xbf16>, vector<8x512xf32> -> vector<8x512xf32>
    %291 = arith.addf %287, %290 : vector<8x512xf32>
    %292 = vector.extract_strided_slice %291 {offsets = [0, 0], sizes = [8, 128], strides = [1, 1]} : vector<8x512xf32> to vector<8x128xf32>
    %293 = arith.negf %292 : vector<8x128xf32>
    %294 = math.exp %293 : vector<8x128xf32>
    %cst_138 = arith.constant 1.000000e+00 : f32
    %295 = vector.broadcast %cst_138 : f32 to vector<8x128xf32>
    %296 = arith.addf %295, %294 : vector<8x128xf32>
    %297 = arith.divf %295, %296 : vector<8x128xf32>
    %298 = vector.extract_strided_slice %291 {offsets = [0, 128], sizes = [8, 128], strides = [1, 1]} : vector<8x512xf32> to vector<8x128xf32>
    %299 = arith.negf %298 : vector<8x128xf32>
    %300 = math.exp %299 : vector<8x128xf32>
    %cst_139 = arith.constant 1.000000e+00 : f32
    %301 = vector.broadcast %cst_139 : f32 to vector<8x128xf32>
    %302 = arith.addf %301, %300 : vector<8x128xf32>
    %303 = arith.divf %301, %302 : vector<8x128xf32>
    %304 = vector.extract_strided_slice %291 {offsets = [0, 256], sizes = [8, 128], strides = [1, 1]} : vector<8x512xf32> to vector<8x128xf32>
    %305 = math.tanh %304 : vector<8x128xf32>
    %306 = vector.extract_strided_slice %291 {offsets = [0, 384], sizes = [8, 128], strides = [1, 1]} : vector<8x512xf32> to vector<8x128xf32>
    %307 = arith.negf %306 : vector<8x128xf32>
    %308 = math.exp %307 : vector<8x128xf32>
    %cst_140 = arith.constant 1.000000e+00 : f32
    %309 = vector.broadcast %cst_140 : f32 to vector<8x128xf32>
    %310 = arith.addf %309, %308 : vector<8x128xf32>
    %311 = arith.divf %309, %310 : vector<8x128xf32>
    %c0_141 = arith.constant 0 : index
    %c0_142 = arith.constant 0 : index
    %312 = vector.load %arg10[%c0_141, %c0_142] : memref<8x128xf32, #tpu.memory_space<vmem>>, vector<8x128xf32>
    %313 = arith.mulf %303, %312 : vector<8x128xf32>
    %314 = arith.mulf %297, %305 : vector<8x128xf32>
    %315 = arith.addf %313, %314 : vector<8x128xf32>
    %316 = math.tanh %315 : vector<8x128xf32>
    %317 = arith.mulf %311, %316 : vector<8x128xf32>
    %c0_143 = arith.constant 0 : index
    %c0_144 = arith.constant 0 : index
    %318 = vector.load %arg10[%c0_143, %c0_144] : memref<8x128xf32, #tpu.memory_space<vmem>>, vector<8x128xf32>
    tpu.vector_store %arg10[%c0_143, %c0_144], %315 {strides = array<i32>} : memref<8x128xf32, #tpu.memory_space<vmem>>, vector<8x128xf32>,
    %319 = arith.truncf %317 : vector<8x128xf32> to vector<8x128xbf16>
    %c0_145 = arith.constant 0 : index
    %c0_146 = arith.constant 0 : index
    %320 = vector.load %arg9[%c0_145, %c0_146] : memref<8x128xbf16, #tpu.memory_space<vmem>>, vector<8x128xbf16>
    tpu.vector_store %arg9[%c0_145, %c0_146], %319 {strides = array<i32>} : memref<8x128xbf16, #tpu.memory_space<vmem>>, vector<8x128xbf16>,
    %321 = arith.index_cast %285 : i32 to index
    %c0_147 = arith.constant 0 : index
    %322 = vector.load %arg8[%321, %c0_147] : memref<64x128xf32, #tpu.memory_space<vmem>>, vector<8x128xf32>
    tpu.vector_store %arg8[%321, %c0_147], %317 {strides = array<i32>} : memref<64x128xf32, #tpu.memory_space<vmem>>, vector<8x128xf32>,
    %c8_i32_148 = arith.constant 8 : i32
    %c0_149 = arith.constant 0 : index
    %c0_150 = arith.constant 0 : index
    %323 = vector.load %arg8[%c0_149, %c0_150] : memref<64x128xf32, #tpu.memory_space<vmem>>, vector<64x128xf32>
    %324 = arith.truncf %323 : vector<64x128xf32> to vector<64x128xbf16>
    %c0_151 = arith.constant 0 : index
    %c0_152 = arith.constant 0 : index
    %325 = vector.load %arg4[%c0_151, %c0_152] : memref<128x256xbf16, #tpu.memory_space<vmem>>, vector<128x256xbf16>
    %cst_153 = arith.constant dense<0.000000e+00> : vector<64x256xf32>
    %326 = tpu.matmul %324, %325, %cst_153 {dimension_numbers = #tpu.dot_dimension_numbers<[1], [0], [0], [1], [0, 0, 1, 1], [], []>} : vector<64x128xbf16>, vector<128x256xbf16>, vector<64x256xf32> -> vector<64x256xf32>
    %c0_154 = arith.constant 0 : index
    %c0_155 = arith.constant 0 : index
    %327 = vector.load %arg11[%c0_154, %c0_155] : memref<64x256xf32, #tpu.memory_space<vmem>>, vector<64x256xf32>
    tpu.vector_store %arg11[%c0_154, %c0_155], %326 {strides = array<i32>} : memref<64x256xf32, #tpu.memory_space<vmem>>, vector<64x256xf32>,
    %c0_i32_156 = arith.constant 0 : i32
    %c8_i32_157 = arith.constant 8 : i32
    %328 = arith.muli %c0_i32_156, %c8_i32_157 : i32
    %329 = tpu.assume_multiple %328, 8 : i32
    %c7_i32_158 = arith.constant 7 : i32
    %330 = arith.subi %c7_i32_158, %c0_i32_156 : i32
    %c8_i32_159 = arith.constant 8 : i32
    %331 = arith.muli %330, %c8_i32_159 : i32
    %332 = tpu.assume_multiple %331, 8 : i32
    %333 = arith.index_cast %329 : i32 to index
    %c0_160 = arith.constant 0 : index
    %334 = vector.load %arg11[%333, %c0_160] : memref<64x256xf32, #tpu.memory_space<vmem>>, vector<8x256xf32>
    %335 = arith.index_cast %332 : i32 to index
    %c0_161 = arith.constant 0 : index
    %336 = vector.load %arg11[%335, %c0_161] : memref<64x256xf32, #tpu.memory_space<vmem>>, vector<8x256xf32>
    %337 = vector.extract_strided_slice %334 {offsets = [0, 0], sizes = [8, 128], strides = [1, 1]} : vector<8x256xf32> to vector<8x128xf32>
    %338 = vector.extract_strided_slice %336 {offsets = [0, 128], sizes = [8, 128], strides = [1, 1]} : vector<8x256xf32> to vector<8x128xf32>
    %339 = arith.addf %337, %338 : vector<8x128xf32>
    %c0_162 = arith.constant 0 : index
    %c0_163 = arith.constant 0 : index
    %340 = vector.load %arg5[%c0_162, %c0_163] : memref<1x128xf32, #tpu.memory_space<vmem>>, vector<1x128xf32>
    %341 = vector.broadcast %340 : vector<1x128xf32> to vector<8x128xf32>
    %342 = arith.addf %339, %341 : vector<8x128xf32>
    %343 = arith.index_cast %329 : i32 to index
    %c0_164 = arith.constant 0 : index
    %344 = vector.load %arg6[%343, %c0_164] : memref<64x128xf32, #tpu.memory_space<vmem>>, vector<8x128xf32>
    tpu.vector_store %arg6[%343, %c0_164], %342 {strides = array<i32>} : memref<64x128xf32, #tpu.memory_space<vmem>>, vector<8x128xf32>,
    %c1_i32_165 = arith.constant 1 : i32
    %c8_i32_166 = arith.constant 8 : i32
    %345 = arith.muli %c1_i32_165, %c8_i32_166 : i32
    %346 = tpu.assume_multiple %345, 8 : i32
    %c7_i32_167 = arith.constant 7 : i32
    %347 = arith.subi %c7_i32_167, %c1_i32_165 : i32
    %c8_i32_168 = arith.constant 8 : i32
    %348 = arith.muli %347, %c8_i32_168 : i32
    %349 = tpu.assume_multiple %348, 8 : i32
    %350 = arith.index_cast %346 : i32 to index
    %c0_169 = arith.constant 0 : index
    %351 = vector.load %arg11[%350, %c0_169] : memref<64x256xf32, #tpu.memory_space<vmem>>, vector<8x256xf32>
    %352 = arith.index_cast %349 : i32 to index
    %c0_170 = arith.constant 0 : index
    %353 = vector.load %arg11[%352, %c0_170] : memref<64x256xf32, #tpu.memory_space<vmem>>, vector<8x256xf32>
    %354 = vector.extract_strided_slice %351 {offsets = [0, 0], sizes = [8, 128], strides = [1, 1]} : vector<8x256xf32> to vector<8x128xf32>
    %355 = vector.extract_strided_slice %353 {offsets = [0, 128], sizes = [8, 128], strides = [1, 1]} : vector<8x256xf32> to vector<8x128xf32>
    %356 = arith.addf %354, %355 : vector<8x128xf32>
    %c0_171 = arith.constant 0 : index
    %c0_172 = arith.constant 0 : index
    %357 = vector.load %arg5[%c0_171, %c0_172] : memref<1x128xf32, #tpu.memory_space<vmem>>, vector<1x128xf32>
    %358 = vector.broadcast %357 : vector<1x128xf32> to vector<8x128xf32>
    %359 = arith.addf %356, %358 : vector<8x128xf32>
    %360 = arith.index_cast %346 : i32 to index
    %c0_173 = arith.constant 0 : index
    %361 = vector.load %arg6[%360, %c0_173] : memref<64x128xf32, #tpu.memory_space<vmem>>, vector<8x128xf32>
    tpu.vector_store %arg6[%360, %c0_173], %359 {strides = array<i32>} : memref<64x128xf32, #tpu.memory_space<vmem>>, vector<8x128xf32>,
    %c2_i32_174 = arith.constant 2 : i32
    %c8_i32_175 = arith.constant 8 : i32
    %362 = arith.muli %c2_i32_174, %c8_i32_175 : i32
    %363 = tpu.assume_multiple %362, 8 : i32
    %c7_i32_176 = arith.constant 7 : i32
    %364 = arith.subi %c7_i32_176, %c2_i32_174 : i32
    %c8_i32_177 = arith.constant 8 : i32
    %365 = arith.muli %364, %c8_i32_177 : i32
    %366 = tpu.assume_multiple %365, 8 : i32
    %367 = arith.index_cast %363 : i32 to index
    %c0_178 = arith.constant 0 : index
    %368 = vector.load %arg11[%367, %c0_178] : memref<64x256xf32, #tpu.memory_space<vmem>>, vector<8x256xf32>
    %369 = arith.index_cast %366 : i32 to index
    %c0_179 = arith.constant 0 : index
    %370 = vector.load %arg11[%369, %c0_179] : memref<64x256xf32, #tpu.memory_space<vmem>>, vector<8x256xf32>
    %371 = vector.extract_strided_slice %368 {offsets = [0, 0], sizes = [8, 128], strides = [1, 1]} : vector<8x256xf32> to vector<8x128xf32>
    %372 = vector.extract_strided_slice %370 {offsets = [0, 128], sizes = [8, 128], strides = [1, 1]} : vector<8x256xf32> to vector<8x128xf32>
    %373 = arith.addf %371, %372 : vector<8x128xf32>
    %c0_180 = arith.constant 0 : index
    %c0_181 = arith.constant 0 : index
    %374 = vector.load %arg5[%c0_180, %c0_181] : memref<1x128xf32, #tpu.memory_space<vmem>>, vector<1x128xf32>
    %375 = vector.broadcast %374 : vector<1x128xf32> to vector<8x128xf32>
    %376 = arith.addf %373, %375 : vector<8x128xf32>
    %377 = arith.index_cast %363 : i32 to index
    %c0_182 = arith.constant 0 : index
    %378 = vector.load %arg6[%377, %c0_182] : memref<64x128xf32, #tpu.memory_space<vmem>>, vector<8x128xf32>
    tpu.vector_store %arg6[%377, %c0_182], %376 {strides = array<i32>} : memref<64x128xf32, #tpu.memory_space<vmem>>, vector<8x128xf32>,
    %c3_i32_183 = arith.constant 3 : i32
    %c8_i32_184 = arith.constant 8 : i32
    %379 = arith.muli %c3_i32_183, %c8_i32_184 : i32
    %380 = tpu.assume_multiple %379, 8 : i32
    %c7_i32_185 = arith.constant 7 : i32
    %381 = arith.subi %c7_i32_185, %c3_i32_183 : i32
    %c8_i32_186 = arith.constant 8 : i32
    %382 = arith.muli %381, %c8_i32_186 : i32
    %383 = tpu.assume_multiple %382, 8 : i32
    %384 = arith.index_cast %380 : i32 to index
    %c0_187 = arith.constant 0 : index
    %385 = vector.load %arg11[%384, %c0_187] : memref<64x256xf32, #tpu.memory_space<vmem>>, vector<8x256xf32>
    %386 = arith.index_cast %383 : i32 to index
    %c0_188 = arith.constant 0 : index
    %387 = vector.load %arg11[%386, %c0_188] : memref<64x256xf32, #tpu.memory_space<vmem>>, vector<8x256xf32>
    %388 = vector.extract_strided_slice %385 {offsets = [0, 0], sizes = [8, 128], strides = [1, 1]} : vector<8x256xf32> to vector<8x128xf32>
    %389 = vector.extract_strided_slice %387 {offsets = [0, 128], sizes = [8, 128], strides = [1, 1]} : vector<8x256xf32> to vector<8x128xf32>
    %390 = arith.addf %388, %389 : vector<8x128xf32>
    %c0_189 = arith.constant 0 : index
    %c0_190 = arith.constant 0 : index
    %391 = vector.load %arg5[%c0_189, %c0_190] : memref<1x128xf32, #tpu.memory_space<vmem>>, vector<1x128xf32>
    %392 = vector.broadcast %391 : vector<1x128xf32> to vector<8x128xf32>
    %393 = arith.addf %390, %392 : vector<8x128xf32>
    %394 = arith.index_cast %380 : i32 to index
    %c0_191 = arith.constant 0 : index
    %395 = vector.load %arg6[%394, %c0_191] : memref<64x128xf32, #tpu.memory_space<vmem>>, vector<8x128xf32>
    tpu.vector_store %arg6[%394, %c0_191], %393 {strides = array<i32>} : memref<64x128xf32, #tpu.memory_space<vmem>>, vector<8x128xf32>,
    %c4_i32_192 = arith.constant 4 : i32
    %c8_i32_193 = arith.constant 8 : i32
    %396 = arith.muli %c4_i32_192, %c8_i32_193 : i32
    %397 = tpu.assume_multiple %396, 8 : i32
    %c7_i32_194 = arith.constant 7 : i32
    %398 = arith.subi %c7_i32_194, %c4_i32_192 : i32
    %c8_i32_195 = arith.constant 8 : i32
    %399 = arith.muli %398, %c8_i32_195 : i32
    %400 = tpu.assume_multiple %399, 8 : i32
    %401 = arith.index_cast %397 : i32 to index
    %c0_196 = arith.constant 0 : index
    %402 = vector.load %arg11[%401, %c0_196] : memref<64x256xf32, #tpu.memory_space<vmem>>, vector<8x256xf32>
    %403 = arith.index_cast %400 : i32 to index
    %c0_197 = arith.constant 0 : index
    %404 = vector.load %arg11[%403, %c0_197] : memref<64x256xf32, #tpu.memory_space<vmem>>, vector<8x256xf32>
    %405 = vector.extract_strided_slice %402 {offsets = [0, 0], sizes = [8, 128], strides = [1, 1]} : vector<8x256xf32> to vector<8x128xf32>
    %406 = vector.extract_strided_slice %404 {offsets = [0, 128], sizes = [8, 128], strides = [1, 1]} : vector<8x256xf32> to vector<8x128xf32>
    %407 = arith.addf %405, %406 : vector<8x128xf32>
    %c0_198 = arith.constant 0 : index
    %c0_199 = arith.constant 0 : index
    %408 = vector.load %arg5[%c0_198, %c0_199] : memref<1x128xf32, #tpu.memory_space<vmem>>, vector<1x128xf32>
    %409 = vector.broadcast %408 : vector<1x128xf32> to vector<8x128xf32>
    %410 = arith.addf %407, %409 : vector<8x128xf32>
    %411 = arith.index_cast %397 : i32 to index
    %c0_200 = arith.constant 0 : index
    %412 = vector.load %arg6[%411, %c0_200] : memref<64x128xf32, #tpu.memory_space<vmem>>, vector<8x128xf32>
    tpu.vector_store %arg6[%411, %c0_200], %410 {strides = array<i32>} : memref<64x128xf32, #tpu.memory_space<vmem>>, vector<8x128xf32>,
    %c5_i32_201 = arith.constant 5 : i32
    %c8_i32_202 = arith.constant 8 : i32
    %413 = arith.muli %c5_i32_201, %c8_i32_202 : i32
    %414 = tpu.assume_multiple %413, 8 : i32
    %c7_i32_203 = arith.constant 7 : i32
    %415 = arith.subi %c7_i32_203, %c5_i32_201 : i32
    %c8_i32_204 = arith.constant 8 : i32
    %416 = arith.muli %415, %c8_i32_204 : i32
    %417 = tpu.assume_multiple %416, 8 : i32
    %418 = arith.index_cast %414 : i32 to index
    %c0_205 = arith.constant 0 : index
    %419 = vector.load %arg11[%418, %c0_205] : memref<64x256xf32, #tpu.memory_space<vmem>>, vector<8x256xf32>
    %420 = arith.index_cast %417 : i32 to index
    %c0_206 = arith.constant 0 : index
    %421 = vector.load %arg11[%420, %c0_206] : memref<64x256xf32, #tpu.memory_space<vmem>>, vector<8x256xf32>
    %422 = vector.extract_strided_slice %419 {offsets = [0, 0], sizes = [8, 128], strides = [1, 1]} : vector<8x256xf32> to vector<8x128xf32>
    %423 = vector.extract_strided_slice %421 {offsets = [0, 128], sizes = [8, 128], strides = [1, 1]} : vector<8x256xf32> to vector<8x128xf32>
    %424 = arith.addf %422, %423 : vector<8x128xf32>
    %c0_207 = arith.constant 0 : index
    %c0_208 = arith.constant 0 : index
    %425 = vector.load %arg5[%c0_207, %c0_208] : memref<1x128xf32, #tpu.memory_space<vmem>>, vector<1x128xf32>
    %426 = vector.broadcast %425 : vector<1x128xf32> to vector<8x128xf32>
    %427 = arith.addf %424, %426 : vector<8x128xf32>
    %428 = arith.index_cast %414 : i32 to index
    %c0_209 = arith.constant 0 : index
    %429 = vector.load %arg6[%428, %c0_209] : memref<64x128xf32, #tpu.memory_space<vmem>>, vector<8x128xf32>
    tpu.vector_store %arg6[%428, %c0_209], %427 {strides = array<i32>} : memref<64x128xf32, #tpu.memory_space<vmem>>, vector<8x128xf32>,
    %c6_i32_210 = arith.constant 6 : i32
    %c8_i32_211 = arith.constant 8 : i32
    %430 = arith.muli %c6_i32_210, %c8_i32_211 : i32
    %431 = tpu.assume_multiple %430, 8 : i32
    %c7_i32_212 = arith.constant 7 : i32
    %432 = arith.subi %c7_i32_212, %c6_i32_210 : i32
    %c8_i32_213 = arith.constant 8 : i32
    %433 = arith.muli %432, %c8_i32_213 : i32
    %434 = tpu.assume_multiple %433, 8 : i32
    %435 = arith.index_cast %431 : i32 to index
    %c0_214 = arith.constant 0 : index
    %436 = vector.load %arg11[%435, %c0_214] : memref<64x256xf32, #tpu.memory_space<vmem>>, vector<8x256xf32>
    %437 = arith.index_cast %434 : i32 to index
    %c0_215 = arith.constant 0 : index
    %438 = vector.load %arg11[%437, %c0_215] : memref<64x256xf32, #tpu.memory_space<vmem>>, vector<8x256xf32>
    %439 = vector.extract_strided_slice %436 {offsets = [0, 0], sizes = [8, 128], strides = [1, 1]} : vector<8x256xf32> to vector<8x128xf32>
    %440 = vector.extract_strided_slice %438 {offsets = [0, 128], sizes = [8, 128], strides = [1, 1]} : vector<8x256xf32> to vector<8x128xf32>
    %441 = arith.addf %439, %440 : vector<8x128xf32>
    %c0_216 = arith.constant 0 : index
    %c0_217 = arith.constant 0 : index
    %442 = vector.load %arg5[%c0_216, %c0_217] : memref<1x128xf32, #tpu.memory_space<vmem>>, vector<1x128xf32>
    %443 = vector.broadcast %442 : vector<1x128xf32> to vector<8x128xf32>
    %444 = arith.addf %441, %443 : vector<8x128xf32>
    %445 = arith.index_cast %431 : i32 to index
    %c0_218 = arith.constant 0 : index
    %446 = vector.load %arg6[%445, %c0_218] : memref<64x128xf32, #tpu.memory_space<vmem>>, vector<8x128xf32>
    tpu.vector_store %arg6[%445, %c0_218], %444 {strides = array<i32>} : memref<64x128xf32, #tpu.memory_space<vmem>>, vector<8x128xf32>,
    %c7_i32_219 = arith.constant 7 : i32
    %c8_i32_220 = arith.constant 8 : i32
    %447 = arith.muli %c7_i32_219, %c8_i32_220 : i32
    %448 = tpu.assume_multiple %447, 8 : i32
    %c7_i32_221 = arith.constant 7 : i32
    %449 = arith.subi %c7_i32_221, %c7_i32_219 : i32
    %c8_i32_222 = arith.constant 8 : i32
    %450 = arith.muli %449, %c8_i32_222 : i32
    %451 = tpu.assume_multiple %450, 8 : i32
    %452 = arith.index_cast %448 : i32 to index
    %c0_223 = arith.constant 0 : index
    %453 = vector.load %arg11[%452, %c0_223] : memref<64x256xf32, #tpu.memory_space<vmem>>, vector<8x256xf32>
    %454 = arith.index_cast %451 : i32 to index
    %c0_224 = arith.constant 0 : index
    %455 = vector.load %arg11[%454, %c0_224] : memref<64x256xf32, #tpu.memory_space<vmem>>, vector<8x256xf32>
    %456 = vector.extract_strided_slice %453 {offsets = [0, 0], sizes = [8, 128], strides = [1, 1]} : vector<8x256xf32> to vector<8x128xf32>
    %457 = vector.extract_strided_slice %455 {offsets = [0, 128], sizes = [8, 128], strides = [1, 1]} : vector<8x256xf32> to vector<8x128xf32>
    %458 = arith.addf %456, %457 : vector<8x128xf32>
    %c0_225 = arith.constant 0 : index
    %c0_226 = arith.constant 0 : index
    %459 = vector.load %arg5[%c0_225, %c0_226] : memref<1x128xf32, #tpu.memory_space<vmem>>, vector<1x128xf32>
    %460 = vector.broadcast %459 : vector<1x128xf32> to vector<8x128xf32>
    %461 = arith.addf %458, %460 : vector<8x128xf32>
    %462 = arith.index_cast %448 : i32 to index
    %c0_227 = arith.constant 0 : index
    %463 = vector.load %arg6[%462, %c0_227] : memref<64x128xf32, #tpu.memory_space<vmem>>, vector<8x128xf32>
    tpu.vector_store %arg6[%462, %c0_227], %461 {strides = array<i32>} : memref<64x128xf32, #tpu.memory_space<vmem>>, vector<8x128xf32>,
    %c8_i32_228 = arith.constant 8 : i32
    return
  }
}

</mosaic_0001>

<llo_original>
// kernel: bidirectional_lstm.1
$region0: #{bidirectional_lstm.1}
  #allocation0 [shape = 'u32[]', space=smem, size = 0x4, offset = 0x4, fixed_abs, tag = 'smem constant byte address 0x4 - core index']
  #allocation1 [shape = 'u32[72,128]{1,0:T(1,128)}', space=vmem, size = 0x9000, scoped, tag = 'internal scratch']
  #allocation2 [shape = 'f32[64,512]{1,0:T(8,128)}', space=vmem, size = 0x20000, scoped, tag = 'scratch operand']
  #allocation3 [shape = 'f32[64,128]{1,0:T(8,128)}', space=vmem, size = 0x8000, scoped, tag = 'scratch operand']
  #allocation4 [shape = 'bf16[8,128]{1,0:T(8,128)(2,1)}', space=vmem, size = 0x800, scoped, tag = 'scratch operand']
  #allocation5 [shape = 'f32[8,128]{1,0:T(8,128)}', space=vmem, size = 0x1000, scoped, tag = 'scratch operand']
  #allocation6 [shape = 'f32[64,256]{1,0:T(8,128)}', space=vmem, size = 0x10000, scoped, tag = 'scratch operand']
  %s0 = inlined_call_operand.vmem [shape: bf16[64,128], index: 0, kind: input, shape index: {}]
  %s1 = inlined_call_operand.vmem [shape: bf16[128,512], index: 1, kind: input, shape index: {}]
  %s2 = inlined_call_operand.vmem [shape: f32[1,512], index: 2, kind: input, shape index: {}]
  %s3 = inlined_call_operand.hbm [shape: bf16[128,512], index: 3, kind: input, shape index: {}]
  %s4 = inlined_call_operand.hbm [shape: bf16[128,256], index: 4, kind: input, shape index: {}]
  %s5 = inlined_call_operand.vmem [shape: f32[1,128], index: 5, kind: input, shape index: {}]
  %s6 = inlined_call_operand.vmem [shape: f32[64,128], index: 6, kind: output, shape index: {}]
  %s7 = sld [smem:[#allocation0]]
  $region42: #{bidirectional_lstm.1} parent=0
    _
  %s9 = ssub.s32 1, %s7
  %s10 = scalar_select 0, %s9, %s7
  $region1: #{bidirectional_lstm.1} parent=0
    #allocation7 [shape = 'u8[131072]{0}', space=vmem, size = 0x20000, scoped, tag = 'input window, operand 3, single buffered']
    #allocation8 [shape = 's32[1]{0}', space=sflag, size = 0x4, scoped, tag = 'scoped memory for bidirectional_lstm.1']
    #allocation9 [shape = 'u8[65536]{0}', space=vmem, size = 0x10000, scoped, tag = 'input window, operand 4, single buffered']
    #allocation10 [shape = 's32[1]{0}', space=sflag, size = 0x4, scoped, tag = 'scoped memory for bidirectional_lstm.1']
    %11 = vsyncpa [#allocation8], 0
    %12 = vsyncpa [#allocation10], 0
    // Predicated region
    $region2: #{bidirectional_lstm.1} parent=1 // pred_check
      _
    $region3: #{bidirectional_lstm.1} parent=1 // pred_check_branch
      %14 = sbr.rel (0) target = $region5
    $region4: #{bidirectional_lstm.1} parent=1 // pred_region
      _
    $region5: #{bidirectional_lstm.1} parent=1 // pred_fallthru
      _
    // Predicated region
    $region6: #{bidirectional_lstm.1} parent=1 // pred_check
      _
    $region7: #{bidirectional_lstm.1} parent=1 // pred_check_branch
      %16 = sbr.rel (0) target = $region9
    $region8: #{bidirectional_lstm.1} parent=1 // pred_region
      _
    $region9: #{bidirectional_lstm.1} parent=1 // pred_fallthru
      _
    // Predicated region
    $region10: #{bidirectional_lstm.1} parent=1 // pred_check
      _
    $region11: #{bidirectional_lstm.1} parent=1 // pred_check_branch
      %18 = sbr.rel (0) target = $region13
    $region12: #{bidirectional_lstm.1} parent=1 // pred_region
      _
    $region13: #{bidirectional_lstm.1} parent=1 // pred_fallthru
      _
    // Predicated region
    $region14: #{bidirectional_lstm.1} parent=1 // pred_check
      _
    $region15: #{bidirectional_lstm.1} parent=1 // pred_check_branch
      %20 = sbr.rel (0) target = $region17
    $region16: #{bidirectional_lstm.1} parent=1 // pred_region
      %22 = vsyncadd [#allocation8], 0
      %s23 = sshll.u32 %s3, 4
      %s24 = int_to_ptr.hbm [resolvable:$true] %s23
      %s25 = sshll.u32 [#allocation7], 4
      %s26 = int_to_ptr.vmem [resolvable:$true] %s25
      %31 = dma.hbm_to_vmem [thread:$0]  %s24, 4096, %s26, [#allocation8], 256, 256, 16
    $region17: #{bidirectional_lstm.1} parent=1 // pred_fallthru
      _
    // Predicated region
    $region18: #{bidirectional_lstm.1} parent=1 // pred_check
      _
    $region19: #{bidirectional_lstm.1} parent=1 // pred_check_branch
      %33 = sbr.rel (0) target = $region21
    $region20: #{bidirectional_lstm.1} parent=1 // pred_region
      %35 = vsyncadd [#allocation10], 0
      %s36 = sshll.u32 %s4, 4
      %s37 = int_to_ptr.hbm [resolvable:$true] %s36
      %s38 = sshll.u32 [#allocation9], 4
      %s39 = int_to_ptr.vmem [resolvable:$true] %s38
      %44 = dma.hbm_to_vmem [thread:$0]  %s37, 2048, %s39, [#allocation10], 128, 128, 8
    $region21: #{bidirectional_lstm.1} parent=1 // pred_fallthru
      _
    // Predicated region
    $region22: #{bidirectional_lstm.1} parent=1 // pred_check
      _
    $region23: #{bidirectional_lstm.1} parent=1 // pred_check_branch
      %46 = sbr.rel (0) target = $region25
    $region24: #{bidirectional_lstm.1} parent=1 // pred_region
      _
    $region25: #{bidirectional_lstm.1} parent=1 // pred_fallthru
      _
    // Predicated region
    $region26: #{bidirectional_lstm.1} parent=1 // pred_check
      _
    $region27: #{bidirectional_lstm.1} parent=1 // pred_check_branch
      %48 = sbr.rel (0) target = $region29
    $region28: #{bidirectional_lstm.1} parent=1 // pred_region
      %50 = dma.done [#allocation8], 4096
    $region29: #{bidirectional_lstm.1} parent=1 // pred_fallthru
      _
    // Predicated region
    $region30: #{bidirectional_lstm.1} parent=1 // pred_check
      _
    $region31: #{bidirectional_lstm.1} parent=1 // pred_check_branch
      %52 = sbr.rel (0) target = $region33
    $region32: #{bidirectional_lstm.1} parent=1 // pred_region
      %54 = dma.done [#allocation10], 2048
    $region33: #{bidirectional_lstm.1} parent=1 // pred_fallthru
      _
    %v56 = vld [vmem:[%s0] sm:$0xf]
    %v57 = vld [vmem:[%s0 + $0x4] sm:$0xf]
    %v58 = vld [vmem:[%s0 + $0x8] sm:$0xf]
    %v59 = vld [vmem:[%s0 + $0xc] sm:$0xf]
    %v60 = vld [vmem:[%s0 + $0x10] sm:$0xf]
    %v61 = vld [vmem:[%s0 + $0x14] sm:$0xf]
    %v62 = vld [vmem:[%s0 + $0x18] sm:$0xf]
    %v63 = vld [vmem:[%s0 + $0x1c] sm:$0xf]
    %v64 = vld [vmem:[%s1] sm:$0xff]
    %v65 = vld [vmem:[%s1 + $0x8] sm:$0xff]
    %v66 = vld [vmem:[%s1 + $0x10] sm:$0xff]
    %v67 = vld [vmem:[%s1 + $0x18] sm:$0xff]
    %v68 = vld [vmem:[%s1 + $0x20] sm:$0xff]
    %v69 = vld [vmem:[%s1 + $0x28] sm:$0xff]
    %v70 = vld [vmem:[%s1 + $0x30] sm:$0xff]
    %v71 = vld [vmem:[%s1 + $0x38] sm:$0xff]
    %v72 = vld [vmem:[%s1 + $0x40] sm:$0xff]
    %v73 = vld [vmem:[%s1 + $0x48] sm:$0xff]
    %v74 = vld [vmem:[%s1 + $0x50] sm:$0xff]
    %v75 = vld [vmem:[%s1 + $0x58] sm:$0xff]
    %v76 = vld [vmem:[%s1 + $0x60] sm:$0xff]
    %v77 = vld [vmem:[%s1 + $0x68] sm:$0xff]
    %v78 = vld [vmem:[%s1 + $0x70] sm:$0xff]
    %v79 = vld [vmem:[%s1 + $0x78] sm:$0xff]
    %v80 = vld [vmem:[%s1 + $0x80] sm:$0xff]
    %v81 = vld [vmem:[%s1 + $0x88] sm:$0xff]
    %v82 = vld [vmem:[%s1 + $0x90] sm:$0xff]
    %v83 = vld [vmem:[%s1 + $0x98] sm:$0xff]
    %v84 = vld [vmem:[%s1 + $0xa0] sm:$0xff]
    %v85 = vld [vmem:[%s1 + $0xa8] sm:$0xff]
    %v86 = vld [vmem:[%s1 + $0xb0] sm:$0xff]
    %v87 = vld [vmem:[%s1 + $0xb8] sm:$0xff]
    %v88 = vld [vmem:[%s1 + $0xc0] sm:$0xff]
    %v89 = vld [vmem:[%s1 + $0xc8] sm:$0xff]
    %v90 = vld [vmem:[%s1 + $0xd0] sm:$0xff]
    %v91 = vld [vmem:[%s1 + $0xd8] sm:$0xff]
    %v92 = vld [vmem:[%s1 + $0xe0] sm:$0xff]
    %v93 = vld [vmem:[%s1 + $0xe8] sm:$0xff]
    %v94 = vld [vmem:[%s1 + $0xf0] sm:$0xff]
    %v95 = vld [vmem:[%s1 + $0xf8] sm:$0xff]
    %v96 = vld [vmem:[%s2] sm:$0xf]
    %v98 = vperm.slane %v96, 0
    %v99 = vperm.slane %v96, 1
    %v100 = vperm.slane %v96, 2
    %v101 = vperm.slane %v96, 3
    %v114 = vunpack.c.l.b16 %v56
    %v115 = vunpack.c.l.b16 %v57
    %v116 = vunpack.c.l.b16 %v58
    %v117 = vunpack.c.l.b16 %v59
    %v118 = vunpack.c.l.b16 %v60
    %v119 = vunpack.c.l.b16 %v61
    %v120 = vunpack.c.l.b16 %v62
    %v121 = vunpack.c.l.b16 %v63
    %v122 = vpack.c.b16 %v115, %v114
    %v123 = vpack.c.b16 %v117, %v116
    %v124 = vpack.c.b16 %v119, %v118
    %v125 = vpack.c.b16 %v121, %v120
    %v162 = vunpack.c.l.b16 %v64
    %v163 = vunpack.c.h.b16 %v64
    %v164 = vunpack.c.l.b16 %v65
    %v165 = vunpack.c.h.b16 %v65
    %v166 = vunpack.c.l.b16 %v66
    %v167 = vunpack.c.h.b16 %v66
    %v168 = vunpack.c.l.b16 %v67
    %v169 = vunpack.c.h.b16 %v67
    %v170 = vunpack.c.l.b16 %v68
    %v171 = vunpack.c.h.b16 %v68
    %v172 = vunpack.c.l.b16 %v69
    %v173 = vunpack.c.h.b16 %v69
    %v174 = vunpack.c.l.b16 %v70
    %v175 = vunpack.c.h.b16 %v70
    %v176 = vunpack.c.l.b16 %v71
    %v177 = vunpack.c.h.b16 %v71
    %v178 = vunpack.c.l.b16 %v72
    %v179 = vunpack.c.h.b16 %v72
    %v180 = vunpack.c.l.b16 %v73
    %v181 = vunpack.c.h.b16 %v73
    %v182 = vunpack.c.l.b16 %v74
    %v183 = vunpack.c.h.b16 %v74
    %v184 = vunpack.c.l.b16 %v75
    %v185 = vunpack.c.h.b16 %v75
    %v186 = vunpack.c.l.b16 %v76
    %v187 = vunpack.c.h.b16 %v76
    %v188 = vunpack.c.l.b16 %v77
    %v189 = vunpack.c.h.b16 %v77
    %v190 = vunpack.c.l.b16 %v78
    %v191 = vunpack.c.h.b16 %v78
    %v192 = vunpack.c.l.b16 %v79
    %v193 = vunpack.c.h.b16 %v79
    %v194 = vunpack.c.l.b16 %v80
    %v195 = vunpack.c.h.b16 %v80
    %v196 = vunpack.c.l.b16 %v81
    %v197 = vunpack.c.h.b16 %v81
    %v198 = vunpack.c.l.b16 %v82
    %v199 = vunpack.c.h.b16 %v82
    %v200 = vunpack.c.l.b16 %v83
    %v201 = vunpack.c.h.b16 %v83
    %v202 = vunpack.c.l.b16 %v84
    %v203 = vunpack.c.h.b16 %v84
    %v204 = vunpack.c.l.b16 %v85
    %v205 = vunpack.c.h.b16 %v85
    %v206 = vunpack.c.l.b16 %v86
    %v207 = vunpack.c.h.b16 %v86
    %v208 = vunpack.c.l.b16 %v87
    %v209 = vunpack.c.h.b16 %v87
    %v210 = vunpack.c.l.b16 %v88
    %v211 = vunpack.c.h.b16 %v88
    %v212 = vunpack.c.l.b16 %v89
    %v213 = vunpack.c.h.b16 %v89
    %v214 = vunpack.c.l.b16 %v90
    %v215 = vunpack.c.h.b16 %v90
    %v216 = vunpack.c.l.b16 %v91
    %v217 = vunpack.c.h.b16 %v91
    %v218 = vunpack.c.l.b16 %v92
    %v219 = vunpack.c.h.b16 %v92
    %v220 = vunpack.c.l.b16 %v93
    %v221 = vunpack.c.h.b16 %v93
    %v222 = vunpack.c.l.b16 %v94
    %v223 = vunpack.c.h.b16 %v94
    %v224 = vunpack.c.l.b16 %v95
    %v225 = vunpack.c.h.b16 %v95
    %v226 = vpack.c.b16 %v166, %v162
    %v227 = vpack.c.b16 %v167, %v163
    %v228 = vpack.c.b16 %v168, %v164
    %v229 = vpack.c.b16 %v169, %v165
    %v230 = vpack.c.b16 %v174, %v170
    %v231 = vpack.c.b16 %v175, %v171
    %v232 = vpack.c.b16 %v176, %v172
    %v233 = vpack.c.b16 %v177, %v173
    %v234 = vpack.c.b16 %v182, %v178
    %v235 = vpack.c.b16 %v183, %v179
    %v236 = vpack.c.b16 %v184, %v180
    %v237 = vpack.c.b16 %v185, %v181
    %v238 = vpack.c.b16 %v190, %v186
    %v239 = vpack.c.b16 %v191, %v187
    %v240 = vpack.c.b16 %v192, %v188
    %v241 = vpack.c.b16 %v193, %v189
    %v242 = vpack.c.b16 %v198, %v194
    %v243 = vpack.c.b16 %v199, %v195
    %v244 = vpack.c.b16 %v200, %v196
    %v245 = vpack.c.b16 %v201, %v197
    %v246 = vpack.c.b16 %v206, %v202
    %v247 = vpack.c.b16 %v207, %v203
    %v248 = vpack.c.b16 %v208, %v204
    %v249 = vpack.c.b16 %v209, %v205
    %v250 = vpack.c.b16 %v214, %v210
    %v251 = vpack.c.b16 %v215, %v211
    %v252 = vpack.c.b16 %v216, %v212
    %v253 = vpack.c.b16 %v217, %v213
    %v254 = vpack.c.b16 %v222, %v218
    %v255 = vpack.c.b16 %v223, %v219
    %v256 = vpack.c.b16 %v224, %v220
    %v257 = vpack.c.b16 %v225, %v221
    %290 = vmatpush.bf16.msra.mxu0 %v254
    %291 = vmatpush.bf16.msra.mxu0 %v250
    %292 = vmatpush.bf16.msra.mxu0 %v246
    %293 = vmatpush.bf16.msra.mxu0 %v242
    %294 = vmatpush.bf16.msra.mxu0 %v238
    %295 = vmatpush.bf16.msra.mxu0 %v234
    %296 = vmatpush.bf16.msra.mxu0 %v230
    %297 = vmatpush.bf16.msra.mxu0 %v226
    %298 = vmatmul.bf16.gmra.mxu0 %v122
    %v299 = vpop.f32.mrf.mxu0
    %v300 = vadd.f32 %v98, %v299
    %v301 = vpop.f32.mrf.mxu0
    %v302 = vadd.f32 %v98, %v301
    %303 = vmatmul.bf16.gmra.mxu0 %v123
    %v304 = vpop.f32.mrf.mxu0
    %v305 = vadd.f32 %v98, %v304
    %v306 = vpop.f32.mrf.mxu0
    %v307 = vadd.f32 %v98, %v306
    %308 = vmatmul.bf16.gmra.mxu0 %v124
    %v309 = vpop.f32.mrf.mxu0
    %v310 = vadd.f32 %v98, %v309
    %v311 = vpop.f32.mrf.mxu0
    %v312 = vadd.f32 %v98, %v311
    %313 = vmatmul.bf16.gmra.mxu0 %v125
    %v314 = vpop.f32.mrf.mxu0
    %v315 = vadd.f32 %v98, %v314
    %v316 = vpop.f32.mrf.mxu0
    %v317 = vadd.f32 %v98, %v316
    %318 = vdwg.mxu0
    %319 = vmatpush.bf16.msra.mxu0 %v255
    %320 = vmatpush.bf16.msra.mxu0 %v251
    %321 = vmatpush.bf16.msra.mxu0 %v247
    %322 = vmatpush.bf16.msra.mxu0 %v243
    %323 = vmatpush.bf16.msra.mxu0 %v239
    %324 = vmatpush.bf16.msra.mxu0 %v235
    %325 = vmatpush.bf16.msra.mxu0 %v231
    %326 = vmatpush.bf16.msra.mxu0 %v227
    %327 = vmatmul.bf16.gmra.mxu0 %v122
    %v328 = vpop.f32.mrf.mxu0
    %v329 = vadd.f32 %v99, %v328
    %v330 = vpop.f32.mrf.mxu0
    %v331 = vadd.f32 %v99, %v330
    %332 = vmatmul.bf16.gmra.mxu0 %v123
    %v333 = vpop.f32.mrf.mxu0
    %v334 = vadd.f32 %v99, %v333
    %v335 = vpop.f32.mrf.mxu0
    %v336 = vadd.f32 %v99, %v335
    %337 = vmatmul.bf16.gmra.mxu0 %v124
    %v338 = vpop.f32.mrf.mxu0
    %v339 = vadd.f32 %v99, %v338
    %v340 = vpop.f32.mrf.mxu0
    %v341 = vadd.f32 %v99, %v340
    %342 = vmatmul.bf16.gmra.mxu0 %v125
    %v343 = vpop.f32.mrf.mxu0
    %v344 = vadd.f32 %v99, %v343
    %v345 = vpop.f32.mrf.mxu0
    %v346 = vadd.f32 %v99, %v345
    %347 = vdwg.mxu0
    %348 = vmatpush.bf16.msra.mxu0 %v256
    %349 = vmatpush.bf16.msra.mxu0 %v252
    %350 = vmatpush.bf16.msra.mxu0 %v248
    %351 = vmatpush.bf16.msra.mxu0 %v244
    %352 = vmatpush.bf16.msra.mxu0 %v240
    %353 = vmatpush.bf16.msra.mxu0 %v236
    %354 = vmatpush.bf16.msra.mxu0 %v232
    %355 = vmatpush.bf16.msra.mxu0 %v228
    %356 = vmatmul.bf16.gmra.mxu0 %v122
    %v357 = vpop.f32.mrf.mxu0
    %v358 = vadd.f32 %v100, %v357
    %v359 = vpop.f32.mrf.mxu0
    %v360 = vadd.f32 %v100, %v359
    %361 = vmatmul.bf16.gmra.mxu0 %v123
    %v362 = vpop.f32.mrf.mxu0
    %v363 = vadd.f32 %v100, %v362
    %v364 = vpop.f32.mrf.mxu0
    %v365 = vadd.f32 %v100, %v364
    %366 = vmatmul.bf16.gmra.mxu0 %v124
    %v367 = vpop.f32.mrf.mxu0
    %v368 = vadd.f32 %v100, %v367
    %v369 = vpop.f32.mrf.mxu0
    %v370 = vadd.f32 %v100, %v369
    %371 = vmatmul.bf16.gmra.mxu0 %v125
    %v372 = vpop.f32.mrf.mxu0
    %v373 = vadd.f32 %v100, %v372
    %v374 = vpop.f32.mrf.mxu0
    %v375 = vadd.f32 %v100, %v374
    %376 = vdwg.mxu0
    %377 = vmatpush.bf16.msra.mxu0 %v257
    %378 = vmatpush.bf16.msra.mxu0 %v253
    %379 = vmatpush.bf16.msra.mxu0 %v249
    %380 = vmatpush.bf16.msra.mxu0 %v245
    %381 = vmatpush.bf16.msra.mxu0 %v241
    %382 = vmatpush.bf16.msra.mxu0 %v237
    %383 = vmatpush.bf16.msra.mxu0 %v233
    %384 = vmatpush.bf16.msra.mxu0 %v229
    %385 = vmatmul.bf16.gmra.mxu0 %v122
    %v386 = vpop.f32.mrf.mxu0
    %v387 = vadd.f32 %v101, %v386
    %v388 = vpop.f32.mrf.mxu0
    %v389 = vadd.f32 %v101, %v388
    %390 = vmatmul.bf16.gmra.mxu0 %v123
    %v391 = vpop.f32.mrf.mxu0
    %v392 = vadd.f32 %v101, %v391
    %v393 = vpop.f32.mrf.mxu0
    %v394 = vadd.f32 %v101, %v393
    %395 = vmatmul.bf16.gmra.mxu0 %v124
    %v396 = vpop.f32.mrf.mxu0
    %v397 = vadd.f32 %v101, %v396
    %v398 = vpop.f32.mrf.mxu0
    %v399 = vadd.f32 %v101, %v398
    %400 = vmatmul.bf16.gmra.mxu0 %v125
    %v401 = vpop.f32.mrf.mxu0
    %v402 = vadd.f32 %v101, %v401
    %v403 = vpop.f32.mrf.mxu0
    %v404 = vadd.f32 %v101, %v403
    %405 = vdwg.mxu0
    %406 = vst [vmem:[#allocation2] sm:$0xff] %v300
    %407 = vst [vmem:[#allocation2 + $0x8] sm:$0xff] %v329
    %408 = vst [vmem:[#allocation2 + $0x10] sm:$0xff] %v358
    %409 = vst [vmem:[#allocation2 + $0x18] sm:$0xff] %v387
    %410 = vst [vmem:[#allocation2 + $0x20] sm:$0xff] %v302
    %411 = vst [vmem:[#allocation2 + $0x28] sm:$0xff] %v331
    %412 = vst [vmem:[#allocation2 + $0x30] sm:$0xff] %v360
    %413 = vst [vmem:[#allocation2 + $0x38] sm:$0xff] %v389
    %414 = vst [vmem:[#allocation2 + $0x40] sm:$0xff] %v305
    %415 = vst [vmem:[#allocation2 + $0x48] sm:$0xff] %v334
    %416 = vst [vmem:[#allocation2 + $0x50] sm:$0xff] %v363
    %417 = vst [vmem:[#allocation2 + $0x58] sm:$0xff] %v392
    %418 = vst [vmem:[#allocation2 + $0x60] sm:$0xff] %v307
    %419 = vst [vmem:[#allocation2 + $0x68] sm:$0xff] %v336
    %420 = vst [vmem:[#allocation2 + $0x70] sm:$0xff] %v365
    %421 = vst [vmem:[#allocation2 + $0x78] sm:$0xff] %v394
    %422 = vst [vmem:[#allocation2 + $0x80] sm:$0xff] %v310
    %423 = vst [vmem:[#allocation2 + $0x88] sm:$0xff] %v339
    %424 = vst [vmem:[#allocation2 + $0x90] sm:$0xff] %v368
    %425 = vst [vmem:[#allocation2 + $0x98] sm:$0xff] %v397
    %426 = vst [vmem:[#allocation2 + $0xa0] sm:$0xff] %v312
    %427 = vst [vmem:[#allocation2 + $0xa8] sm:$0xff] %v341
    %428 = vst [vmem:[#allocation2 + $0xb0] sm:$0xff] %v370
    %429 = vst [vmem:[#allocation2 + $0xb8] sm:$0xff] %v399
    %430 = vst [vmem:[#allocation2 + $0xc0] sm:$0xff] %v315
    %431 = vst [vmem:[#allocation2 + $0xc8] sm:$0xff] %v344
    %432 = vst [vmem:[#allocation2 + $0xd0] sm:$0xff] %v373
    %433 = vst [vmem:[#allocation2 + $0xd8] sm:$0xff] %v402
    %434 = vst [vmem:[#allocation2 + $0xe0] sm:$0xff] %v317
    %435 = vst [vmem:[#allocation2 + $0xe8] sm:$0xff] %v346
    %436 = vst [vmem:[#allocation2 + $0xf0] sm:$0xff] %v375
    %437 = vst [vmem:[#allocation2 + $0xf8] sm:$0xff] %v404
    %438 = vst [vmem:[#allocation4] sm:$0xf] 0
    %439 = vst [vmem:[#allocation5] sm:$0xff] 0.0
    %s440 = smul.u32 0, 4
    %s441 = smul.addr %s440, 8
    %s442 = scalar_lea.vmem [#allocation2], %s441
    %v443 = vld [vmem:[%s442] sm:$0xff]
    %v444 = vld [vmem:[%s442 + $0x8] sm:$0xff]
    %v445 = vld [vmem:[%s442 + $0x10] sm:$0xff]
    %v446 = vld [vmem:[%s442 + $0x18] sm:$0xff]
    %v447 = vld [vmem:[#allocation4] sm:$0xf]
    %v448 = vld [vmem:[#allocation7] sm:$0xff]
    %v449 = vld [vmem:[#allocation7 + $0x8] sm:$0xff]
    %v450 = vld [vmem:[#allocation7 + $0x10] sm:$0xff]
    %v451 = vld [vmem:[#allocation7 + $0x18] sm:$0xff]
    %v452 = vld [vmem:[#allocation7 + $0x20] sm:$0xff]
    %v453 = vld [vmem:[#allocation7 + $0x28] sm:$0xff]
    %v454 = vld [vmem:[#allocation7 + $0x30] sm:$0xff]
    %v455 = vld [vmem:[#allocation7 + $0x38] sm:$0xff]
    %v456 = vld [vmem:[#allocation7 + $0x40] sm:$0xff]
    %v457 = vld [vmem:[#allocation7 + $0x48] sm:$0xff]
    %v458 = vld [vmem:[#allocation7 + $0x50] sm:$0xff]
    %v459 = vld [vmem:[#allocation7 + $0x58] sm:$0xff]
    %v460 = vld [vmem:[#allocation7 + $0x60] sm:$0xff]
    %v461 = vld [vmem:[#allocation7 + $0x68] sm:$0xff]
    %v462 = vld [vmem:[#allocation7 + $0x70] sm:$0xff]
    %v463 = vld [vmem:[#allocation7 + $0x78] sm:$0xff]
    %v464 = vld [vmem:[#allocation7 + $0x80] sm:$0xff]
    %v465 = vld [vmem:[#allocation7 + $0x88] sm:$0xff]
    %v466 = vld [vmem:[#allocation7 + $0x90] sm:$0xff]
    %v467 = vld [vmem:[#allocation7 + $0x98] sm:$0xff]
    %v468 = vld [vmem:[#allocation7 + $0xa0] sm:$0xff]
    %v469 = vld [vmem:[#allocation7 + $0xa8] sm:$0xff]
    %v470 = vld [vmem:[#allocation7 + $0xb0] sm:$0xff]
    %v471 = vld [vmem:[#allocation7 + $0xb8] sm:$0xff]
    %v472 = vld [vmem:[#allocation7 + $0xc0] sm:$0xff]
    %v473 = vld [vmem:[#allocation7 + $0xc8] sm:$0xff]
    %v474 = vld [vmem:[#allocation7 + $0xd0] sm:$0xff]
    %v475 = vld [vmem:[#allocation7 + $0xd8] sm:$0xff]
    %v476 = vld [vmem:[#allocation7 + $0xe0] sm:$0xff]
    %v477 = vld [vmem:[#allocation7 + $0xe8] sm:$0xff]
    %v478 = vld [vmem:[#allocation7 + $0xf0] sm:$0xff]
    %v479 = vld [vmem:[#allocation7 + $0xf8] sm:$0xff]
    %v512 = vunpack.c.l.b16 %v448
    %v513 = vunpack.c.h.b16 %v448
    %v514 = vunpack.c.l.b16 %v449
    %v515 = vunpack.c.h.b16 %v449
    %v516 = vunpack.c.l.b16 %v450
    %v517 = vunpack.c.h.b16 %v450
    %v518 = vunpack.c.l.b16 %v451
    %v519 = vunpack.c.h.b16 %v451
    %v520 = vunpack.c.l.b16 %v452
    %v521 = vunpack.c.h.b16 %v452
    %v522 = vunpack.c.l.b16 %v453
    %v523 = vunpack.c.h.b16 %v453
    %v524 = vunpack.c.l.b16 %v454
    %v525 = vunpack.c.h.b16 %v454
    %v526 = vunpack.c.l.b16 %v455
    %v527 = vunpack.c.h.b16 %v455
    %v528 = vunpack.c.l.b16 %v456
    %v529 = vunpack.c.h.b16 %v456
    %v530 = vunpack.c.l.b16 %v457
    %v531 = vunpack.c.h.b16 %v457
    %v532 = vunpack.c.l.b16 %v458
    %v533 = vunpack.c.h.b16 %v458
    %v534 = vunpack.c.l.b16 %v459
    %v535 = vunpack.c.h.b16 %v459
    %v536 = vunpack.c.l.b16 %v460
    %v537 = vunpack.c.h.b16 %v460
    %v538 = vunpack.c.l.b16 %v461
    %v539 = vunpack.c.h.b16 %v461
    %v540 = vunpack.c.l.b16 %v462
    %v541 = vunpack.c.h.b16 %v462
    %v542 = vunpack.c.l.b16 %v463
    %v543 = vunpack.c.h.b16 %v463
    %v544 = vunpack.c.l.b16 %v464
    %v545 = vunpack.c.h.b16 %v464
    %v546 = vunpack.c.l.b16 %v465
    %v547 = vunpack.c.h.b16 %v465
    %v548 = vunpack.c.l.b16 %v466
    %v549 = vunpack.c.h.b16 %v466
    %v550 = vunpack.c.l.b16 %v467
    %v551 = vunpack.c.h.b16 %v467
    %v552 = vunpack.c.l.b16 %v468
    %v553 = vunpack.c.h.b16 %v468
    %v554 = vunpack.c.l.b16 %v469
    %v555 = vunpack.c.h.b16 %v469
    %v556 = vunpack.c.l.b16 %v470
    %v557 = vunpack.c.h.b16 %v470
    %v558 = vunpack.c.l.b16 %v471
    %v559 = vunpack.c.h.b16 %v471
    %v560 = vunpack.c.l.b16 %v472
    %v561 = vunpack.c.h.b16 %v472
    %v562 = vunpack.c.l.b16 %v473
    %v563 = vunpack.c.h.b16 %v473
    %v564 = vunpack.c.l.b16 %v474
    %v565 = vunpack.c.h.b16 %v474
    %v566 = vunpack.c.l.b16 %v475
    %v567 = vunpack.c.h.b16 %v475
    %v568 = vunpack.c.l.b16 %v476
    %v569 = vunpack.c.h.b16 %v476
    %v570 = vunpack.c.l.b16 %v477
    %v571 = vunpack.c.h.b16 %v477
    %v572 = vunpack.c.l.b16 %v478
    %v573 = vunpack.c.h.b16 %v478
    %v574 = vunpack.c.l.b16 %v479
    %v575 = vunpack.c.h.b16 %v479
    %v576 = vpack.c.b16 %v516, %v512
    %v577 = vpack.c.b16 %v517, %v513
    %v578 = vpack.c.b16 %v518, %v514
    %v579 = vpack.c.b16 %v519, %v515
    %v580 = vpack.c.b16 %v524, %v520
    %v581 = vpack.c.b16 %v525, %v521
    %v582 = vpack.c.b16 %v526, %v522
    %v583 = vpack.c.b16 %v527, %v523
    %v584 = vpack.c.b16 %v532, %v528
    %v585 = vpack.c.b16 %v533, %v529
    %v586 = vpack.c.b16 %v534, %v530
    %v587 = vpack.c.b16 %v535, %v531
    %v588 = vpack.c.b16 %v540, %v536
    %v589 = vpack.c.b16 %v541, %v537
    %v590 = vpack.c.b16 %v542, %v538
    %v591 = vpack.c.b16 %v543, %v539
    %v592 = vpack.c.b16 %v548, %v544
    %v593 = vpack.c.b16 %v549, %v545
    %v594 = vpack.c.b16 %v550, %v546
    %v595 = vpack.c.b16 %v551, %v547
    %v596 = vpack.c.b16 %v556, %v552
    %v597 = vpack.c.b16 %v557, %v553
    %v598 = vpack.c.b16 %v558, %v554
    %v599 = vpack.c.b16 %v559, %v555
    %v600 = vpack.c.b16 %v564, %v560
    %v601 = vpack.c.b16 %v565, %v561
    %v602 = vpack.c.b16 %v566, %v562
    %v603 = vpack.c.b16 %v567, %v563
    %v604 = vpack.c.b16 %v572, %v568
    %v605 = vpack.c.b16 %v573, %v569
    %v606 = vpack.c.b16 %v574, %v570
    %v607 = vpack.c.b16 %v575, %v571
    %640 = vmatpush.bf16.msra.mxu0 %v604
    %641 = vmatpush.bf16.msra.mxu0 %v600
    %642 = vmatpush.bf16.msra.mxu0 %v596
    %643 = vmatpush.bf16.msra.mxu0 %v592
    %644 = vmatpush.bf16.msra.mxu0 %v588
    %645 = vmatpush.bf16.msra.mxu0 %v584
    %646 = vmatpush.bf16.msra.mxu0 %v580
    %647 = vmatpush.bf16.msra.mxu0 %v576
    %648 = vmatmul.bf16.gmra.mxu0 %v447
    %v649 = vpop.f32.mrf.mxu0
    %v650 = vadd.f32 0.0, %v649
    %v651 = vpop.f32.mrf.mxu0
    %652 = vdwg.mxu0
    %653 = vmatpush.bf16.msra.mxu0 %v605
    %654 = vmatpush.bf16.msra.mxu0 %v601
    %655 = vmatpush.bf16.msra.mxu0 %v597
    %656 = vmatpush.bf16.msra.mxu0 %v593
    %657 = vmatpush.bf16.msra.mxu0 %v589
    %658 = vmatpush.bf16.msra.mxu0 %v585
    %659 = vmatpush.bf16.msra.mxu0 %v581
    %660 = vmatpush.bf16.msra.mxu0 %v577
    %661 = vmatmul.bf16.gmra.mxu0 %v447
    %v662 = vpop.f32.mrf.mxu0
    %v663 = vadd.f32 0.0, %v662
    %v664 = vpop.f32.mrf.mxu0
    %665 = vdwg.mxu0
    %666 = vmatpush.bf16.msra.mxu0 %v606
    %667 = vmatpush.bf16.msra.mxu0 %v602
    %668 = vmatpush.bf16.msra.mxu0 %v598
    %669 = vmatpush.bf16.msra.mxu0 %v594
    %670 = vmatpush.bf16.msra.mxu0 %v590
    %671 = vmatpush.bf16.msra.mxu0 %v586
    %672 = vmatpush.bf16.msra.mxu0 %v582
    %673 = vmatpush.bf16.msra.mxu0 %v578
    %674 = vmatmul.bf16.gmra.mxu0 %v447
    %v675 = vpop.f32.mrf.mxu0
    %v676 = vadd.f32 0.0, %v675
    %v677 = vpop.f32.mrf.mxu0
    %678 = vdwg.mxu0
    %679 = vmatpush.bf16.msra.mxu0 %v607
    %680 = vmatpush.bf16.msra.mxu0 %v603
    %681 = vmatpush.bf16.msra.mxu0 %v599
    %682 = vmatpush.bf16.msra.mxu0 %v595
    %683 = vmatpush.bf16.msra.mxu0 %v591
    %684 = vmatpush.bf16.msra.mxu0 %v587
    %685 = vmatpush.bf16.msra.mxu0 %v583
    %686 = vmatpush.bf16.msra.mxu0 %v579
    %687 = vmatmul.bf16.gmra.mxu0 %v447
    %v688 = vpop.f32.mrf.mxu0
    %v689 = vadd.f32 0.0, %v688
    %v690 = vpop.f32.mrf.mxu0
    %691 = vdwg.mxu0
    %v692 = vadd.f32 %v443, %v650
    %v693 = vadd.f32 %v444, %v663
    %v694 = vadd.f32 %v445, %v676
    %v695 = vadd.f32 %v446, %v689
    %v696 = vxor.u32 %v692, 2147483648
    %v697 = vmul.f32 %v696, 1.442695
    %v698 = vpow.pop %v697
    %v699 = vadd.f32 %v698, 1.0
    %v700 = vrcp.pop %v699
    %v701 = vmul.f32 %v699, %v700
    %v702 = vsub.f32 1.0, %v701
    %v703 = vmul.f32 %v700, %v702
    %v704 = vadd.f32 %v700, %v703
    %vm705 = vweird.f32 %v699
    %vm706 = vweird.f32 %v700
    %vm707 = vmor %vm705, %vm706
    %v708 = vsel %vm707, %v700, %v704
    %v709 = vand.u32 2147483647, %v699
    %vm710 = vcmp.eq.f32.partialorder %v709, 8.507059e+37
    %v711 = vand.u32 %v699, 2147483648
    %v712 = vor.u32 1.1754944e-38, %v711
    %v713 = vsel %vm710, %v712, %v708
    %v714 = vmul.f32 1.0, %v713
    %v715 = vxor.u32 %v693, 2147483648
    %v716 = vmul.f32 %v715, 1.442695
    %v717 = vpow.pop %v716
    %v718 = vadd.f32 %v717, 1.0
    %v719 = vrcp.pop %v718
    %v720 = vmul.f32 %v718, %v719
    %v721 = vsub.f32 1.0, %v720
    %v722 = vmul.f32 %v719, %v721
    %v723 = vadd.f32 %v719, %v722
    %vm724 = vweird.f32 %v718
    %vm725 = vweird.f32 %v719
    %vm726 = vmor %vm724, %vm725
    %v727 = vsel %vm726, %v719, %v723
    %v728 = vand.u32 2147483647, %v718
    %vm729 = vcmp.eq.f32.partialorder %v728, 8.507059e+37
    %v730 = vand.u32 %v718, 2147483648
    %v731 = vor.u32 1.1754944e-38, %v730
    %v732 = vsel %vm729, %v731, %v727
    %v733 = vmul.f32 1.0, %v732
    %v734 = vtanh.pop %v694
    %v735 = vxor.u32 %v695, 2147483648
    %v736 = vmul.f32 %v735, 1.442695
    %v737 = vpow.pop %v736
    %v738 = vadd.f32 %v737, 1.0
    %v739 = vrcp.pop %v738
    %v740 = vmul.f32 %v738, %v739
    %v741 = vsub.f32 1.0, %v740
    %v742 = vmul.f32 %v739, %v741
    %v743 = vadd.f32 %v739, %v742
    %vm744 = vweird.f32 %v738
    %vm745 = vweird.f32 %v739
    %vm746 = vmor %vm744, %vm745
    %v747 = vsel %vm746, %v739, %v743
    %v748 = vand.u32 2147483647, %v738
    %vm749 = vcmp.eq.f32.partialorder %v748, 8.507059e+37
    %v750 = vand.u32 %v738, 2147483648
    %v751 = vor.u32 1.1754944e-38, %v750
    %v752 = vsel %vm749, %v751, %v747
    %v753 = vmul.f32 1.0, %v752
    %v754 = vld [vmem:[#allocation5] sm:$0xff]
    %v755 = vmul.f32 %v733, %v754
    %v756 = vmul.f32 %v714, %v734
    %v757 = vadd.f32 %v755, %v756
    %v758 = vtanh.pop %v757
    %v759 = vmul.f32 %v753, %v758
    %760 = vst [vmem:[#allocation5] sm:$0xff] %v757
    %v761 = vpack.c.bf16 %v759, %v759
    %762 = vst [vmem:[#allocation4] sm:$0xf] %v761
    %763 = vst [vmem:[#allocation3] sm:$0xff] %v759
    %s764 = smul.u32 1, 4
    %s765 = smul.addr %s764, 8
    %s766 = scalar_lea.vmem [#allocation2], %s765
    %v767 = vld [vmem:[%s766] sm:$0xff]
    %v768 = vld [vmem:[%s766 + $0x8] sm:$0xff]
    %v769 = vld [vmem:[%s766 + $0x10] sm:$0xff]
    %v770 = vld [vmem:[%s766 + $0x18] sm:$0xff]
    %v771 = vld [vmem:[#allocation4] sm:$0xf]
    %v772 = vld [vmem:[#allocation7] sm:$0xff]
    %v773 = vld [vmem:[#allocation7 + $0x8] sm:$0xff]
    %v774 = vld [vmem:[#allocation7 + $0x10] sm:$0xff]
    %v775 = vld [vmem:[#allocation7 + $0x18] sm:$0xff]
    %v776 = vld [vmem:[#allocation7 + $0x20] sm:$0xff]
    %v777 = vld [vmem:[#allocation7 + $0x28] sm:$0xff]
    %v778 = vld [vmem:[#allocation7 + $0x30] sm:$0xff]
    %v779 = vld [vmem:[#allocation7 + $0x38] sm:$0xff]
    %v780 = vld [vmem:[#allocation7 + $0x40] sm:$0xff]
    %v781 = vld [vmem:[#allocation7 + $0x48] sm:$0xff]
    %v782 = vld [vmem:[#allocation7 + $0x50] sm:$0xff]
    %v783 = vld [vmem:[#allocation7 + $0x58] sm:$0xff]
    %v784 = vld [vmem:[#allocation7 + $0x60] sm:$0xff]
    %v785 = vld [vmem:[#allocation7 + $0x68] sm:$0xff]
    %v786 = vld [vmem:[#allocation7 + $0x70] sm:$0xff]
    %v787 = vld [vmem:[#allocation7 + $0x78] sm:$0xff]
    %v788 = vld [vmem:[#allocation7 + $0x80] sm:$0xff]
    %v789 = vld [vmem:[#allocation7 + $0x88] sm:$0xff]
    %v790 = vld [vmem:[#allocation7 + $0x90] sm:$0xff]
    %v791 = vld [vmem:[#allocation7 + $0x98] sm:$0xff]
    %v792 = vld [vmem:[#allocation7 + $0xa0] sm:$0xff]
    %v793 = vld [vmem:[#allocation7 + $0xa8] sm:$0xff]
    %v794 = vld [vmem:[#allocation7 + $0xb0] sm:$0xff]
    %v795 = vld [vmem:[#allocation7 + $0xb8] sm:$0xff]
    %v796 = vld [vmem:[#allocation7 + $0xc0] sm:$0xff]
    %v797 = vld [vmem:[#allocation7 + $0xc8] sm:$0xff]
    %v798 = vld [vmem:[#allocation7 + $0xd0] sm:$0xff]
    %v799 = vld [vmem:[#allocation7 + $0xd8] sm:$0xff]
    %v800 = vld [vmem:[#allocation7 + $0xe0] sm:$0xff]
    %v801 = vld [vmem:[#allocation7 + $0xe8] sm:$0xff]
    %v802 = vld [vmem:[#allocation7 + $0xf0] sm:$0xff]
    %v803 = vld [vmem:[#allocation7 + $0xf8] sm:$0xff]
    %v836 = vunpack.c.l.b16 %v772
    %v837 = vunpack.c.h.b16 %v772
    %v838 = vunpack.c.l.b16 %v773
    %v839 = vunpack.c.h.b16 %v773
    %v840 = vunpack.c.l.b16 %v774
    %v841 = vunpack.c.h.b16 %v774
    %v842 = vunpack.c.l.b16 %v775
    %v843 = vunpack.c.h.b16 %v775
    %v844 = vunpack.c.l.b16 %v776
    %v845 = vunpack.c.h.b16 %v776
    %v846 = vunpack.c.l.b16 %v777
    %v847 = vunpack.c.h.b16 %v777
    %v848 = vunpack.c.l.b16 %v778
    %v849 = vunpack.c.h.b16 %v778
    %v850 = vunpack.c.l.b16 %v779
    %v851 = vunpack.c.h.b16 %v779
    %v852 = vunpack.c.l.b16 %v780
    %v853 = vunpack.c.h.b16 %v780
    %v854 = vunpack.c.l.b16 %v781
    %v855 = vunpack.c.h.b16 %v781
    %v856 = vunpack.c.l.b16 %v782
    %v857 = vunpack.c.h.b16 %v782
    %v858 = vunpack.c.l.b16 %v783
    %v859 = vunpack.c.h.b16 %v783
    %v860 = vunpack.c.l.b16 %v784
    %v861 = vunpack.c.h.b16 %v784
    %v862 = vunpack.c.l.b16 %v785
    %v863 = vunpack.c.h.b16 %v785
    %v864 = vunpack.c.l.b16 %v786
    %v865 = vunpack.c.h.b16 %v786
    %v866 = vunpack.c.l.b16 %v787
    %v867 = vunpack.c.h.b16 %v787
    %v868 = vunpack.c.l.b16 %v788
    %v869 = vunpack.c.h.b16 %v788
    %v870 = vunpack.c.l.b16 %v789
    %v871 = vunpack.c.h.b16 %v789
    %v872 = vunpack.c.l.b16 %v790
    %v873 = vunpack.c.h.b16 %v790
    %v874 = vunpack.c.l.b16 %v791
    %v875 = vunpack.c.h.b16 %v791
    %v876 = vunpack.c.l.b16 %v792
    %v877 = vunpack.c.h.b16 %v792
    %v878 = vunpack.c.l.b16 %v793
    %v879 = vunpack.c.h.b16 %v793
    %v880 = vunpack.c.l.b16 %v794
    %v881 = vunpack.c.h.b16 %v794
    %v882 = vunpack.c.l.b16 %v795
    %v883 = vunpack.c.h.b16 %v795
    %v884 = vunpack.c.l.b16 %v796
    %v885 = vunpack.c.h.b16 %v796
    %v886 = vunpack.c.l.b16 %v797
    %v887 = vunpack.c.h.b16 %v797
    %v888 = vunpack.c.l.b16 %v798
    %v889 = vunpack.c.h.b16 %v798
    %v890 = vunpack.c.l.b16 %v799
    %v891 = vunpack.c.h.b16 %v799
    %v892 = vunpack.c.l.b16 %v800
    %v893 = vunpack.c.h.b16 %v800
    %v894 = vunpack.c.l.b16 %v801
    %v895 = vunpack.c.h.b16 %v801
    %v896 = vunpack.c.l.b16 %v802
    %v897 = vunpack.c.h.b16 %v802
    %v898 = vunpack.c.l.b16 %v803
    %v899 = vunpack.c.h.b16 %v803
    %v900 = vpack.c.b16 %v840, %v836
    %v901 = vpack.c.b16 %v841, %v837
    %v902 = vpack.c.b16 %v842, %v838
    %v903 = vpack.c.b16 %v843, %v839
    %v904 = vpack.c.b16 %v848, %v844
    %v905 = vpack.c.b16 %v849, %v845
    %v906 = vpack.c.b16 %v850, %v846
    %v907 = vpack.c.b16 %v851, %v847
    %v908 = vpack.c.b16 %v856, %v852
    %v909 = vpack.c.b16 %v857, %v853
    %v910 = vpack.c.b16 %v858, %v854
    %v911 = vpack.c.b16 %v859, %v855
    %v912 = vpack.c.b16 %v864, %v860
    %v913 = vpack.c.b16 %v865, %v861
    %v914 = vpack.c.b16 %v866, %v862
    %v915 = vpack.c.b16 %v867, %v863
    %v916 = vpack.c.b16 %v872, %v868
    %v917 = vpack.c.b16 %v873, %v869
    %v918 = vpack.c.b16 %v874, %v870
    %v919 = vpack.c.b16 %v875, %v871
    %v920 = vpack.c.b16 %v880, %v876
    %v921 = vpack.c.b16 %v881, %v877
    %v922 = vpack.c.b16 %v882, %v878
    %v923 = vpack.c.b16 %v883, %v879
    %v924 = vpack.c.b16 %v888, %v884
    %v925 = vpack.c.b16 %v889, %v885
    %v926 = vpack.c.b16 %v890, %v886
    %v927 = vpack.c.b16 %v891, %v887
    %v928 = vpack.c.b16 %v896, %v892
    %v929 = vpack.c.b16 %v897, %v893
    %v930 = vpack.c.b16 %v898, %v894
    %v931 = vpack.c.b16 %v899, %v895
    %964 = vmatpush.bf16.msra.mxu0 %v928
    %965 = vmatpush.bf16.msra.mxu0 %v924
    %966 = vmatpush.bf16.msra.mxu0 %v920
    %967 = vmatpush.bf16.msra.mxu0 %v916
    %968 = vmatpush.bf16.msra.mxu0 %v912
    %969 = vmatpush.bf16.msra.mxu0 %v908
    %970 = vmatpush.bf16.msra.mxu0 %v904
    %971 = vmatpush.bf16.msra.mxu0 %v900
    %972 = vmatmul.bf16.gmra.mxu0 %v771
    %v973 = vpop.f32.mrf.mxu0
    %v974 = vadd.f32 0.0, %v973
    %v975 = vpop.f32.mrf.mxu0
    %976 = vdwg.mxu0
    %977 = vmatpush.bf16.msra.mxu0 %v929
    %978 = vmatpush.bf16.msra.mxu0 %v925
    %979 = vmatpush.bf16.msra.mxu0 %v921
    %980 = vmatpush.bf16.msra.mxu0 %v917
    %981 = vmatpush.bf16.msra.mxu0 %v913
    %982 = vmatpush.bf16.msra.mxu0 %v909
    %983 = vmatpush.bf16.msra.mxu0 %v905
    %984 = vmatpush.bf16.msra.mxu0 %v901
    %985 = vmatmul.bf16.gmra.mxu0 %v771
    %v986 = vpop.f32.mrf.mxu0
    %v987 = vadd.f32 0.0, %v986
    %v988 = vpop.f32.mrf.mxu0
    %989 = vdwg.mxu0
    %990 = vmatpush.bf16.msra.mxu0 %v930
    %991 = vmatpush.bf16.msra.mxu0 %v926
    %992 = vmatpush.bf16.msra.mxu0 %v922
    %993 = vmatpush.bf16.msra.mxu0 %v918
    %994 = vmatpush.bf16.msra.mxu0 %v914
    %995 = vmatpush.bf16.msra.mxu0 %v910
    %996 = vmatpush.bf16.msra.mxu0 %v906
    %997 = vmatpush.bf16.msra.mxu0 %v902
    %998 = vmatmul.bf16.gmra.mxu0 %v771
    %v999 = vpop.f32.mrf.mxu0
    %v1000 = vadd.f32 0.0, %v999
    %v1001 = vpop.f32.mrf.mxu0
    %1002 = vdwg.mxu0
    %1003 = vmatpush.bf16.msra.mxu0 %v931
    %1004 = vmatpush.bf16.msra.mxu0 %v927
    %1005 = vmatpush.bf16.msra.mxu0 %v923
    %1006 = vmatpush.bf16.msra.mxu0 %v919
    %1007 = vmatpush.bf16.msra.mxu0 %v915
    %1008 = vmatpush.bf16.msra.mxu0 %v911
    %1009 = vmatpush.bf16.msra.mxu0 %v907
    %1010 = vmatpush.bf16.msra.mxu0 %v903
    %1011 = vmatmul.bf16.gmra.mxu0 %v771
    %v1012 = vpop.f32.mrf.mxu0
    %v1013 = vadd.f32 0.0, %v1012
    %v1014 = vpop.f32.mrf.mxu0
    %1015 = vdwg.mxu0
    %v1016 = vadd.f32 %v767, %v974
    %v1017 = vadd.f32 %v768, %v987
    %v1018 = vadd.f32 %v769, %v1000
    %v1019 = vadd.f32 %v770, %v1013
    %v1020 = vxor.u32 %v1016, 2147483648
    %v1021 = vmul.f32 %v1020, 1.442695
    %v1022 = vpow.pop %v1021
    %v1023 = vadd.f32 %v1022, 1.0
    %v1024 = vrcp.pop %v1023
    %v1025 = vmul.f32 %v1023, %v1024
    %v1026 = vsub.f32 1.0, %v1025
    %v1027 = vmul.f32 %v1024, %v1026
    %v1028 = vadd.f32 %v1024, %v1027
    %vm1029 = vweird.f32 %v1023
    %vm1030 = vweird.f32 %v1024
    %vm1031 = vmor %vm1029, %vm1030
    %v1032 = vsel %vm1031, %v1024, %v1028
    %v1033 = vand.u32 2147483647, %v1023
    %vm1034 = vcmp.eq.f32.partialorder %v1033, 8.507059e+37
    %v1035 = vand.u32 %v1023, 2147483648
    %v1036 = vor.u32 1.1754944e-38, %v1035
    %v1037 = vsel %vm1034, %v1036, %v1032
    %v1038 = vmul.f32 1.0, %v1037
    %v1039 = vxor.u32 %v1017, 2147483648
    %v1040 = vmul.f32 %v1039, 1.442695
    %v1041 = vpow.pop %v1040
    %v1042 = vadd.f32 %v1041, 1.0
    %v1043 = vrcp.pop %v1042
    %v1044 = vmul.f32 %v1042, %v1043
    %v1045 = vsub.f32 1.0, %v1044
    %v1046 = vmul.f32 %v1043, %v1045
    %v1047 = vadd.f32 %v1043, %v1046
    %vm1048 = vweird.f32 %v1042
    %vm1049 = vweird.f32 %v1043
    %vm1050 = vmor %vm1048, %vm1049
    %v1051 = vsel %vm1050, %v1043, %v1047
    %v1052 = vand.u32 2147483647, %v1042
    %vm1053 = vcmp.eq.f32.partialorder %v1052, 8.507059e+37
    %v1054 = vand.u32 %v1042, 2147483648
    %v1055 = vor.u32 1.1754944e-38, %v1054
    %v1056 = vsel %vm1053, %v1055, %v1051
    %v1057 = vmul.f32 1.0, %v1056
    %v1058 = vtanh.pop %v1018
    %v1059 = vxor.u32 %v1019, 2147483648
    %v1060 = vmul.f32 %v1059, 1.442695
    %v1061 = vpow.pop %v1060
    %v1062 = vadd.f32 %v1061, 1.0
    %v1063 = vrcp.pop %v1062
    %v1064 = vmul.f32 %v1062, %v1063
    %v1065 = vsub.f32 1.0, %v1064
    %v1066 = vmul.f32 %v1063, %v1065
    %v1067 = vadd.f32 %v1063, %v1066
    %vm1068 = vweird.f32 %v1062
    %vm1069 = vweird.f32 %v1063
    %vm1070 = vmor %vm1068, %vm1069
    %v1071 = vsel %vm1070, %v1063, %v1067
    %v1072 = vand.u32 2147483647, %v1062
    %vm1073 = vcmp.eq.f32.partialorder %v1072, 8.507059e+37
    %v1074 = vand.u32 %v1062, 2147483648
    %v1075 = vor.u32 1.1754944e-38, %v1074
    %v1076 = vsel %vm1073, %v1075, %v1071
    %v1077 = vmul.f32 1.0, %v1076
    %v1078 = vld [vmem:[#allocation5] sm:$0xff]
    %v1079 = vmul.f32 %v1057, %v1078
    %v1080 = vmul.f32 %v1038, %v1058
    %v1081 = vadd.f32 %v1079, %v1080
    %v1082 = vtanh.pop %v1081
    %v1083 = vmul.f32 %v1077, %v1082
    %1084 = vst [vmem:[#allocation5] sm:$0xff] %v1081
    %v1085 = vpack.c.bf16 %v1083, %v1083
    %1086 = vst [vmem:[#allocation4] sm:$0xf] %v1085
    %s1087 = scalar_lea.vmem [#allocation3], 8
    %1088 = vst [vmem:[%s1087] sm:$0xff] %v1083
    %s1089 = smul.u32 2, 4
    %s1090 = smul.addr %s1089, 8
    %s1091 = scalar_lea.vmem [#allocation2], %s1090
    %v1092 = vld [vmem:[%s1091] sm:$0xff]
    %v1093 = vld [vmem:[%s1091 + $0x8] sm:$0xff]
    %v1094 = vld [vmem:[%s1091 + $0x10] sm:$0xff]
    %v1095 = vld [vmem:[%s1091 + $0x18] sm:$0xff]
    %v1096 = vld [vmem:[#allocation4] sm:$0xf]
    %v1097 = vld [vmem:[#allocation7] sm:$0xff]
    %v1098 = vld [vmem:[#allocation7 + $0x8] sm:$0xff]
    %v1099 = vld [vmem:[#allocation7 + $0x10] sm:$0xff]
    %v1100 = vld [vmem:[#allocation7 + $0x18] sm:$0xff]
    %v1101 = vld [vmem:[#allocation7 + $0x20] sm:$0xff]
    %v1102 = vld [vmem:[#allocation7 + $0x28] sm:$0xff]
    %v1103 = vld [vmem:[#allocation7 + $0x30] sm:$0xff]
    %v1104 = vld [vmem:[#allocation7 + $0x38] sm:$0xff]
    %v1105 = vld [vmem:[#allocation7 + $0x40] sm:$0xff]
    %v1106 = vld [vmem:[#allocation7 + $0x48] sm:$0xff]
    %v1107 = vld [vmem:[#allocation7 + $0x50] sm:$0xff]
    %v1108 = vld [vmem:[#allocation7 + $0x58] sm:$0xff]
    %v1109 = vld [vmem:[#allocation7 + $0x60] sm:$0xff]
    %v1110 = vld [vmem:[#allocation7 + $0x68] sm:$0xff]
    %v1111 = vld [vmem:[#allocation7 + $0x70] sm:$0xff]
    %v1112 = vld [vmem:[#allocation7 + $0x78] sm:$0xff]
    %v1113 = vld [vmem:[#allocation7 + $0x80] sm:$0xff]
    %v1114 = vld [vmem:[#allocation7 + $0x88] sm:$0xff]
    %v1115 = vld [vmem:[#allocation7 + $0x90] sm:$0xff]
    %v1116 = vld [vmem:[#allocation7 + $0x98] sm:$0xff]
    %v1117 = vld [vmem:[#allocation7 + $0xa0] sm:$0xff]
    %v1118 = vld [vmem:[#allocation7 + $0xa8] sm:$0xff]
    %v1119 = vld [vmem:[#allocation7 + $0xb0] sm:$0xff]
    %v1120 = vld [vmem:[#allocation7 + $0xb8] sm:$0xff]
    %v1121 = vld [vmem:[#allocation7 + $0xc0] sm:$0xff]
    %v1122 = vld [vmem:[#allocation7 + $0xc8] sm:$0xff]
    %v1123 = vld [vmem:[#allocation7 + $0xd0] sm:$0xff]
    %v1124 = vld [vmem:[#allocation7 + $0xd8] sm:$0xff]
    %v1125 = vld [vmem:[#allocation7 + $0xe0] sm:$0xff]
    %v1126 = vld [vmem:[#allocation7 + $0xe8] sm:$0xff]
    %v1127 = vld [vmem:[#allocation7 + $0xf0] sm:$0xff]
    %v1128 = vld [vmem:[#allocation7 + $0xf8] sm:$0xff]
    %v1161 = vunpack.c.l.b16 %v1097
    %v1162 = vunpack.c.h.b16 %v1097
    %v1163 = vunpack.c.l.b16 %v1098
    %v1164 = vunpack.c.h.b16 %v1098
    %v1165 = vunpack.c.l.b16 %v1099
    %v1166 = vunpack.c.h.b16 %v1099
    %v1167 = vunpack.c.l.b16 %v1100
    %v1168 = vunpack.c.h.b16 %v1100
    %v1169 = vunpack.c.l.b16 %v1101
    %v1170 = vunpack.c.h.b16 %v1101
    %v1171 = vunpack.c.l.b16 %v1102
    %v1172 = vunpack.c.h.b16 %v1102
    %v1173 = vunpack.c.l.b16 %v1103
    %v1174 = vunpack.c.h.b16 %v1103
    %v1175 = vunpack.c.l.b16 %v1104
    %v1176 = vunpack.c.h.b16 %v1104
    %v1177 = vunpack.c.l.b16 %v1105
    %v1178 = vunpack.c.h.b16 %v1105
    %v1179 = vunpack.c.l.b16 %v1106
    %v1180 = vunpack.c.h.b16 %v1106
    %v1181 = vunpack.c.l.b16 %v1107
    %v1182 = vunpack.c.h.b16 %v1107
    %v1183 = vunpack.c.l.b16 %v1108
    %v1184 = vunpack.c.h.b16 %v1108
    %v1185 = vunpack.c.l.b16 %v1109
    %v1186 = vunpack.c.h.b16 %v1109
    %v1187 = vunpack.c.l.b16 %v1110
    %v1188 = vunpack.c.h.b16 %v1110
    %v1189 = vunpack.c.l.b16 %v1111
    %v1190 = vunpack.c.h.b16 %v1111
    %v1191 = vunpack.c.l.b16 %v1112
    %v1192 = vunpack.c.h.b16 %v1112
    %v1193 = vunpack.c.l.b16 %v1113
    %v1194 = vunpack.c.h.b16 %v1113
    %v1195 = vunpack.c.l.b16 %v1114
    %v1196 = vunpack.c.h.b16 %v1114
    %v1197 = vunpack.c.l.b16 %v1115
    %v1198 = vunpack.c.h.b16 %v1115
    %v1199 = vunpack.c.l.b16 %v1116
    %v1200 = vunpack.c.h.b16 %v1116
    %v1201 = vunpack.c.l.b16 %v1117
    %v1202 = vunpack.c.h.b16 %v1117
    %v1203 = vunpack.c.l.b16 %v1118
    %v1204 = vunpack.c.h.b16 %v1118
    %v1205 = vunpack.c.l.b16 %v1119
    %v1206 = vunpack.c.h.b16 %v1119
    %v1207 = vunpack.c.l.b16 %v1120
    %v1208 = vunpack.c.h.b16 %v1120
    %v1209 = vunpack.c.l.b16 %v1121
    %v1210 = vunpack.c.h.b16 %v1121
    %v1211 = vunpack.c.l.b16 %v1122
    %v1212 = vunpack.c.h.b16 %v1122
    %v1213 = vunpack.c.l.b16 %v1123
    %v1214 = vunpack.c.h.b16 %v1123
    %v1215 = vunpack.c.l.b16 %v1124
    %v1216 = vunpack.c.h.b16 %v1124
    %v1217 = vunpack.c.l.b16 %v1125
    %v1218 = vunpack.c.h.b16 %v1125
    %v1219 = vunpack.c.l.b16 %v1126
    %v1220 = vunpack.c.h.b16 %v1126
    %v1221 = vunpack.c.l.b16 %v1127
    %v1222 = vunpack.c.h.b16 %v1127
    %v1223 = vunpack.c.l.b16 %v1128
    %v1224 = vunpack.c.h.b16 %v1128
    %v1225 = vpack.c.b16 %v1165, %v1161
    %v1226 = vpack.c.b16 %v1166, %v1162
    %v1227 = vpack.c.b16 %v1167, %v1163
    %v1228 = vpack.c.b16 %v1168, %v1164
    %v1229 = vpack.c.b16 %v1173, %v1169
    %v1230 = vpack.c.b16 %v1174, %v1170
    %v1231 = vpack.c.b16 %v1175, %v1171
    %v1232 = vpack.c.b16 %v1176, %v1172
    %v1233 = vpack.c.b16 %v1181, %v1177
    %v1234 = vpack.c.b16 %v1182, %v1178
    %v1235 = vpack.c.b16 %v1183, %v1179
    %v1236 = vpack.c.b16 %v1184, %v1180
    %v1237 = vpack.c.b16 %v1189, %v1185
    %v1238 = vpack.c.b16 %v1190, %v1186
    %v1239 = vpack.c.b16 %v1191, %v1187
    %v1240 = vpack.c.b16 %v1192, %v1188
    %v1241 = vpack.c.b16 %v1197, %v1193
    %v1242 = vpack.c.b16 %v1198, %v1194
    %v1243 = vpack.c.b16 %v1199, %v1195
    %v1244 = vpack.c.b16 %v1200, %v1196
    %v1245 = vpack.c.b16 %v1205, %v1201
    %v1246 = vpack.c.b16 %v1206, %v1202
    %v1247 = vpack.c.b16 %v1207, %v1203
    %v1248 = vpack.c.b16 %v1208, %v1204
    %v1249 = vpack.c.b16 %v1213, %v1209
    %v1250 = vpack.c.b16 %v1214, %v1210
    %v1251 = vpack.c.b16 %v1215, %v1211
    %v1252 = vpack.c.b16 %v1216, %v1212
    %v1253 = vpack.c.b16 %v1221, %v1217
    %v1254 = vpack.c.b16 %v1222, %v1218
    %v1255 = vpack.c.b16 %v1223, %v1219
    %v1256 = vpack.c.b16 %v1224, %v1220
    %1289 = vmatpush.bf16.msra.mxu0 %v1253
    %1290 = vmatpush.bf16.msra.mxu0 %v1249
    %1291 = vmatpush.bf16.msra.mxu0 %v1245
    %1292 = vmatpush.bf16.msra.mxu0 %v1241
    %1293 = vmatpush.bf16.msra.mxu0 %v1237
    %1294 = vmatpush.bf16.msra.mxu0 %v1233
    %1295 = vmatpush.bf16.msra.mxu0 %v1229
    %1296 = vmatpush.bf16.msra.mxu0 %v1225
    %1297 = vmatmul.bf16.gmra.mxu0 %v1096
    %v1298 = vpop.f32.mrf.mxu0
    %v1299 = vadd.f32 0.0, %v1298
    %v1300 = vpop.f32.mrf.mxu0
    %1301 = vdwg.mxu0
    %1302 = vmatpush.bf16.msra.mxu0 %v1254
    %1303 = vmatpush.bf16.msra.mxu0 %v1250
    %1304 = vmatpush.bf16.msra.mxu0 %v1246
    %1305 = vmatpush.bf16.msra.mxu0 %v1242
    %1306 = vmatpush.bf16.msra.mxu0 %v1238
    %1307 = vmatpush.bf16.msra.mxu0 %v1234
    %1308 = vmatpush.bf16.msra.mxu0 %v1230
    %1309 = vmatpush.bf16.msra.mxu0 %v1226
    %1310 = vmatmul.bf16.gmra.mxu0 %v1096
    %v1311 = vpop.f32.mrf.mxu0
    %v1312 = vadd.f32 0.0, %v1311
    %v1313 = vpop.f32.mrf.mxu0
    %1314 = vdwg.mxu0
    %1315 = vmatpush.bf16.msra.mxu0 %v1255
    %1316 = vmatpush.bf16.msra.mxu0 %v1251
    %1317 = vmatpush.bf16.msra.mxu0 %v1247
    %1318 = vmatpush.bf16.msra.mxu0 %v1243
    %1319 = vmatpush.bf16.msra.mxu0 %v1239
    %1320 = vmatpush.bf16.msra.mxu0 %v1235
    %1321 = vmatpush.bf16.msra.mxu0 %v1231
    %1322 = vmatpush.bf16.msra.mxu0 %v1227
    %1323 = vmatmul.bf16.gmra.mxu0 %v1096
    %v1324 = vpop.f32.mrf.mxu0
    %v1325 = vadd.f32 0.0, %v1324
    %v1326 = vpop.f32.mrf.mxu0
    %1327 = vdwg.mxu0
    %1328 = vmatpush.bf16.msra.mxu0 %v1256
    %1329 = vmatpush.bf16.msra.mxu0 %v1252
    %1330 = vmatpush.bf16.msra.mxu0 %v1248
    %1331 = vmatpush.bf16.msra.mxu0 %v1244
    %1332 = vmatpush.bf16.msra.mxu0 %v1240
    %1333 = vmatpush.bf16.msra.mxu0 %v1236
    %1334 = vmatpush.bf16.msra.mxu0 %v1232
    %1335 = vmatpush.bf16.msra.mxu0 %v1228
    %1336 = vmatmul.bf16.gmra.mxu0 %v1096
    %v1337 = vpop.f32.mrf.mxu0
    %v1338 = vadd.f32 0.0, %v1337
    %v1339 = vpop.f32.mrf.mxu0
    %1340 = vdwg.mxu0
    %v1341 = vadd.f32 %v1092, %v1299
    %v1342 = vadd.f32 %v1093, %v1312
    %v1343 = vadd.f32 %v1094, %v1325
    %v1344 = vadd.f32 %v1095, %v1338
    %v1345 = vxor.u32 %v1341, 2147483648
    %v1346 = vmul.f32 %v1345, 1.442695
    %v1347 = vpow.pop %v1346
    %v1348 = vadd.f32 %v1347, 1.0
    %v1349 = vrcp.pop %v1348
    %v1350 = vmul.f32 %v1348, %v1349
    %v1351 = vsub.f32 1.0, %v1350
    %v1352 = vmul.f32 %v1349, %v1351
    %v1353 = vadd.f32 %v1349, %v1352
    %vm1354 = vweird.f32 %v1348
    %vm1355 = vweird.f32 %v1349
    %vm1356 = vmor %vm1354, %vm1355
    %v1357 = vsel %vm1356, %v1349, %v1353
    %v1358 = vand.u32 2147483647, %v1348
    %vm1359 = vcmp.eq.f32.partialorder %v1358, 8.507059e+37
    %v1360 = vand.u32 %v1348, 2147483648
    %v1361 = vor.u32 1.1754944e-38, %v1360
    %v1362 = vsel %vm1359, %v1361, %v1357
    %v1363 = vmul.f32 1.0, %v1362
    %v1364 = vxor.u32 %v1342, 2147483648
    %v1365 = vmul.f32 %v1364, 1.442695
    %v1366 = vpow.pop %v1365
    %v1367 = vadd.f32 %v1366, 1.0
    %v1368 = vrcp.pop %v1367
    %v1369 = vmul.f32 %v1367, %v1368
    %v1370 = vsub.f32 1.0, %v1369
    %v1371 = vmul.f32 %v1368, %v1370
    %v1372 = vadd.f32 %v1368, %v1371
    %vm1373 = vweird.f32 %v1367
    %vm1374 = vweird.f32 %v1368
    %vm1375 = vmor %vm1373, %vm1374
    %v1376 = vsel %vm1375, %v1368, %v1372
    %v1377 = vand.u32 2147483647, %v1367
    %vm1378 = vcmp.eq.f32.partialorder %v1377, 8.507059e+37
    %v1379 = vand.u32 %v1367, 2147483648
    %v1380 = vor.u32 1.1754944e-38, %v1379
    %v1381 = vsel %vm1378, %v1380, %v1376
    %v1382 = vmul.f32 1.0, %v1381
    %v1383 = vtanh.pop %v1343
    %v1384 = vxor.u32 %v1344, 2147483648
    %v1385 = vmul.f32 %v1384, 1.442695
    %v1386 = vpow.pop %v1385
    %v1387 = vadd.f32 %v1386, 1.0
    %v1388 = vrcp.pop %v1387
    %v1389 = vmul.f32 %v1387, %v1388
    %v1390 = vsub.f32 1.0, %v1389
    %v1391 = vmul.f32 %v1388, %v1390
    %v1392 = vadd.f32 %v1388, %v1391
    %vm1393 = vweird.f32 %v1387
    %vm1394 = vweird.f32 %v1388
    %vm1395 = vmor %vm1393, %vm1394
    %v1396 = vsel %vm1395, %v1388, %v1392
    %v1397 = vand.u32 2147483647, %v1387
    %vm1398 = vcmp.eq.f32.partialorder %v1397, 8.507059e+37
    %v1399 = vand.u32 %v1387, 2147483648
    %v1400 = vor.u32 1.1754944e-38, %v1399
    %v1401 = vsel %vm1398, %v1400, %v1396
    %v1402 = vmul.f32 1.0, %v1401
    %v1403 = vld [vmem:[#allocation5] sm:$0xff]
    %v1404 = vmul.f32 %v1382, %v1403
    %v1405 = vmul.f32 %v1363, %v1383
    %v1406 = vadd.f32 %v1404, %v1405
    %v1407 = vtanh.pop %v1406
    %v1408 = vmul.f32 %v1402, %v1407
    %1409 = vst [vmem:[#allocation5] sm:$0xff] %v1406
    %v1410 = vpack.c.bf16 %v1408, %v1408
    %1411 = vst [vmem:[#allocation4] sm:$0xf] %v1410
    %s1412 = scalar_lea.vmem [#allocation3], 16
    %1413 = vst [vmem:[%s1412] sm:$0xff] %v1408
    %s1414 = smul.u32 3, 4
    %s1415 = smul.addr %s1414, 8
    %s1416 = scalar_lea.vmem [#allocation2], %s1415
    %v1417 = vld [vmem:[%s1416] sm:$0xff]
    %v1418 = vld [vmem:[%s1416 + $0x8] sm:$0xff]
    %v1419 = vld [vmem:[%s1416 + $0x10] sm:$0xff]
    %v1420 = vld [vmem:[%s1416 + $0x18] sm:$0xff]
    %v1421 = vld [vmem:[#allocation4] sm:$0xf]
    %v1422 = vld [vmem:[#allocation7] sm:$0xff]
    %v1423 = vld [vmem:[#allocation7 + $0x8] sm:$0xff]
    %v1424 = vld [vmem:[#allocation7 + $0x10] sm:$0xff]
    %v1425 = vld [vmem:[#allocation7 + $0x18] sm:$0xff]
    %v1426 = vld [vmem:[#allocation7 + $0x20] sm:$0xff]
    %v1427 = vld [vmem:[#allocation7 + $0x28] sm:$0xff]
    %v1428 = vld [vmem:[#allocation7 + $0x30] sm:$0xff]
    %v1429 = vld [vmem:[#allocation7 + $0x38] sm:$0xff]
    %v1430 = vld [vmem:[#allocation7 + $0x40] sm:$0xff]
    %v1431 = vld [vmem:[#allocation7 + $0x48] sm:$0xff]
    %v1432 = vld [vmem:[#allocation7 + $0x50] sm:$0xff]
    %v1433 = vld [vmem:[#allocation7 + $0x58] sm:$0xff]
    %v1434 = vld [vmem:[#allocation7 + $0x60] sm:$0xff]
    %v1435 = vld [vmem:[#allocation7 + $0x68] sm:$0xff]
    %v1436 = vld [vmem:[#allocation7 + $0x70] sm:$0xff]
    %v1437 = vld [vmem:[#allocation7 + $0x78] sm:$0xff]
    %v1438 = vld [vmem:[#allocation7 + $0x80] sm:$0xff]
    %v1439 = vld [vmem:[#allocation7 + $0x88] sm:$0xff]
    %v1440 = vld [vmem:[#allocation7 + $0x90] sm:$0xff]
    %v1441 = vld [vmem:[#allocation7 + $0x98] sm:$0xff]
    %v1442 = vld [vmem:[#allocation7 + $0xa0] sm:$0xff]
    %v1443 = vld [vmem:[#allocation7 + $0xa8] sm:$0xff]
    %v1444 = vld [vmem:[#allocation7 + $0xb0] sm:$0xff]
    %v1445 = vld [vmem:[#allocation7 + $0xb8] sm:$0xff]
    %v1446 = vld [vmem:[#allocation7 + $0xc0] sm:$0xff]
    %v1447 = vld [vmem:[#allocation7 + $0xc8] sm:$0xff]
    %v1448 = vld [vmem:[#allocation7 + $0xd0] sm:$0xff]
    %v1449 = vld [vmem:[#allocation7 + $0xd8] sm:$0xff]
    %v1450 = vld [vmem:[#allocation7 + $0xe0] sm:$0xff]
    %v1451 = vld [vmem:[#allocation7 + $0xe8] sm:$0xff]
    %v1452 = vld [vmem:[#allocation7 + $0xf0] sm:$0xff]
    %v1453 = vld [vmem:[#allocation7 + $0xf8] sm:$0xff]
    %v1486 = vunpack.c.l.b16 %v1422
    %v1487 = vunpack.c.h.b16 %v1422
    %v1488 = vunpack.c.l.b16 %v1423
    %v1489 = vunpack.c.h.b16 %v1423
    %v1490 = vunpack.c.l.b16 %v1424
    %v1491 = vunpack.c.h.b16 %v1424
    %v1492 = vunpack.c.l.b16 %v1425
    %v1493 = vunpack.c.h.b16 %v1425
    %v1494 = vunpack.c.l.b16 %v1426
    %v1495 = vunpack.c.h.b16 %v1426
    %v1496 = vunpack.c.l.b16 %v1427
    %v1497 = vunpack.c.h.b16 %v1427
    %v1498 = vunpack.c.l.b16 %v1428
    %v1499 = vunpack.c.h.b16 %v1428
    %v1500 = vunpack.c.l.b16 %v1429
    %v1501 = vunpack.c.h.b16 %v1429
    %v1502 = vunpack.c.l.b16 %v1430
    %v1503 = vunpack.c.h.b16 %v1430
    %v1504 = vunpack.c.l.b16 %v1431
    %v1505 = vunpack.c.h.b16 %v1431
    %v1506 = vunpack.c.l.b16 %v1432
    %v1507 = vunpack.c.h.b16 %v1432
    %v1508 = vunpack.c.l.b16 %v1433
    %v1509 = vunpack.c.h.b16 %v1433
    %v1510 = vunpack.c.l.b16 %v1434
    %v1511 = vunpack.c.h.b16 %v1434
    %v1512 = vunpack.c.l.b16 %v1435
    %v1513 = vunpack.c.h.b16 %v1435
    %v1514 = vunpack.c.l.b16 %v1436
    %v1515 = vunpack.c.h.b16 %v1436
    %v1516 = vunpack.c.l.b16 %v1437
    %v1517 = vunpack.c.h.b16 %v1437
    %v1518 = vunpack.c.l.b16 %v1438
    %v1519 = vunpack.c.h.b16 %v1438
    %v1520 = vunpack.c.l.b16 %v1439
    %v1521 = vunpack.c.h.b16 %v1439
    %v1522 = vunpack.c.l.b16 %v1440
    %v1523 = vunpack.c.h.b16 %v1440
    %v1524 = vunpack.c.l.b16 %v1441
    %v1525 = vunpack.c.h.b16 %v1441
    %v1526 = vunpack.c.l.b16 %v1442
    %v1527 = vunpack.c.h.b16 %v1442
    %v1528 = vunpack.c.l.b16 %v1443
    %v1529 = vunpack.c.h.b16 %v1443
    %v1530 = vunpack.c.l.b16 %v1444
    %v1531 = vunpack.c.h.b16 %v1444
    %v1532 = vunpack.c.l.b16 %v1445
    %v1533 = vunpack.c.h.b16 %v1445
    %v1534 = vunpack.c.l.b16 %v1446
    %v1535 = vunpack.c.h.b16 %v1446
    %v1536 = vunpack.c.l.b16 %v1447
    %v1537 = vunpack.c.h.b16 %v1447
    %v1538 = vunpack.c.l.b16 %v1448
    %v1539 = vunpack.c.h.b16 %v1448
    %v1540 = vunpack.c.l.b16 %v1449
    %v1541 = vunpack.c.h.b16 %v1449
    %v1542 = vunpack.c.l.b16 %v1450
    %v1543 = vunpack.c.h.b16 %v1450
    %v1544 = vunpack.c.l.b16 %v1451
    %v1545 = vunpack.c.h.b16 %v1451
    %v1546 = vunpack.c.l.b16 %v1452
    %v1547 = vunpack.c.h.b16 %v1452
    %v1548 = vunpack.c.l.b16 %v1453
    %v1549 = vunpack.c.h.b16 %v1453
    %v1550 = vpack.c.b16 %v1490, %v1486
    %v1551 = vpack.c.b16 %v1491, %v1487
    %v1552 = vpack.c.b16 %v1492, %v1488
    %v1553 = vpack.c.b16 %v1493, %v1489
    %v1554 = vpack.c.b16 %v1498, %v1494
    %v1555 = vpack.c.b16 %v1499, %v1495
    %v1556 = vpack.c.b16 %v1500, %v1496
    %v1557 = vpack.c.b16 %v1501, %v1497
    %v1558 = vpack.c.b16 %v1506, %v1502
    %v1559 = vpack.c.b16 %v1507, %v1503
    %v1560 = vpack.c.b16 %v1508, %v1504
    %v1561 = vpack.c.b16 %v1509, %v1505
    %v1562 = vpack.c.b16 %v1514, %v1510
    %v1563 = vpack.c.b16 %v1515, %v1511
    %v1564 = vpack.c.b16 %v1516, %v1512
    %v1565 = vpack.c.b16 %v1517, %v1513
    %v1566 = vpack.c.b16 %v1522, %v1518
    %v1567 = vpack.c.b16 %v1523, %v1519
    %v1568 = vpack.c.b16 %v1524, %v1520
    %v1569 = vpack.c.b16 %v1525, %v1521
    %v1570 = vpack.c.b16 %v1530, %v1526
    %v1571 = vpack.c.b16 %v1531, %v1527
    %v1572 = vpack.c.b16 %v1532, %v1528
    %v1573 = vpack.c.b16 %v1533, %v1529
    %v1574 = vpack.c.b16 %v1538, %v1534
    %v1575 = vpack.c.b16 %v1539, %v1535
    %v1576 = vpack.c.b16 %v1540, %v1536
    %v1577 = vpack.c.b16 %v1541, %v1537
    %v1578 = vpack.c.b16 %v1546, %v1542
    %v1579 = vpack.c.b16 %v1547, %v1543
    %v1580 = vpack.c.b16 %v1548, %v1544
    %v1581 = vpack.c.b16 %v1549, %v1545
    %1614 = vmatpush.bf16.msra.mxu0 %v1578
    %1615 = vmatpush.bf16.msra.mxu0 %v1574
    %1616 = vmatpush.bf16.msra.mxu0 %v1570
    %1617 = vmatpush.bf16.msra.mxu0 %v1566
    %1618 = vmatpush.bf16.msra.mxu0 %v1562
    %1619 = vmatpush.bf16.msra.mxu0 %v1558
    %1620 = vmatpush.bf16.msra.mxu0 %v1554
    %1621 = vmatpush.bf16.msra.mxu0 %v1550
    %1622 = vmatmul.bf16.gmra.mxu0 %v1421
    %v1623 = vpop.f32.mrf.mxu0
    %v1624 = vadd.f32 0.0, %v1623
    %v1625 = vpop.f32.mrf.mxu0
    %1626 = vdwg.mxu0
    %1627 = vmatpush.bf16.msra.mxu0 %v1579
    %1628 = vmatpush.bf16.msra.mxu0 %v1575
    %1629 = vmatpush.bf16.msra.mxu0 %v1571
    %1630 = vmatpush.bf16.msra.mxu0 %v1567
    %1631 = vmatpush.bf16.msra.mxu0 %v1563
    %1632 = vmatpush.bf16.msra.mxu0 %v1559
    %1633 = vmatpush.bf16.msra.mxu0 %v1555
    %1634 = vmatpush.bf16.msra.mxu0 %v1551
    %1635 = vmatmul.bf16.gmra.mxu0 %v1421
    %v1636 = vpop.f32.mrf.mxu0
    %v1637 = vadd.f32 0.0, %v1636
    %v1638 = vpop.f32.mrf.mxu0
    %1639 = vdwg.mxu0
    %1640 = vmatpush.bf16.msra.mxu0 %v1580
    %1641 = vmatpush.bf16.msra.mxu0 %v1576
    %1642 = vmatpush.bf16.msra.mxu0 %v1572
    %1643 = vmatpush.bf16.msra.mxu0 %v1568
    %1644 = vmatpush.bf16.msra.mxu0 %v1564
    %1645 = vmatpush.bf16.msra.mxu0 %v1560
    %1646 = vmatpush.bf16.msra.mxu0 %v1556
    %1647 = vmatpush.bf16.msra.mxu0 %v1552
    %1648 = vmatmul.bf16.gmra.mxu0 %v1421
    %v1649 = vpop.f32.mrf.mxu0
    %v1650 = vadd.f32 0.0, %v1649
    %v1651 = vpop.f32.mrf.mxu0
    %1652 = vdwg.mxu0
    %1653 = vmatpush.bf16.msra.mxu0 %v1581
    %1654 = vmatpush.bf16.msra.mxu0 %v1577
    %1655 = vmatpush.bf16.msra.mxu0 %v1573
    %1656 = vmatpush.bf16.msra.mxu0 %v1569
    %1657 = vmatpush.bf16.msra.mxu0 %v1565
    %1658 = vmatpush.bf16.msra.mxu0 %v1561
    %1659 = vmatpush.bf16.msra.mxu0 %v1557
    %1660 = vmatpush.bf16.msra.mxu0 %v1553
    %1661 = vmatmul.bf16.gmra.mxu0 %v1421
    %v1662 = vpop.f32.mrf.mxu0
    %v1663 = vadd.f32 0.0, %v1662
    %v1664 = vpop.f32.mrf.mxu0
    %1665 = vdwg.mxu0
    %v1666 = vadd.f32 %v1417, %v1624
    %v1667 = vadd.f32 %v1418, %v1637
    %v1668 = vadd.f32 %v1419, %v1650
    %v1669 = vadd.f32 %v1420, %v1663
    %v1670 = vxor.u32 %v1666, 2147483648
    %v1671 = vmul.f32 %v1670, 1.442695
    %v1672 = vpow.pop %v1671
    %v1673 = vadd.f32 %v1672, 1.0
    %v1674 = vrcp.pop %v1673
    %v1675 = vmul.f32 %v1673, %v1674
    %v1676 = vsub.f32 1.0, %v1675
    %v1677 = vmul.f32 %v1674, %v1676
    %v1678 = vadd.f32 %v1674, %v1677
    %vm1679 = vweird.f32 %v1673
    %vm1680 = vweird.f32 %v1674
    %vm1681 = vmor %vm1679, %vm1680
    %v1682 = vsel %vm1681, %v1674, %v1678
    %v1683 = vand.u32 2147483647, %v1673
    %vm1684 = vcmp.eq.f32.partialorder %v1683, 8.507059e+37
    %v1685 = vand.u32 %v1673, 2147483648
    %v1686 = vor.u32 1.1754944e-38, %v1685
    %v1687 = vsel %vm1684, %v1686, %v1682
    %v1688 = vmul.f32 1.0, %v1687
    %v1689 = vxor.u32 %v1667, 2147483648
    %v1690 = vmul.f32 %v1689, 1.442695
    %v1691 = vpow.pop %v1690
    %v1692 = vadd.f32 %v1691, 1.0
    %v1693 = vrcp.pop %v1692
    %v1694 = vmul.f32 %v1692, %v1693
    %v1695 = vsub.f32 1.0, %v1694
    %v1696 = vmul.f32 %v1693, %v1695
    %v1697 = vadd.f32 %v1693, %v1696
    %vm1698 = vweird.f32 %v1692
    %vm1699 = vweird.f32 %v1693
    %vm1700 = vmor %vm1698, %vm1699
    %v1701 = vsel %vm1700, %v1693, %v1697
    %v1702 = vand.u32 2147483647, %v1692
    %vm1703 = vcmp.eq.f32.partialorder %v1702, 8.507059e+37
    %v1704 = vand.u32 %v1692, 2147483648
    %v1705 = vor.u32 1.1754944e-38, %v1704
    %v1706 = vsel %vm1703, %v1705, %v1701
    %v1707 = vmul.f32 1.0, %v1706
    %v1708 = vtanh.pop %v1668
    %v1709 = vxor.u32 %v1669, 2147483648
    %v1710 = vmul.f32 %v1709, 1.442695
    %v1711 = vpow.pop %v1710
    %v1712 = vadd.f32 %v1711, 1.0
    %v1713 = vrcp.pop %v1712
    %v1714 = vmul.f32 %v1712, %v1713
    %v1715 = vsub.f32 1.0, %v1714
    %v1716 = vmul.f32 %v1713, %v1715
    %v1717 = vadd.f32 %v1713, %v1716
    %vm1718 = vweird.f32 %v1712
    %vm1719 = vweird.f32 %v1713
    %vm1720 = vmor %vm1718, %vm1719
    %v1721 = vsel %vm1720, %v1713, %v1717
    %v1722 = vand.u32 2147483647, %v1712
    %vm1723 = vcmp.eq.f32.partialorder %v1722, 8.507059e+37
    %v1724 = vand.u32 %v1712, 2147483648
    %v1725 = vor.u32 1.1754944e-38, %v1724
    %v1726 = vsel %vm1723, %v1725, %v1721
    %v1727 = vmul.f32 1.0, %v1726
    %v1728 = vld [vmem:[#allocation5] sm:$0xff]
    %v1729 = vmul.f32 %v1707, %v1728
    %v1730 = vmul.f32 %v1688, %v1708
    %v1731 = vadd.f32 %v1729, %v1730
    %v1732 = vtanh.pop %v1731
    %v1733 = vmul.f32 %v1727, %v1732
    %1734 = vst [vmem:[#allocation5] sm:$0xff] %v1731
    %v1735 = vpack.c.bf16 %v1733, %v1733
    %1736 = vst [vmem:[#allocation4] sm:$0xf] %v1735
    %s1737 = scalar_lea.vmem [#allocation3], 24
    %1738 = vst [vmem:[%s1737] sm:$0xff] %v1733
    %s1739 = smul.u32 4, 4
    %s1740 = smul.addr %s1739, 8
    %s1741 = scalar_lea.vmem [#allocation2], %s1740
    %v1742 = vld [vmem:[%s1741] sm:$0xff]
    %v1743 = vld [vmem:[%s1741 + $0x8] sm:$0xff]
    %v1744 = vld [vmem:[%s1741 + $0x10] sm:$0xff]
    %v1745 = vld [vmem:[%s1741 + $0x18] sm:$0xff]
    %v1746 = vld [vmem:[#allocation4] sm:$0xf]
    %v1747 = vld [vmem:[#allocation7] sm:$0xff]
    %v1748 = vld [vmem:[#allocation7 + $0x8] sm:$0xff]
    %v1749 = vld [vmem:[#allocation7 + $0x10] sm:$0xff]
    %v1750 = vld [vmem:[#allocation7 + $0x18] sm:$0xff]
    %v1751 = vld [vmem:[#allocation7 + $0x20] sm:$0xff]
    %v1752 = vld [vmem:[#allocation7 + $0x28] sm:$0xff]
    %v1753 = vld [vmem:[#allocation7 + $0x30] sm:$0xff]
    %v1754 = vld [vmem:[#allocation7 + $0x38] sm:$0xff]
    %v1755 = vld [vmem:[#allocation7 + $0x40] sm:$0xff]
    %v1756 = vld [vmem:[#allocation7 + $0x48] sm:$0xff]
    %v1757 = vld [vmem:[#allocation7 + $0x50] sm:$0xff]
    %v1758 = vld [vmem:[#allocation7 + $0x58] sm:$0xff]
    %v1759 = vld [vmem:[#allocation7 + $0x60] sm:$0xff]
    %v1760 = vld [vmem:[#allocation7 + $0x68] sm:$0xff]
    %v1761 = vld [vmem:[#allocation7 + $0x70] sm:$0xff]
    %v1762 = vld [vmem:[#allocation7 + $0x78] sm:$0xff]
    %v1763 = vld [vmem:[#allocation7 + $0x80] sm:$0xff]
    %v1764 = vld [vmem:[#allocation7 + $0x88] sm:$0xff]
    %v1765 = vld [vmem:[#allocation7 + $0x90] sm:$0xff]
    %v1766 = vld [vmem:[#allocation7 + $0x98] sm:$0xff]
    %v1767 = vld [vmem:[#allocation7 + $0xa0] sm:$0xff]
    %v1768 = vld [vmem:[#allocation7 + $0xa8] sm:$0xff]
    %v1769 = vld [vmem:[#allocation7 + $0xb0] sm:$0xff]
    %v1770 = vld [vmem:[#allocation7 + $0xb8] sm:$0xff]
    %v1771 = vld [vmem:[#allocation7 + $0xc0] sm:$0xff]
    %v1772 = vld [vmem:[#allocation7 + $0xc8] sm:$0xff]
    %v1773 = vld [vmem:[#allocation7 + $0xd0] sm:$0xff]
    %v1774 = vld [vmem:[#allocation7 + $0xd8] sm:$0xff]
    %v1775 = vld [vmem:[#allocation7 + $0xe0] sm:$0xff]
    %v1776 = vld [vmem:[#allocation7 + $0xe8] sm:$0xff]
    %v1777 = vld [vmem:[#allocation7 + $0xf0] sm:$0xff]
    %v1778 = vld [vmem:[#allocation7 + $0xf8] sm:$0xff]
    %v1811 = vunpack.c.l.b16 %v1747
    %v1812 = vunpack.c.h.b16 %v1747
    %v1813 = vunpack.c.l.b16 %v1748
    %v1814 = vunpack.c.h.b16 %v1748
    %v1815 = vunpack.c.l.b16 %v1749
    %v1816 = vunpack.c.h.b16 %v1749
    %v1817 = vunpack.c.l.b16 %v1750
    %v1818 = vunpack.c.h.b16 %v1750
    %v1819 = vunpack.c.l.b16 %v1751
    %v1820 = vunpack.c.h.b16 %v1751
    %v1821 = vunpack.c.l.b16 %v1752
    %v1822 = vunpack.c.h.b16 %v1752
    %v1823 = vunpack.c.l.b16 %v1753
    %v1824 = vunpack.c.h.b16 %v1753
    %v1825 = vunpack.c.l.b16 %v1754
    %v1826 = vunpack.c.h.b16 %v1754
    %v1827 = vunpack.c.l.b16 %v1755
    %v1828 = vunpack.c.h.b16 %v1755
    %v1829 = vunpack.c.l.b16 %v1756
    %v1830 = vunpack.c.h.b16 %v1756
    %v1831 = vunpack.c.l.b16 %v1757
    %v1832 = vunpack.c.h.b16 %v1757
    %v1833 = vunpack.c.l.b16 %v1758
    %v1834 = vunpack.c.h.b16 %v1758
    %v1835 = vunpack.c.l.b16 %v1759
    %v1836 = vunpack.c.h.b16 %v1759
    %v1837 = vunpack.c.l.b16 %v1760
    %v1838 = vunpack.c.h.b16 %v1760
    %v1839 = vunpack.c.l.b16 %v1761
    %v1840 = vunpack.c.h.b16 %v1761
    %v1841 = vunpack.c.l.b16 %v1762
    %v1842 = vunpack.c.h.b16 %v1762
    %v1843 = vunpack.c.l.b16 %v1763
    %v1844 = vunpack.c.h.b16 %v1763
    %v1845 = vunpack.c.l.b16 %v1764
    %v1846 = vunpack.c.h.b16 %v1764
    %v1847 = vunpack.c.l.b16 %v1765
    %v1848 = vunpack.c.h.b16 %v1765
    %v1849 = vunpack.c.l.b16 %v1766
    %v1850 = vunpack.c.h.b16 %v1766
    %v1851 = vunpack.c.l.b16 %v1767
    %v1852 = vunpack.c.h.b16 %v1767
    %v1853 = vunpack.c.l.b16 %v1768
    %v1854 = vunpack.c.h.b16 %v1768
    %v1855 = vunpack.c.l.b16 %v1769
    %v1856 = vunpack.c.h.b16 %v1769
    %v1857 = vunpack.c.l.b16 %v1770
    %v1858 = vunpack.c.h.b16 %v1770
    %v1859 = vunpack.c.l.b16 %v1771
    %v1860 = vunpack.c.h.b16 %v1771
    %v1861 = vunpack.c.l.b16 %v1772
    %v1862 = vunpack.c.h.b16 %v1772
    %v1863 = vunpack.c.l.b16 %v1773
    %v1864 = vunpack.c.h.b16 %v1773
    %v1865 = vunpack.c.l.b16 %v1774
    %v1866 = vunpack.c.h.b16 %v1774
    %v1867 = vunpack.c.l.b16 %v1775
    %v1868 = vunpack.c.h.b16 %v1775
    %v1869 = vunpack.c.l.b16 %v1776
    %v1870 = vunpack.c.h.b16 %v1776
    %v1871 = vunpack.c.l.b16 %v1777
    %v1872 = vunpack.c.h.b16 %v1777
    %v1873 = vunpack.c.l.b16 %v1778
    %v1874 = vunpack.c.h.b16 %v1778
    %v1875 = vpack.c.b16 %v1815, %v1811
    %v1876 = vpack.c.b16 %v1816, %v1812
    %v1877 = vpack.c.b16 %v1817, %v1813
    %v1878 = vpack.c.b16 %v1818, %v1814
    %v1879 = vpack.c.b16 %v1823, %v1819
    %v1880 = vpack.c.b16 %v1824, %v1820
    %v1881 = vpack.c.b16 %v1825, %v1821
    %v1882 = vpack.c.b16 %v1826, %v1822
    %v1883 = vpack.c.b16 %v1831, %v1827
    %v1884 = vpack.c.b16 %v1832, %v1828
    %v1885 = vpack.c.b16 %v1833, %v1829
    %v1886 = vpack.c.b16 %v1834, %v1830
    %v1887 = vpack.c.b16 %v1839, %v1835
    %v1888 = vpack.c.b16 %v1840, %v1836
    %v1889 = vpack.c.b16 %v1841, %v1837
    %v1890 = vpack.c.b16 %v1842, %v1838
    %v1891 = vpack.c.b16 %v1847, %v1843
    %v1892 = vpack.c.b16 %v1848, %v1844
    %v1893 = vpack.c.b16 %v1849, %v1845
    %v1894 = vpack.c.b16 %v1850, %v1846
    %v1895 = vpack.c.b16 %v1855, %v1851
    %v1896 = vpack.c.b16 %v1856, %v1852
    %v1897 = vpack.c.b16 %v1857, %v1853
    %v1898 = vpack.c.b16 %v1858, %v1854
    %v1899 = vpack.c.b16 %v1863, %v1859
    %v1900 = vpack.c.b16 %v1864, %v1860
    %v1901 = vpack.c.b16 %v1865, %v1861
    %v1902 = vpack.c.b16 %v1866, %v1862
    %v1903 = vpack.c.b16 %v1871, %v1867
    %v1904 = vpack.c.b16 %v1872, %v1868
    %v1905 = vpack.c.b16 %v1873, %v1869
    %v1906 = vpack.c.b16 %v1874, %v1870
    %1939 = vmatpush.bf16.msra.mxu0 %v1903
    %1940 = vmatpush.bf16.msra.mxu0 %v1899
    %1941 = vmatpush.bf16.msra.mxu0 %v1895
    %1942 = vmatpush.bf16.msra.mxu0 %v1891
    %1943 = vmatpush.bf16.msra.mxu0 %v1887
    %1944 = vmatpush.bf16.msra.mxu0 %v1883
    %1945 = vmatpush.bf16.msra.mxu0 %v1879
    %1946 = vmatpush.bf16.msra.mxu0 %v1875
    %1947 = vmatmul.bf16.gmra.mxu0 %v1746
    %v1948 = vpop.f32.mrf.mxu0
    %v1949 = vadd.f32 0.0, %v1948
    %v1950 = vpop.f32.mrf.mxu0
    %1951 = vdwg.mxu0
    %1952 = vmatpush.bf16.msra.mxu0 %v1904
    %1953 = vmatpush.bf16.msra.mxu0 %v1900
    %1954 = vmatpush.bf16.msra.mxu0 %v1896
    %1955 = vmatpush.bf16.msra.mxu0 %v1892
    %1956 = vmatpush.bf16.msra.mxu0 %v1888
    %1957 = vmatpush.bf16.msra.mxu0 %v1884
    %1958 = vmatpush.bf16.msra.mxu0 %v1880
    %1959 = vmatpush.bf16.msra.mxu0 %v1876
    %1960 = vmatmul.bf16.gmra.mxu0 %v1746
    %v1961 = vpop.f32.mrf.mxu0
    %v1962 = vadd.f32 0.0, %v1961
    %v1963 = vpop.f32.mrf.mxu0
    %1964 = vdwg.mxu0
    %1965 = vmatpush.bf16.msra.mxu0 %v1905
    %1966 = vmatpush.bf16.msra.mxu0 %v1901
    %1967 = vmatpush.bf16.msra.mxu0 %v1897
    %1968 = vmatpush.bf16.msra.mxu0 %v1893
    %1969 = vmatpush.bf16.msra.mxu0 %v1889
    %1970 = vmatpush.bf16.msra.mxu0 %v1885
    %1971 = vmatpush.bf16.msra.mxu0 %v1881
    %1972 = vmatpush.bf16.msra.mxu0 %v1877
    %1973 = vmatmul.bf16.gmra.mxu0 %v1746
    %v1974 = vpop.f32.mrf.mxu0
    %v1975 = vadd.f32 0.0, %v1974
    %v1976 = vpop.f32.mrf.mxu0
    %1977 = vdwg.mxu0
    %1978 = vmatpush.bf16.msra.mxu0 %v1906
    %1979 = vmatpush.bf16.msra.mxu0 %v1902
    %1980 = vmatpush.bf16.msra.mxu0 %v1898
    %1981 = vmatpush.bf16.msra.mxu0 %v1894
    %1982 = vmatpush.bf16.msra.mxu0 %v1890
    %1983 = vmatpush.bf16.msra.mxu0 %v1886
    %1984 = vmatpush.bf16.msra.mxu0 %v1882
    %1985 = vmatpush.bf16.msra.mxu0 %v1878
    %1986 = vmatmul.bf16.gmra.mxu0 %v1746
    %v1987 = vpop.f32.mrf.mxu0
    %v1988 = vadd.f32 0.0, %v1987
    %v1989 = vpop.f32.mrf.mxu0
    %1990 = vdwg.mxu0
    %v1991 = vadd.f32 %v1742, %v1949
    %v1992 = vadd.f32 %v1743, %v1962
    %v1993 = vadd.f32 %v1744, %v1975
    %v1994 = vadd.f32 %v1745, %v1988
    %v1995 = vxor.u32 %v1991, 2147483648
    %v1996 = vmul.f32 %v1995, 1.442695
    %v1997 = vpow.pop %v1996
    %v1998 = vadd.f32 %v1997, 1.0
    %v1999 = vrcp.pop %v1998
    %v2000 = vmul.f32 %v1998, %v1999
    %v2001 = vsub.f32 1.0, %v2000
    %v2002 = vmul.f32 %v1999, %v2001
    %v2003 = vadd.f32 %v1999, %v2002
    %vm2004 = vweird.f32 %v1998
    %vm2005 = vweird.f32 %v1999
    %vm2006 = vmor %vm2004, %vm2005
    %v2007 = vsel %vm2006, %v1999, %v2003
    %v2008 = vand.u32 2147483647, %v1998
    %vm2009 = vcmp.eq.f32.partialorder %v2008, 8.507059e+37
    %v2010 = vand.u32 %v1998, 2147483648
    %v2011 = vor.u32 1.1754944e-38, %v2010
    %v2012 = vsel %vm2009, %v2011, %v2007
    %v2013 = vmul.f32 1.0, %v2012
    %v2014 = vxor.u32 %v1992, 2147483648
    %v2015 = vmul.f32 %v2014, 1.442695
    %v2016 = vpow.pop %v2015
    %v2017 = vadd.f32 %v2016, 1.0
    %v2018 = vrcp.pop %v2017
    %v2019 = vmul.f32 %v2017, %v2018
    %v2020 = vsub.f32 1.0, %v2019
    %v2021 = vmul.f32 %v2018, %v2020
    %v2022 = vadd.f32 %v2018, %v2021
    %vm2023 = vweird.f32 %v2017
    %vm2024 = vweird.f32 %v2018
    %vm2025 = vmor %vm2023, %vm2024
    %v2026 = vsel %vm2025, %v2018, %v2022
    %v2027 = vand.u32 2147483647, %v2017
    %vm2028 = vcmp.eq.f32.partialorder %v2027, 8.507059e+37
    %v2029 = vand.u32 %v2017, 2147483648
    %v2030 = vor.u32 1.1754944e-38, %v2029
    %v2031 = vsel %vm2028, %v2030, %v2026
    %v2032 = vmul.f32 1.0, %v2031
    %v2033 = vtanh.pop %v1993
    %v2034 = vxor.u32 %v1994, 2147483648
    %v2035 = vmul.f32 %v2034, 1.442695
    %v2036 = vpow.pop %v2035
    %v2037 = vadd.f32 %v2036, 1.0
    %v2038 = vrcp.pop %v2037
    %v2039 = vmul.f32 %v2037, %v2038
    %v2040 = vsub.f32 1.0, %v2039
    %v2041 = vmul.f32 %v2038, %v2040
    %v2042 = vadd.f32 %v2038, %v2041
    %vm2043 = vweird.f32 %v2037
    %vm2044 = vweird.f32 %v2038
    %vm2045 = vmor %vm2043, %vm2044
    %v2046 = vsel %vm2045, %v2038, %v2042
    %v2047 = vand.u32 2147483647, %v2037
    %vm2048 = vcmp.eq.f32.partialorder %v2047, 8.507059e+37
    %v2049 = vand.u32 %v2037, 2147483648
    %v2050 = vor.u32 1.1754944e-38, %v2049
    %v2051 = vsel %vm2048, %v2050, %v2046
    %v2052 = vmul.f32 1.0, %v2051
    %v2053 = vld [vmem:[#allocation5] sm:$0xff]
    %v2054 = vmul.f32 %v2032, %v2053
    %v2055 = vmul.f32 %v2013, %v2033
    %v2056 = vadd.f32 %v2054, %v2055
    %v2057 = vtanh.pop %v2056
    %v2058 = vmul.f32 %v2052, %v2057
    %2059 = vst [vmem:[#allocation5] sm:$0xff] %v2056
    %v2060 = vpack.c.bf16 %v2058, %v2058
    %2061 = vst [vmem:[#allocation4] sm:$0xf] %v2060
    %s2062 = scalar_lea.vmem [#allocation3], 32
    %2063 = vst [vmem:[%s2062] sm:$0xff] %v2058
    %s2064 = smul.u32 5, 4
    %s2065 = smul.addr %s2064, 8
    %s2066 = scalar_lea.vmem [#allocation2], %s2065
    %v2067 = vld [vmem:[%s2066] sm:$0xff]
    %v2068 = vld [vmem:[%s2066 + $0x8] sm:$0xff]
    %v2069 = vld [vmem:[%s2066 + $0x10] sm:$0xff]
    %v2070 = vld [vmem:[%s2066 + $0x18] sm:$0xff]
    %v2071 = vld [vmem:[#allocation4] sm:$0xf]
    %v2072 = vld [vmem:[#allocation7] sm:$0xff]
    %v2073 = vld [vmem:[#allocation7 + $0x8] sm:$0xff]
    %v2074 = vld [vmem:[#allocation7 + $0x10] sm:$0xff]
    %v2075 = vld [vmem:[#allocation7 + $0x18] sm:$0xff]
    %v2076 = vld [vmem:[#allocation7 + $0x20] sm:$0xff]
    %v2077 = vld [vmem:[#allocation7 + $0x28] sm:$0xff]
    %v2078 = vld [vmem:[#allocation7 + $0x30] sm:$0xff]
    %v2079 = vld [vmem:[#allocation7 + $0x38] sm:$0xff]
    %v2080 = vld [vmem:[#allocation7 + $0x40] sm:$0xff]
    %v2081 = vld [vmem:[#allocation7 + $0x48] sm:$0xff]
    %v2082 = vld [vmem:[#allocation7 + $0x50] sm:$0xff]
    %v2083 = vld [vmem:[#allocation7 + $0x58] sm:$0xff]
    %v2084 = vld [vmem:[#allocation7 + $0x60] sm:$0xff]
    %v2085 = vld [vmem:[#allocation7 + $0x68] sm:$0xff]
    %v2086 = vld [vmem:[#allocation7 + $0x70] sm:$0xff]
    %v2087 = vld [vmem:[#allocation7 + $0x78] sm:$0xff]
    %v2088 = vld [vmem:[#allocation7 + $0x80] sm:$0xff]
    %v2089 = vld [vmem:[#allocation7 + $0x88] sm:$0xff]
    %v2090 = vld [vmem:[#allocation7 + $0x90] sm:$0xff]
    %v2091 = vld [vmem:[#allocation7 + $0x98] sm:$0xff]
    %v2092 = vld [vmem:[#allocation7 + $0xa0] sm:$0xff]
    %v2093 = vld [vmem:[#allocation7 + $0xa8] sm:$0xff]
    %v2094 = vld [vmem:[#allocation7 + $0xb0] sm:$0xff]
    %v2095 = vld [vmem:[#allocation7 + $0xb8] sm:$0xff]
    %v2096 = vld [vmem:[#allocation7 + $0xc0] sm:$0xff]
    %v2097 = vld [vmem:[#allocation7 + $0xc8] sm:$0xff]
    %v2098 = vld [vmem:[#allocation7 + $0xd0] sm:$0xff]
    %v2099 = vld [vmem:[#allocation7 + $0xd8] sm:$0xff]
    %v2100 = vld [vmem:[#allocation7 + $0xe0] sm:$0xff]
    %v2101 = vld [vmem:[#allocation7 + $0xe8] sm:$0xff]
    %v2102 = vld [vmem:[#allocation7 + $0xf0] sm:$0xff]
    %v2103 = vld [vmem:[#allocation7 + $0xf8] sm:$0xff]
    %v2136 = vunpack.c.l.b16 %v2072
    %v2137 = vunpack.c.h.b16 %v2072
    %v2138 = vunpack.c.l.b16 %v2073
    %v2139 = vunpack.c.h.b16 %v2073
    %v2140 = vunpack.c.l.b16 %v2074
    %v2141 = vunpack.c.h.b16 %v2074
    %v2142 = vunpack.c.l.b16 %v2075
    %v2143 = vunpack.c.h.b16 %v2075
    %v2144 = vunpack.c.l.b16 %v2076
    %v2145 = vunpack.c.h.b16 %v2076
    %v2146 = vunpack.c.l.b16 %v2077
    %v2147 = vunpack.c.h.b16 %v2077
    %v2148 = vunpack.c.l.b16 %v2078
    %v2149 = vunpack.c.h.b16 %v2078
    %v2150 = vunpack.c.l.b16 %v2079
    %v2151 = vunpack.c.h.b16 %v2079
    %v2152 = vunpack.c.l.b16 %v2080
    %v2153 = vunpack.c.h.b16 %v2080
    %v2154 = vunpack.c.l.b16 %v2081
    %v2155 = vunpack.c.h.b16 %v2081
    %v2156 = vunpack.c.l.b16 %v2082
    %v2157 = vunpack.c.h.b16 %v2082
    %v2158 = vunpack.c.l.b16 %v2083
    %v2159 = vunpack.c.h.b16 %v2083
    %v2160 = vunpack.c.l.b16 %v2084
    %v2161 = vunpack.c.h.b16 %v2084
    %v2162 = vunpack.c.l.b16 %v2085
    %v2163 = vunpack.c.h.b16 %v2085
    %v2164 = vunpack.c.l.b16 %v2086
    %v2165 = vunpack.c.h.b16 %v2086
    %v2166 = vunpack.c.l.b16 %v2087
    %v2167 = vunpack.c.h.b16 %v2087
    %v2168 = vunpack.c.l.b16 %v2088
    %v2169 = vunpack.c.h.b16 %v2088
    %v2170 = vunpack.c.l.b16 %v2089
    %v2171 = vunpack.c.h.b16 %v2089
    %v2172 = vunpack.c.l.b16 %v2090
    %v2173 = vunpack.c.h.b16 %v2090
    %v2174 = vunpack.c.l.b16 %v2091
    %v2175 = vunpack.c.h.b16 %v2091
    %v2176 = vunpack.c.l.b16 %v2092
    %v2177 = vunpack.c.h.b16 %v2092
    %v2178 = vunpack.c.l.b16 %v2093
    %v2179 = vunpack.c.h.b16 %v2093
    %v2180 = vunpack.c.l.b16 %v2094
    %v2181 = vunpack.c.h.b16 %v2094
    %v2182 = vunpack.c.l.b16 %v2095
    %v2183 = vunpack.c.h.b16 %v2095
    %v2184 = vunpack.c.l.b16 %v2096
    %v2185 = vunpack.c.h.b16 %v2096
    %v2186 = vunpack.c.l.b16 %v2097
    %v2187 = vunpack.c.h.b16 %v2097
    %v2188 = vunpack.c.l.b16 %v2098
    %v2189 = vunpack.c.h.b16 %v2098
    %v2190 = vunpack.c.l.b16 %v2099
    %v2191 = vunpack.c.h.b16 %v2099
    %v2192 = vunpack.c.l.b16 %v2100
    %v2193 = vunpack.c.h.b16 %v2100
    %v2194 = vunpack.c.l.b16 %v2101
    %v2195 = vunpack.c.h.b16 %v2101
    %v2196 = vunpack.c.l.b16 %v2102
    %v2197 = vunpack.c.h.b16 %v2102
    %v2198 = vunpack.c.l.b16 %v2103
    %v2199 = vunpack.c.h.b16 %v2103
    %v2200 = vpack.c.b16 %v2140, %v2136
    %v2201 = vpack.c.b16 %v2141, %v2137
    %v2202 = vpack.c.b16 %v2142, %v2138
    %v2203 = vpack.c.b16 %v2143, %v2139
    %v2204 = vpack.c.b16 %v2148, %v2144
    %v2205 = vpack.c.b16 %v2149, %v2145
    %v2206 = vpack.c.b16 %v2150, %v2146
    %v2207 = vpack.c.b16 %v2151, %v2147
    %v2208 = vpack.c.b16 %v2156, %v2152
    %v2209 = vpack.c.b16 %v2157, %v2153
    %v2210 = vpack.c.b16 %v2158, %v2154
    %v2211 = vpack.c.b16 %v2159, %v2155
    %v2212 = vpack.c.b16 %v2164, %v2160
    %v2213 = vpack.c.b16 %v2165, %v2161
    %v2214 = vpack.c.b16 %v2166, %v2162
    %v2215 = vpack.c.b16 %v2167, %v2163
    %v2216 = vpack.c.b16 %v2172, %v2168
    %v2217 = vpack.c.b16 %v2173, %v2169
    %v2218 = vpack.c.b16 %v2174, %v2170
    %v2219 = vpack.c.b16 %v2175, %v2171
    %v2220 = vpack.c.b16 %v2180, %v2176
    %v2221 = vpack.c.b16 %v2181, %v2177
    %v2222 = vpack.c.b16 %v2182, %v2178
    %v2223 = vpack.c.b16 %v2183, %v2179
    %v2224 = vpack.c.b16 %v2188, %v2184
    %v2225 = vpack.c.b16 %v2189, %v2185
    %v2226 = vpack.c.b16 %v2190, %v2186
    %v2227 = vpack.c.b16 %v2191, %v2187
    %v2228 = vpack.c.b16 %v2196, %v2192
    %v2229 = vpack.c.b16 %v2197, %v2193
    %v2230 = vpack.c.b16 %v2198, %v2194
    %v2231 = vpack.c.b16 %v2199, %v2195
    %2264 = vmatpush.bf16.msra.mxu0 %v2228
    %2265 = vmatpush.bf16.msra.mxu0 %v2224
    %2266 = vmatpush.bf16.msra.mxu0 %v2220
    %2267 = vmatpush.bf16.msra.mxu0 %v2216
    %2268 = vmatpush.bf16.msra.mxu0 %v2212
    %2269 = vmatpush.bf16.msra.mxu0 %v2208
    %2270 = vmatpush.bf16.msra.mxu0 %v2204
    %2271 = vmatpush.bf16.msra.mxu0 %v2200
    %2272 = vmatmul.bf16.gmra.mxu0 %v2071
    %v2273 = vpop.f32.mrf.mxu0
    %v2274 = vadd.f32 0.0, %v2273
    %v2275 = vpop.f32.mrf.mxu0
    %2276 = vdwg.mxu0
    %2277 = vmatpush.bf16.msra.mxu0 %v2229
    %2278 = vmatpush.bf16.msra.mxu0 %v2225
    %2279 = vmatpush.bf16.msra.mxu0 %v2221
    %2280 = vmatpush.bf16.msra.mxu0 %v2217
    %2281 = vmatpush.bf16.msra.mxu0 %v2213
    %2282 = vmatpush.bf16.msra.mxu0 %v2209
    %2283 = vmatpush.bf16.msra.mxu0 %v2205
    %2284 = vmatpush.bf16.msra.mxu0 %v2201
    %2285 = vmatmul.bf16.gmra.mxu0 %v2071
    %v2286 = vpop.f32.mrf.mxu0
    %v2287 = vadd.f32 0.0, %v2286
    %v2288 = vpop.f32.mrf.mxu0
    %2289 = vdwg.mxu0
    %2290 = vmatpush.bf16.msra.mxu0 %v2230
    %2291 = vmatpush.bf16.msra.mxu0 %v2226
    %2292 = vmatpush.bf16.msra.mxu0 %v2222
    %2293 = vmatpush.bf16.msra.mxu0 %v2218
    %2294 = vmatpush.bf16.msra.mxu0 %v2214
    %2295 = vmatpush.bf16.msra.mxu0 %v2210
    %2296 = vmatpush.bf16.msra.mxu0 %v2206
    %2297 = vmatpush.bf16.msra.mxu0 %v2202
    %2298 = vmatmul.bf16.gmra.mxu0 %v2071
    %v2299 = vpop.f32.mrf.mxu0
    %v2300 = vadd.f32 0.0, %v2299
    %v2301 = vpop.f32.mrf.mxu0
    %2302 = vdwg.mxu0
    %2303 = vmatpush.bf16.msra.mxu0 %v2231
    %2304 = vmatpush.bf16.msra.mxu0 %v2227
    %2305 = vmatpush.bf16.msra.mxu0 %v2223
    %2306 = vmatpush.bf16.msra.mxu0 %v2219
    %2307 = vmatpush.bf16.msra.mxu0 %v2215
    %2308 = vmatpush.bf16.msra.mxu0 %v2211
    %2309 = vmatpush.bf16.msra.mxu0 %v2207
    %2310 = vmatpush.bf16.msra.mxu0 %v2203
    %2311 = vmatmul.bf16.gmra.mxu0 %v2071
    %v2312 = vpop.f32.mrf.mxu0
    %v2313 = vadd.f32 0.0, %v2312
    %v2314 = vpop.f32.mrf.mxu0
    %2315 = vdwg.mxu0
    %v2316 = vadd.f32 %v2067, %v2274
    %v2317 = vadd.f32 %v2068, %v2287
    %v2318 = vadd.f32 %v2069, %v2300
    %v2319 = vadd.f32 %v2070, %v2313
    %v2320 = vxor.u32 %v2316, 2147483648
    %v2321 = vmul.f32 %v2320, 1.442695
    %v2322 = vpow.pop %v2321
    %v2323 = vadd.f32 %v2322, 1.0
    %v2324 = vrcp.pop %v2323
    %v2325 = vmul.f32 %v2323, %v2324
    %v2326 = vsub.f32 1.0, %v2325
    %v2327 = vmul.f32 %v2324, %v2326
    %v2328 = vadd.f32 %v2324, %v2327
    %vm2329 = vweird.f32 %v2323
    %vm2330 = vweird.f32 %v2324
    %vm2331 = vmor %vm2329, %vm2330
    %v2332 = vsel %vm2331, %v2324, %v2328
    %v2333 = vand.u32 2147483647, %v2323
    %vm2334 = vcmp.eq.f32.partialorder %v2333, 8.507059e+37
    %v2335 = vand.u32 %v2323, 2147483648
    %v2336 = vor.u32 1.1754944e-38, %v2335
    %v2337 = vsel %vm2334, %v2336, %v2332
    %v2338 = vmul.f32 1.0, %v2337
    %v2339 = vxor.u32 %v2317, 2147483648
    %v2340 = vmul.f32 %v2339, 1.442695
    %v2341 = vpow.pop %v2340
    %v2342 = vadd.f32 %v2341, 1.0
    %v2343 = vrcp.pop %v2342
    %v2344 = vmul.f32 %v2342, %v2343
    %v2345 = vsub.f32 1.0, %v2344
    %v2346 = vmul.f32 %v2343, %v2345
    %v2347 = vadd.f32 %v2343, %v2346
    %vm2348 = vweird.f32 %v2342
    %vm2349 = vweird.f32 %v2343
    %vm2350 = vmor %vm2348, %vm2349
    %v2351 = vsel %vm2350, %v2343, %v2347
    %v2352 = vand.u32 2147483647, %v2342
    %vm2353 = vcmp.eq.f32.partialorder %v2352, 8.507059e+37
    %v2354 = vand.u32 %v2342, 2147483648
    %v2355 = vor.u32 1.1754944e-38, %v2354
    %v2356 = vsel %vm2353, %v2355, %v2351
    %v2357 = vmul.f32 1.0, %v2356
    %v2358 = vtanh.pop %v2318
    %v2359 = vxor.u32 %v2319, 2147483648
    %v2360 = vmul.f32 %v2359, 1.442695
    %v2361 = vpow.pop %v2360
    %v2362 = vadd.f32 %v2361, 1.0
    %v2363 = vrcp.pop %v2362
    %v2364 = vmul.f32 %v2362, %v2363
    %v2365 = vsub.f32 1.0, %v2364
    %v2366 = vmul.f32 %v2363, %v2365
    %v2367 = vadd.f32 %v2363, %v2366
    %vm2368 = vweird.f32 %v2362
    %vm2369 = vweird.f32 %v2363
    %vm2370 = vmor %vm2368, %vm2369
    %v2371 = vsel %vm2370, %v2363, %v2367
    %v2372 = vand.u32 2147483647, %v2362
    %vm2373 = vcmp.eq.f32.partialorder %v2372, 8.507059e+37
    %v2374 = vand.u32 %v2362, 2147483648
    %v2375 = vor.u32 1.1754944e-38, %v2374
    %v2376 = vsel %vm2373, %v2375, %v2371
    %v2377 = vmul.f32 1.0, %v2376
    %v2378 = vld [vmem:[#allocation5] sm:$0xff]
    %v2379 = vmul.f32 %v2357, %v2378
    %v2380 = vmul.f32 %v2338, %v2358
    %v2381 = vadd.f32 %v2379, %v2380
    %v2382 = vtanh.pop %v2381
    %v2383 = vmul.f32 %v2377, %v2382
    %2384 = vst [vmem:[#allocation5] sm:$0xff] %v2381
    %v2385 = vpack.c.bf16 %v2383, %v2383
    %2386 = vst [vmem:[#allocation4] sm:$0xf] %v2385
    %s2387 = scalar_lea.vmem [#allocation3], 40
    %2388 = vst [vmem:[%s2387] sm:$0xff] %v2383
    %s2389 = smul.u32 6, 4
    %s2390 = smul.addr %s2389, 8
    %s2391 = scalar_lea.vmem [#allocation2], %s2390
    %v2392 = vld [vmem:[%s2391] sm:$0xff]
    %v2393 = vld [vmem:[%s2391 + $0x8] sm:$0xff]
    %v2394 = vld [vmem:[%s2391 + $0x10] sm:$0xff]
    %v2395 = vld [vmem:[%s2391 + $0x18] sm:$0xff]
    %v2396 = vld [vmem:[#allocation4] sm:$0xf]
    %v2397 = vld [vmem:[#allocation7] sm:$0xff]
    %v2398 = vld [vmem:[#allocation7 + $0x8] sm:$0xff]
    %v2399 = vld [vmem:[#allocation7 + $0x10] sm:$0xff]
    %v2400 = vld [vmem:[#allocation7 + $0x18] sm:$0xff]
    %v2401 = vld [vmem:[#allocation7 + $0x20] sm:$0xff]
    %v2402 = vld [vmem:[#allocation7 + $0x28] sm:$0xff]
    %v2403 = vld [vmem:[#allocation7 + $0x30] sm:$0xff]
    %v2404 = vld [vmem:[#allocation7 + $0x38] sm:$0xff]
    %v2405 = vld [vmem:[#allocation7 + $0x40] sm:$0xff]
    %v2406 = vld [vmem:[#allocation7 + $0x48] sm:$0xff]
    %v2407 = vld [vmem:[#allocation7 + $0x50] sm:$0xff]
    %v2408 = vld [vmem:[#allocation7 + $0x58] sm:$0xff]
    %v2409 = vld [vmem:[#allocation7 + $0x60] sm:$0xff]
    %v2410 = vld [vmem:[#allocation7 + $0x68] sm:$0xff]
    %v2411 = vld [vmem:[#allocation7 + $0x70] sm:$0xff]
    %v2412 = vld [vmem:[#allocation7 + $0x78] sm:$0xff]
    %v2413 = vld [vmem:[#allocation7 + $0x80] sm:$0xff]
    %v2414 = vld [vmem:[#allocation7 + $0x88] sm:$0xff]
    %v2415 = vld [vmem:[#allocation7 + $0x90] sm:$0xff]
    %v2416 = vld [vmem:[#allocation7 + $0x98] sm:$0xff]
    %v2417 = vld [vmem:[#allocation7 + $0xa0] sm:$0xff]
    %v2418 = vld [vmem:[#allocation7 + $0xa8] sm:$0xff]
    %v2419 = vld [vmem:[#allocation7 + $0xb0] sm:$0xff]
    %v2420 = vld [vmem:[#allocation7 + $0xb8] sm:$0xff]
    %v2421 = vld [vmem:[#allocation7 + $0xc0] sm:$0xff]
    %v2422 = vld [vmem:[#allocation7 + $0xc8] sm:$0xff]
    %v2423 = vld [vmem:[#allocation7 + $0xd0] sm:$0xff]
    %v2424 = vld [vmem:[#allocation7 + $0xd8] sm:$0xff]
    %v2425 = vld [vmem:[#allocation7 + $0xe0] sm:$0xff]
    %v2426 = vld [vmem:[#allocation7 + $0xe8] sm:$0xff]
    %v2427 = vld [vmem:[#allocation7 + $0xf0] sm:$0xff]
    %v2428 = vld [vmem:[#allocation7 + $0xf8] sm:$0xff]
    %v2461 = vunpack.c.l.b16 %v2397
    %v2462 = vunpack.c.h.b16 %v2397
    %v2463 = vunpack.c.l.b16 %v2398
    %v2464 = vunpack.c.h.b16 %v2398
    %v2465 = vunpack.c.l.b16 %v2399
    %v2466 = vunpack.c.h.b16 %v2399
    %v2467 = vunpack.c.l.b16 %v2400
    %v2468 = vunpack.c.h.b16 %v2400
    %v2469 = vunpack.c.l.b16 %v2401
    %v2470 = vunpack.c.h.b16 %v2401
    %v2471 = vunpack.c.l.b16 %v2402
    %v2472 = vunpack.c.h.b16 %v2402
    %v2473 = vunpack.c.l.b16 %v2403
    %v2474 = vunpack.c.h.b16 %v2403
    %v2475 = vunpack.c.l.b16 %v2404
    %v2476 = vunpack.c.h.b16 %v2404
    %v2477 = vunpack.c.l.b16 %v2405
    %v2478 = vunpack.c.h.b16 %v2405
    %v2479 = vunpack.c.l.b16 %v2406
    %v2480 = vunpack.c.h.b16 %v2406
    %v2481 = vunpack.c.l.b16 %v2407
    %v2482 = vunpack.c.h.b16 %v2407
    %v2483 = vunpack.c.l.b16 %v2408
    %v2484 = vunpack.c.h.b16 %v2408
    %v2485 = vunpack.c.l.b16 %v2409
    %v2486 = vunpack.c.h.b16 %v2409
    %v2487 = vunpack.c.l.b16 %v2410
    %v2488 = vunpack.c.h.b16 %v2410
    %v2489 = vunpack.c.l.b16 %v2411
    %v2490 = vunpack.c.h.b16 %v2411
    %v2491 = vunpack.c.l.b16 %v2412
    %v2492 = vunpack.c.h.b16 %v2412
    %v2493 = vunpack.c.l.b16 %v2413
    %v2494 = vunpack.c.h.b16 %v2413
    %v2495 = vunpack.c.l.b16 %v2414
    %v2496 = vunpack.c.h.b16 %v2414
    %v2497 = vunpack.c.l.b16 %v2415
    %v2498 = vunpack.c.h.b16 %v2415
    %v2499 = vunpack.c.l.b16 %v2416
    %v2500 = vunpack.c.h.b16 %v2416
    %v2501 = vunpack.c.l.b16 %v2417
    %v2502 = vunpack.c.h.b16 %v2417
    %v2503 = vunpack.c.l.b16 %v2418
    %v2504 = vunpack.c.h.b16 %v2418
    %v2505 = vunpack.c.l.b16 %v2419
    %v2506 = vunpack.c.h.b16 %v2419
    %v2507 = vunpack.c.l.b16 %v2420
    %v2508 = vunpack.c.h.b16 %v2420
    %v2509 = vunpack.c.l.b16 %v2421
    %v2510 = vunpack.c.h.b16 %v2421
    %v2511 = vunpack.c.l.b16 %v2422
    %v2512 = vunpack.c.h.b16 %v2422
    %v2513 = vunpack.c.l.b16 %v2423
    %v2514 = vunpack.c.h.b16 %v2423
    %v2515 = vunpack.c.l.b16 %v2424
    %v2516 = vunpack.c.h.b16 %v2424
    %v2517 = vunpack.c.l.b16 %v2425
    %v2518 = vunpack.c.h.b16 %v2425
    %v2519 = vunpack.c.l.b16 %v2426
    %v2520 = vunpack.c.h.b16 %v2426
    %v2521 = vunpack.c.l.b16 %v2427
    %v2522 = vunpack.c.h.b16 %v2427
    %v2523 = vunpack.c.l.b16 %v2428
    %v2524 = vunpack.c.h.b16 %v2428
    %v2525 = vpack.c.b16 %v2465, %v2461
    %v2526 = vpack.c.b16 %v2466, %v2462
    %v2527 = vpack.c.b16 %v2467, %v2463
    %v2528 = vpack.c.b16 %v2468, %v2464
    %v2529 = vpack.c.b16 %v2473, %v2469
    %v2530 = vpack.c.b16 %v2474, %v2470
    %v2531 = vpack.c.b16 %v2475, %v2471
    %v2532 = vpack.c.b16 %v2476, %v2472
    %v2533 = vpack.c.b16 %v2481, %v2477
    %v2534 = vpack.c.b16 %v2482, %v2478
    %v2535 = vpack.c.b16 %v2483, %v2479
    %v2536 = vpack.c.b16 %v2484, %v2480
    %v2537 = vpack.c.b16 %v2489, %v2485
    %v2538 = vpack.c.b16 %v2490, %v2486
    %v2539 = vpack.c.b16 %v2491, %v2487
    %v2540 = vpack.c.b16 %v2492, %v2488
    %v2541 = vpack.c.b16 %v2497, %v2493
    %v2542 = vpack.c.b16 %v2498, %v2494
    %v2543 = vpack.c.b16 %v2499, %v2495
    %v2544 = vpack.c.b16 %v2500, %v2496
    %v2545 = vpack.c.b16 %v2505, %v2501
    %v2546 = vpack.c.b16 %v2506, %v2502
    %v2547 = vpack.c.b16 %v2507, %v2503
    %v2548 = vpack.c.b16 %v2508, %v2504
    %v2549 = vpack.c.b16 %v2513, %v2509
    %v2550 = vpack.c.b16 %v2514, %v2510
    %v2551 = vpack.c.b16 %v2515, %v2511
    %v2552 = vpack.c.b16 %v2516, %v2512
    %v2553 = vpack.c.b16 %v2521, %v2517
    %v2554 = vpack.c.b16 %v2522, %v2518
    %v2555 = vpack.c.b16 %v2523, %v2519
    %v2556 = vpack.c.b16 %v2524, %v2520
    %2589 = vmatpush.bf16.msra.mxu0 %v2553
    %2590 = vmatpush.bf16.msra.mxu0 %v2549
    %2591 = vmatpush.bf16.msra.mxu0 %v2545
    %2592 = vmatpush.bf16.msra.mxu0 %v2541
    %2593 = vmatpush.bf16.msra.mxu0 %v2537
    %2594 = vmatpush.bf16.msra.mxu0 %v2533
    %2595 = vmatpush.bf16.msra.mxu0 %v2529
    %2596 = vmatpush.bf16.msra.mxu0 %v2525
    %2597 = vmatmul.bf16.gmra.mxu0 %v2396
    %v2598 = vpop.f32.mrf.mxu0
    %v2599 = vadd.f32 0.0, %v2598
    %v2600 = vpop.f32.mrf.mxu0
    %2601 = vdwg.mxu0
    %2602 = vmatpush.bf16.msra.mxu0 %v2554
    %2603 = vmatpush.bf16.msra.mxu0 %v2550
    %2604 = vmatpush.bf16.msra.mxu0 %v2546
    %2605 = vmatpush.bf16.msra.mxu0 %v2542
    %2606 = vmatpush.bf16.msra.mxu0 %v2538
    %2607 = vmatpush.bf16.msra.mxu0 %v2534
    %2608 = vmatpush.bf16.msra.mxu0 %v2530
    %2609 = vmatpush.bf16.msra.mxu0 %v2526
    %2610 = vmatmul.bf16.gmra.mxu0 %v2396
    %v2611 = vpop.f32.mrf.mxu0
    %v2612 = vadd.f32 0.0, %v2611
    %v2613 = vpop.f32.mrf.mxu0
    %2614 = vdwg.mxu0
    %2615 = vmatpush.bf16.msra.mxu0 %v2555
    %2616 = vmatpush.bf16.msra.mxu0 %v2551
    %2617 = vmatpush.bf16.msra.mxu0 %v2547
    %2618 = vmatpush.bf16.msra.mxu0 %v2543
    %2619 = vmatpush.bf16.msra.mxu0 %v2539
    %2620 = vmatpush.bf16.msra.mxu0 %v2535
    %2621 = vmatpush.bf16.msra.mxu0 %v2531
    %2622 = vmatpush.bf16.msra.mxu0 %v2527
    %2623 = vmatmul.bf16.gmra.mxu0 %v2396
    %v2624 = vpop.f32.mrf.mxu0
    %v2625 = vadd.f32 0.0, %v2624
    %v2626 = vpop.f32.mrf.mxu0
    %2627 = vdwg.mxu0
    %2628 = vmatpush.bf16.msra.mxu0 %v2556
    %2629 = vmatpush.bf16.msra.mxu0 %v2552
    %2630 = vmatpush.bf16.msra.mxu0 %v2548
    %2631 = vmatpush.bf16.msra.mxu0 %v2544
    %2632 = vmatpush.bf16.msra.mxu0 %v2540
    %2633 = vmatpush.bf16.msra.mxu0 %v2536
    %2634 = vmatpush.bf16.msra.mxu0 %v2532
    %2635 = vmatpush.bf16.msra.mxu0 %v2528
    %2636 = vmatmul.bf16.gmra.mxu0 %v2396
    %v2637 = vpop.f32.mrf.mxu0
    %v2638 = vadd.f32 0.0, %v2637
    %v2639 = vpop.f32.mrf.mxu0
    %2640 = vdwg.mxu0
    %v2641 = vadd.f32 %v2392, %v2599
    %v2642 = vadd.f32 %v2393, %v2612
    %v2643 = vadd.f32 %v2394, %v2625
    %v2644 = vadd.f32 %v2395, %v2638
    %v2645 = vxor.u32 %v2641, 2147483648
    %v2646 = vmul.f32 %v2645, 1.442695
    %v2647 = vpow.pop %v2646
    %v2648 = vadd.f32 %v2647, 1.0
    %v2649 = vrcp.pop %v2648
    %v2650 = vmul.f32 %v2648, %v2649
    %v2651 = vsub.f32 1.0, %v2650
    %v2652 = vmul.f32 %v2649, %v2651
    %v2653 = vadd.f32 %v2649, %v2652
    %vm2654 = vweird.f32 %v2648
    %vm2655 = vweird.f32 %v2649
    %vm2656 = vmor %vm2654, %vm2655
    %v2657 = vsel %vm2656, %v2649, %v2653
    %v2658 = vand.u32 2147483647, %v2648
    %vm2659 = vcmp.eq.f32.partialorder %v2658, 8.507059e+37
    %v2660 = vand.u32 %v2648, 2147483648
    %v2661 = vor.u32 1.1754944e-38, %v2660
    %v2662 = vsel %vm2659, %v2661, %v2657
    %v2663 = vmul.f32 1.0, %v2662
    %v2664 = vxor.u32 %v2642, 2147483648
    %v2665 = vmul.f32 %v2664, 1.442695
    %v2666 = vpow.pop %v2665
    %v2667 = vadd.f32 %v2666, 1.0
    %v2668 = vrcp.pop %v2667
    %v2669 = vmul.f32 %v2667, %v2668
    %v2670 = vsub.f32 1.0, %v2669
    %v2671 = vmul.f32 %v2668, %v2670
    %v2672 = vadd.f32 %v2668, %v2671
    %vm2673 = vweird.f32 %v2667
    %vm2674 = vweird.f32 %v2668
    %vm2675 = vmor %vm2673, %vm2674
    %v2676 = vsel %vm2675, %v2668, %v2672
    %v2677 = vand.u32 2147483647, %v2667
    %vm2678 = vcmp.eq.f32.partialorder %v2677, 8.507059e+37
    %v2679 = vand.u32 %v2667, 2147483648
    %v2680 = vor.u32 1.1754944e-38, %v2679
    %v2681 = vsel %vm2678, %v2680, %v2676
    %v2682 = vmul.f32 1.0, %v2681
    %v2683 = vtanh.pop %v2643
    %v2684 = vxor.u32 %v2644, 2147483648
    %v2685 = vmul.f32 %v2684, 1.442695
    %v2686 = vpow.pop %v2685
    %v2687 = vadd.f32 %v2686, 1.0
    %v2688 = vrcp.pop %v2687
    %v2689 = vmul.f32 %v2687, %v2688
    %v2690 = vsub.f32 1.0, %v2689
    %v2691 = vmul.f32 %v2688, %v2690
    %v2692 = vadd.f32 %v2688, %v2691
    %vm2693 = vweird.f32 %v2687
    %vm2694 = vweird.f32 %v2688
    %vm2695 = vmor %vm2693, %vm2694
    %v2696 = vsel %vm2695, %v2688, %v2692
    %v2697 = vand.u32 2147483647, %v2687
    %vm2698 = vcmp.eq.f32.partialorder %v2697, 8.507059e+37
    %v2699 = vand.u32 %v2687, 2147483648
    %v2700 = vor.u32 1.1754944e-38, %v2699
    %v2701 = vsel %vm2698, %v2700, %v2696
    %v2702 = vmul.f32 1.0, %v2701
    %v2703 = vld [vmem:[#allocation5] sm:$0xff]
    %v2704 = vmul.f32 %v2682, %v2703
    %v2705 = vmul.f32 %v2663, %v2683
    %v2706 = vadd.f32 %v2704, %v2705
    %v2707 = vtanh.pop %v2706
    %v2708 = vmul.f32 %v2702, %v2707
    %2709 = vst [vmem:[#allocation5] sm:$0xff] %v2706
    %v2710 = vpack.c.bf16 %v2708, %v2708
    %2711 = vst [vmem:[#allocation4] sm:$0xf] %v2710
    %s2712 = scalar_lea.vmem [#allocation3], 48
    %2713 = vst [vmem:[%s2712] sm:$0xff] %v2708
    %s2714 = smul.u32 7, 4
    %s2715 = smul.addr %s2714, 8
    %s2716 = scalar_lea.vmem [#allocation2], %s2715
    %v2717 = vld [vmem:[%s2716] sm:$0xff]
    %v2718 = vld [vmem:[%s2716 + $0x8] sm:$0xff]
    %v2719 = vld [vmem:[%s2716 + $0x10] sm:$0xff]
    %v2720 = vld [vmem:[%s2716 + $0x18] sm:$0xff]
    %v2721 = vld [vmem:[#allocation4] sm:$0xf]
    %v2722 = vld [vmem:[#allocation7] sm:$0xff]
    %v2723 = vld [vmem:[#allocation7 + $0x8] sm:$0xff]
    %v2724 = vld [vmem:[#allocation7 + $0x10] sm:$0xff]
    %v2725 = vld [vmem:[#allocation7 + $0x18] sm:$0xff]
    %v2726 = vld [vmem:[#allocation7 + $0x20] sm:$0xff]
    %v2727 = vld [vmem:[#allocation7 + $0x28] sm:$0xff]
    %v2728 = vld [vmem:[#allocation7 + $0x30] sm:$0xff]
    %v2729 = vld [vmem:[#allocation7 + $0x38] sm:$0xff]
    %v2730 = vld [vmem:[#allocation7 + $0x40] sm:$0xff]
    %v2731 = vld [vmem:[#allocation7 + $0x48] sm:$0xff]
    %v2732 = vld [vmem:[#allocation7 + $0x50] sm:$0xff]
    %v2733 = vld [vmem:[#allocation7 + $0x58] sm:$0xff]
    %v2734 = vld [vmem:[#allocation7 + $0x60] sm:$0xff]
    %v2735 = vld [vmem:[#allocation7 + $0x68] sm:$0xff]
    %v2736 = vld [vmem:[#allocation7 + $0x70] sm:$0xff]
    %v2737 = vld [vmem:[#allocation7 + $0x78] sm:$0xff]
    %v2738 = vld [vmem:[#allocation7 + $0x80] sm:$0xff]
    %v2739 = vld [vmem:[#allocation7 + $0x88] sm:$0xff]
    %v2740 = vld [vmem:[#allocation7 + $0x90] sm:$0xff]
    %v2741 = vld [vmem:[#allocation7 + $0x98] sm:$0xff]
    %v2742 = vld [vmem:[#allocation7 + $0xa0] sm:$0xff]
    %v2743 = vld [vmem:[#allocation7 + $0xa8] sm:$0xff]
    %v2744 = vld [vmem:[#allocation7 + $0xb0] sm:$0xff]
    %v2745 = vld [vmem:[#allocation7 + $0xb8] sm:$0xff]
    %v2746 = vld [vmem:[#allocation7 + $0xc0] sm:$0xff]
    %v2747 = vld [vmem:[#allocation7 + $0xc8] sm:$0xff]
    %v2748 = vld [vmem:[#allocation7 + $0xd0] sm:$0xff]
    %v2749 = vld [vmem:[#allocation7 + $0xd8] sm:$0xff]
    %v2750 = vld [vmem:[#allocation7 + $0xe0] sm:$0xff]
    %v2751 = vld [vmem:[#allocation7 + $0xe8] sm:$0xff]
    %v2752 = vld [vmem:[#allocation7 + $0xf0] sm:$0xff]
    %v2753 = vld [vmem:[#allocation7 + $0xf8] sm:$0xff]
    %v2786 = vunpack.c.l.b16 %v2722
    %v2787 = vunpack.c.h.b16 %v2722
    %v2788 = vunpack.c.l.b16 %v2723
    %v2789 = vunpack.c.h.b16 %v2723
    %v2790 = vunpack.c.l.b16 %v2724
    %v2791 = vunpack.c.h.b16 %v2724
    %v2792 = vunpack.c.l.b16 %v2725
    %v2793 = vunpack.c.h.b16 %v2725
    %v2794 = vunpack.c.l.b16 %v2726
    %v2795 = vunpack.c.h.b16 %v2726
    %v2796 = vunpack.c.l.b16 %v2727
    %v2797 = vunpack.c.h.b16 %v2727
    %v2798 = vunpack.c.l.b16 %v2728
    %v2799 = vunpack.c.h.b16 %v2728
    %v2800 = vunpack.c.l.b16 %v2729
    %v2801 = vunpack.c.h.b16 %v2729
    %v2802 = vunpack.c.l.b16 %v2730
    %v2803 = vunpack.c.h.b16 %v2730
    %v2804 = vunpack.c.l.b16 %v2731
    %v2805 = vunpack.c.h.b16 %v2731
    %v2806 = vunpack.c.l.b16 %v2732
    %v2807 = vunpack.c.h.b16 %v2732
    %v2808 = vunpack.c.l.b16 %v2733
    %v2809 = vunpack.c.h.b16 %v2733
    %v2810 = vunpack.c.l.b16 %v2734
    %v2811 = vunpack.c.h.b16 %v2734
    %v2812 = vunpack.c.l.b16 %v2735
    %v2813 = vunpack.c.h.b16 %v2735
    %v2814 = vunpack.c.l.b16 %v2736
    %v2815 = vunpack.c.h.b16 %v2736
    %v2816 = vunpack.c.l.b16 %v2737
    %v2817 = vunpack.c.h.b16 %v2737
    %v2818 = vunpack.c.l.b16 %v2738
    %v2819 = vunpack.c.h.b16 %v2738
    %v2820 = vunpack.c.l.b16 %v2739
    %v2821 = vunpack.c.h.b16 %v2739
    %v2822 = vunpack.c.l.b16 %v2740
    %v2823 = vunpack.c.h.b16 %v2740
    %v2824 = vunpack.c.l.b16 %v2741
    %v2825 = vunpack.c.h.b16 %v2741
    %v2826 = vunpack.c.l.b16 %v2742
    %v2827 = vunpack.c.h.b16 %v2742
    %v2828 = vunpack.c.l.b16 %v2743
    %v2829 = vunpack.c.h.b16 %v2743
    %v2830 = vunpack.c.l.b16 %v2744
    %v2831 = vunpack.c.h.b16 %v2744
    %v2832 = vunpack.c.l.b16 %v2745
    %v2833 = vunpack.c.h.b16 %v2745
    %v2834 = vunpack.c.l.b16 %v2746
    %v2835 = vunpack.c.h.b16 %v2746
    %v2836 = vunpack.c.l.b16 %v2747
    %v2837 = vunpack.c.h.b16 %v2747
    %v2838 = vunpack.c.l.b16 %v2748
    %v2839 = vunpack.c.h.b16 %v2748
    %v2840 = vunpack.c.l.b16 %v2749
    %v2841 = vunpack.c.h.b16 %v2749
    %v2842 = vunpack.c.l.b16 %v2750
    %v2843 = vunpack.c.h.b16 %v2750
    %v2844 = vunpack.c.l.b16 %v2751
    %v2845 = vunpack.c.h.b16 %v2751
    %v2846 = vunpack.c.l.b16 %v2752
    %v2847 = vunpack.c.h.b16 %v2752
    %v2848 = vunpack.c.l.b16 %v2753
    %v2849 = vunpack.c.h.b16 %v2753
    %v2850 = vpack.c.b16 %v2790, %v2786
    %v2851 = vpack.c.b16 %v2791, %v2787
    %v2852 = vpack.c.b16 %v2792, %v2788
    %v2853 = vpack.c.b16 %v2793, %v2789
    %v2854 = vpack.c.b16 %v2798, %v2794
    %v2855 = vpack.c.b16 %v2799, %v2795
    %v2856 = vpack.c.b16 %v2800, %v2796
    %v2857 = vpack.c.b16 %v2801, %v2797
    %v2858 = vpack.c.b16 %v2806, %v2802
    %v2859 = vpack.c.b16 %v2807, %v2803
    %v2860 = vpack.c.b16 %v2808, %v2804
    %v2861 = vpack.c.b16 %v2809, %v2805
    %v2862 = vpack.c.b16 %v2814, %v2810
    %v2863 = vpack.c.b16 %v2815, %v2811
    %v2864 = vpack.c.b16 %v2816, %v2812
    %v2865 = vpack.c.b16 %v2817, %v2813
    %v2866 = vpack.c.b16 %v2822, %v2818
    %v2867 = vpack.c.b16 %v2823, %v2819
    %v2868 = vpack.c.b16 %v2824, %v2820
    %v2869 = vpack.c.b16 %v2825, %v2821
    %v2870 = vpack.c.b16 %v2830, %v2826
    %v2871 = vpack.c.b16 %v2831, %v2827
    %v2872 = vpack.c.b16 %v2832, %v2828
    %v2873 = vpack.c.b16 %v2833, %v2829
    %v2874 = vpack.c.b16 %v2838, %v2834
    %v2875 = vpack.c.b16 %v2839, %v2835
    %v2876 = vpack.c.b16 %v2840, %v2836
    %v2877 = vpack.c.b16 %v2841, %v2837
    %v2878 = vpack.c.b16 %v2846, %v2842
    %v2879 = vpack.c.b16 %v2847, %v2843
    %v2880 = vpack.c.b16 %v2848, %v2844
    %v2881 = vpack.c.b16 %v2849, %v2845
    %2914 = vmatpush.bf16.msra.mxu0 %v2878
    %2915 = vmatpush.bf16.msra.mxu0 %v2874
    %2916 = vmatpush.bf16.msra.mxu0 %v2870
    %2917 = vmatpush.bf16.msra.mxu0 %v2866
    %2918 = vmatpush.bf16.msra.mxu0 %v2862
    %2919 = vmatpush.bf16.msra.mxu0 %v2858
    %2920 = vmatpush.bf16.msra.mxu0 %v2854
    %2921 = vmatpush.bf16.msra.mxu0 %v2850
    %2922 = vmatmul.bf16.gmra.mxu0 %v2721
    %v2923 = vpop.f32.mrf.mxu0
    %v2924 = vadd.f32 0.0, %v2923
    %v2925 = vpop.f32.mrf.mxu0
    %2926 = vdwg.mxu0
    %2927 = vmatpush.bf16.msra.mxu0 %v2879
    %2928 = vmatpush.bf16.msra.mxu0 %v2875
    %2929 = vmatpush.bf16.msra.mxu0 %v2871
    %2930 = vmatpush.bf16.msra.mxu0 %v2867
    %2931 = vmatpush.bf16.msra.mxu0 %v2863
    %2932 = vmatpush.bf16.msra.mxu0 %v2859
    %2933 = vmatpush.bf16.msra.mxu0 %v2855
    %2934 = vmatpush.bf16.msra.mxu0 %v2851
    %2935 = vmatmul.bf16.gmra.mxu0 %v2721
    %v2936 = vpop.f32.mrf.mxu0
    %v2937 = vadd.f32 0.0, %v2936
    %v2938 = vpop.f32.mrf.mxu0
    %2939 = vdwg.mxu0
    %2940 = vmatpush.bf16.msra.mxu0 %v2880
    %2941 = vmatpush.bf16.msra.mxu0 %v2876
    %2942 = vmatpush.bf16.msra.mxu0 %v2872
    %2943 = vmatpush.bf16.msra.mxu0 %v2868
    %2944 = vmatpush.bf16.msra.mxu0 %v2864
    %2945 = vmatpush.bf16.msra.mxu0 %v2860
    %2946 = vmatpush.bf16.msra.mxu0 %v2856
    %2947 = vmatpush.bf16.msra.mxu0 %v2852
    %2948 = vmatmul.bf16.gmra.mxu0 %v2721
    %v2949 = vpop.f32.mrf.mxu0
    %v2950 = vadd.f32 0.0, %v2949
    %v2951 = vpop.f32.mrf.mxu0
    %2952 = vdwg.mxu0
    %2953 = vmatpush.bf16.msra.mxu0 %v2881
    %2954 = vmatpush.bf16.msra.mxu0 %v2877
    %2955 = vmatpush.bf16.msra.mxu0 %v2873
    %2956 = vmatpush.bf16.msra.mxu0 %v2869
    %2957 = vmatpush.bf16.msra.mxu0 %v2865
    %2958 = vmatpush.bf16.msra.mxu0 %v2861
    %2959 = vmatpush.bf16.msra.mxu0 %v2857
    %2960 = vmatpush.bf16.msra.mxu0 %v2853
    %2961 = vmatmul.bf16.gmra.mxu0 %v2721
    %v2962 = vpop.f32.mrf.mxu0
    %v2963 = vadd.f32 0.0, %v2962
    %v2964 = vpop.f32.mrf.mxu0
    %2965 = vdwg.mxu0
    %v2966 = vadd.f32 %v2717, %v2924
    %v2967 = vadd.f32 %v2718, %v2937
    %v2968 = vadd.f32 %v2719, %v2950
    %v2969 = vadd.f32 %v2720, %v2963
    %v2970 = vxor.u32 %v2966, 2147483648
    %v2971 = vmul.f32 %v2970, 1.442695
    %v2972 = vpow.pop %v2971
    %v2973 = vadd.f32 %v2972, 1.0
    %v2974 = vrcp.pop %v2973
    %v2975 = vmul.f32 %v2973, %v2974
    %v2976 = vsub.f32 1.0, %v2975
    %v2977 = vmul.f32 %v2974, %v2976
    %v2978 = vadd.f32 %v2974, %v2977
    %vm2979 = vweird.f32 %v2973
    %vm2980 = vweird.f32 %v2974
    %vm2981 = vmor %vm2979, %vm2980
    %v2982 = vsel %vm2981, %v2974, %v2978
    %v2983 = vand.u32 2147483647, %v2973
    %vm2984 = vcmp.eq.f32.partialorder %v2983, 8.507059e+37
    %v2985 = vand.u32 %v2973, 2147483648
    %v2986 = vor.u32 1.1754944e-38, %v2985
    %v2987 = vsel %vm2984, %v2986, %v2982
    %v2988 = vmul.f32 1.0, %v2987
    %v2989 = vxor.u32 %v2967, 2147483648
    %v2990 = vmul.f32 %v2989, 1.442695
    %v2991 = vpow.pop %v2990
    %v2992 = vadd.f32 %v2991, 1.0
    %v2993 = vrcp.pop %v2992
    %v2994 = vmul.f32 %v2992, %v2993
    %v2995 = vsub.f32 1.0, %v2994
    %v2996 = vmul.f32 %v2993, %v2995
    %v2997 = vadd.f32 %v2993, %v2996
    %vm2998 = vweird.f32 %v2992
    %vm2999 = vweird.f32 %v2993
    %vm3000 = vmor %vm2998, %vm2999
    %v3001 = vsel %vm3000, %v2993, %v2997
    %v3002 = vand.u32 2147483647, %v2992
    %vm3003 = vcmp.eq.f32.partialorder %v3002, 8.507059e+37
    %v3004 = vand.u32 %v2992, 2147483648
    %v3005 = vor.u32 1.1754944e-38, %v3004
    %v3006 = vsel %vm3003, %v3005, %v3001
    %v3007 = vmul.f32 1.0, %v3006
    %v3008 = vtanh.pop %v2968
    %v3009 = vxor.u32 %v2969, 2147483648
    %v3010 = vmul.f32 %v3009, 1.442695
    %v3011 = vpow.pop %v3010
    %v3012 = vadd.f32 %v3011, 1.0
    %v3013 = vrcp.pop %v3012
    %v3014 = vmul.f32 %v3012, %v3013
    %v3015 = vsub.f32 1.0, %v3014
    %v3016 = vmul.f32 %v3013, %v3015
    %v3017 = vadd.f32 %v3013, %v3016
    %vm3018 = vweird.f32 %v3012
    %vm3019 = vweird.f32 %v3013
    %vm3020 = vmor %vm3018, %vm3019
    %v3021 = vsel %vm3020, %v3013, %v3017
    %v3022 = vand.u32 2147483647, %v3012
    %vm3023 = vcmp.eq.f32.partialorder %v3022, 8.507059e+37
    %v3024 = vand.u32 %v3012, 2147483648
    %v3025 = vor.u32 1.1754944e-38, %v3024
    %v3026 = vsel %vm3023, %v3025, %v3021
    %v3027 = vmul.f32 1.0, %v3026
    %v3028 = vld [vmem:[#allocation5] sm:$0xff]
    %v3029 = vmul.f32 %v3007, %v3028
    %v3030 = vmul.f32 %v2988, %v3008
    %v3031 = vadd.f32 %v3029, %v3030
    %v3032 = vtanh.pop %v3031
    %v3033 = vmul.f32 %v3027, %v3032
    %3034 = vst [vmem:[#allocation5] sm:$0xff] %v3031
    %v3035 = vpack.c.bf16 %v3033, %v3033
    %3036 = vst [vmem:[#allocation4] sm:$0xf] %v3035
    %s3037 = scalar_lea.vmem [#allocation3], 56
    %3038 = vst [vmem:[%s3037] sm:$0xff] %v3033
    %v3039 = vld [vmem:[#allocation3] sm:$0xff]
    %v3040 = vld [vmem:[#allocation3 + $0x8] sm:$0xff]
    %v3041 = vld [vmem:[#allocation3 + $0x10] sm:$0xff]
    %v3042 = vld [vmem:[#allocation3 + $0x18] sm:$0xff]
    %v3043 = vld [vmem:[#allocation3 + $0x20] sm:$0xff]
    %v3044 = vld [vmem:[#allocation3 + $0x28] sm:$0xff]
    %v3045 = vld [vmem:[#allocation3 + $0x30] sm:$0xff]
    %v3046 = vld [vmem:[#allocation3 + $0x38] sm:$0xff]
    %v3047 = vpack.c.bf16 %v3040, %v3039
    %v3048 = vpack.c.bf16 %v3042, %v3041
    %v3049 = vpack.c.bf16 %v3044, %v3043
    %v3050 = vpack.c.bf16 %v3046, %v3045
    %v3051 = vld [vmem:[#allocation9] sm:$0xff]
    %v3052 = vld [vmem:[#allocation9 + $0x8] sm:$0xff]
    %v3053 = vld [vmem:[#allocation9 + $0x10] sm:$0xff]
    %v3054 = vld [vmem:[#allocation9 + $0x18] sm:$0xff]
    %v3055 = vld [vmem:[#allocation9 + $0x20] sm:$0xff]
    %v3056 = vld [vmem:[#allocation9 + $0x28] sm:$0xff]
    %v3057 = vld [vmem:[#allocation9 + $0x30] sm:$0xff]
    %v3058 = vld [vmem:[#allocation9 + $0x38] sm:$0xff]
    %v3059 = vld [vmem:[#allocation9 + $0x40] sm:$0xff]
    %v3060 = vld [vmem:[#allocation9 + $0x48] sm:$0xff]
    %v3061 = vld [vmem:[#allocation9 + $0x50] sm:$0xff]
    %v3062 = vld [vmem:[#allocation9 + $0x58] sm:$0xff]
    %v3063 = vld [vmem:[#allocation9 + $0x60] sm:$0xff]
    %v3064 = vld [vmem:[#allocation9 + $0x68] sm:$0xff]
    %v3065 = vld [vmem:[#allocation9 + $0x70] sm:$0xff]
    %v3066 = vld [vmem:[#allocation9 + $0x78] sm:$0xff]
    %v3083 = vunpack.c.l.b16 %v3051
    %v3084 = vunpack.c.h.b16 %v3051
    %v3085 = vunpack.c.l.b16 %v3052
    %v3086 = vunpack.c.h.b16 %v3052
    %v3087 = vunpack.c.l.b16 %v3053
    %v3088 = vunpack.c.h.b16 %v3053
    %v3089 = vunpack.c.l.b16 %v3054
    %v3090 = vunpack.c.h.b16 %v3054
    %v3091 = vunpack.c.l.b16 %v3055
    %v3092 = vunpack.c.h.b16 %v3055
    %v3093 = vunpack.c.l.b16 %v3056
    %v3094 = vunpack.c.h.b16 %v3056
    %v3095 = vunpack.c.l.b16 %v3057
    %v3096 = vunpack.c.h.b16 %v3057
    %v3097 = vunpack.c.l.b16 %v3058
    %v3098 = vunpack.c.h.b16 %v3058
    %v3099 = vunpack.c.l.b16 %v3059
    %v3100 = vunpack.c.h.b16 %v3059
    %v3101 = vunpack.c.l.b16 %v3060
    %v3102 = vunpack.c.h.b16 %v3060
    %v3103 = vunpack.c.l.b16 %v3061
    %v3104 = vunpack.c.h.b16 %v3061
    %v3105 = vunpack.c.l.b16 %v3062
    %v3106 = vunpack.c.h.b16 %v3062
    %v3107 = vunpack.c.l.b16 %v3063
    %v3108 = vunpack.c.h.b16 %v3063
    %v3109 = vunpack.c.l.b16 %v3064
    %v3110 = vunpack.c.h.b16 %v3064
    %v3111 = vunpack.c.l.b16 %v3065
    %v3112 = vunpack.c.h.b16 %v3065
    %v3113 = vunpack.c.l.b16 %v3066
    %v3114 = vunpack.c.h.b16 %v3066
    %v3115 = vpack.c.b16 %v3085, %v3083
    %v3116 = vpack.c.b16 %v3086, %v3084
    %v3117 = vpack.c.b16 %v3089, %v3087
    %v3118 = vpack.c.b16 %v3090, %v3088
    %v3119 = vpack.c.b16 %v3093, %v3091
    %v3120 = vpack.c.b16 %v3094, %v3092
    %v3121 = vpack.c.b16 %v3097, %v3095
    %v3122 = vpack.c.b16 %v3098, %v3096
    %v3123 = vpack.c.b16 %v3101, %v3099
    %v3124 = vpack.c.b16 %v3102, %v3100
    %v3125 = vpack.c.b16 %v3105, %v3103
    %v3126 = vpack.c.b16 %v3106, %v3104
    %v3127 = vpack.c.b16 %v3109, %v3107
    %v3128 = vpack.c.b16 %v3110, %v3108
    %v3129 = vpack.c.b16 %v3113, %v3111
    %v3130 = vpack.c.b16 %v3114, %v3112
    %3147 = vmatpush.bf16.msra.mxu0 %v3129
    %3148 = vmatpush.bf16.msra.mxu0 %v3127
    %3149 = vmatpush.bf16.msra.mxu0 %v3125
    %3150 = vmatpush.bf16.msra.mxu0 %v3123
    %3151 = vmatpush.bf16.msra.mxu0 %v3121
    %3152 = vmatpush.bf16.msra.mxu0 %v3119
    %3153 = vmatpush.bf16.msra.mxu0 %v3117
    %3154 = vmatpush.bf16.msra.mxu0 %v3115
    %3155 = vmatmul.bf16.gmra.mxu0 %v3047
    %v3156 = vpop.f32.mrf.mxu0
    %v3157 = vadd.f32 0.0, %v3156
    %v3158 = vpop.f32.mrf.mxu0
    %v3159 = vadd.f32 0.0, %v3158
    %3160 = vmatmul.bf16.gmra.mxu0 %v3048
    %v3161 = vpop.f32.mrf.mxu0
    %v3162 = vadd.f32 0.0, %v3161
    %v3163 = vpop.f32.mrf.mxu0
    %v3164 = vadd.f32 0.0, %v3163
    %3165 = vmatmul.bf16.gmra.mxu0 %v3049
    %v3166 = vpop.f32.mrf.mxu0
    %v3167 = vadd.f32 0.0, %v3166
    %v3168 = vpop.f32.mrf.mxu0
    %v3169 = vadd.f32 0.0, %v3168
    %3170 = vmatmul.bf16.gmra.mxu0 %v3050
    %v3171 = vpop.f32.mrf.mxu0
    %v3172 = vadd.f32 0.0, %v3171
    %v3173 = vpop.f32.mrf.mxu0
    %v3174 = vadd.f32 0.0, %v3173
    %3175 = vdwg.mxu0
    %3176 = vmatpush.bf16.msra.mxu0 %v3130
    %3177 = vmatpush.bf16.msra.mxu0 %v3128
    %3178 = vmatpush.bf16.msra.mxu0 %v3126
    %3179 = vmatpush.bf16.msra.mxu0 %v3124
    %3180 = vmatpush.bf16.msra.mxu0 %v3122
    %3181 = vmatpush.bf16.msra.mxu0 %v3120
    %3182 = vmatpush.bf16.msra.mxu0 %v3118
    %3183 = vmatpush.bf16.msra.mxu0 %v3116
    %3184 = vmatmul.bf16.gmra.mxu0 %v3047
    %v3185 = vpop.f32.mrf.mxu0
    %v3186 = vadd.f32 0.0, %v3185
    %v3187 = vpop.f32.mrf.mxu0
    %v3188 = vadd.f32 0.0, %v3187
    %3189 = vmatmul.bf16.gmra.mxu0 %v3048
    %v3190 = vpop.f32.mrf.mxu0
    %v3191 = vadd.f32 0.0, %v3190
    %v3192 = vpop.f32.mrf.mxu0
    %v3193 = vadd.f32 0.0, %v3192
    %3194 = vmatmul.bf16.gmra.mxu0 %v3049
    %v3195 = vpop.f32.mrf.mxu0
    %v3196 = vadd.f32 0.0, %v3195
    %v3197 = vpop.f32.mrf.mxu0
    %v3198 = vadd.f32 0.0, %v3197
    %3199 = vmatmul.bf16.gmra.mxu0 %v3050
    %v3200 = vpop.f32.mrf.mxu0
    %v3201 = vadd.f32 0.0, %v3200
    %v3202 = vpop.f32.mrf.mxu0
    %v3203 = vadd.f32 0.0, %v3202
    %3204 = vdwg.mxu0
    %3205 = vst [vmem:[#allocation6] sm:$0xff] %v3157
    %3206 = vst [vmem:[#allocation6 + $0x8] sm:$0xff] %v3186
    %3207 = vst [vmem:[#allocation6 + $0x10] sm:$0xff] %v3159
    %3208 = vst [vmem:[#allocation6 + $0x18] sm:$0xff] %v3188
    %3209 = vst [vmem:[#allocation6 + $0x20] sm:$0xff] %v3162
    %3210 = vst [vmem:[#allocation6 + $0x28] sm:$0xff] %v3191
    %3211 = vst [vmem:[#allocation6 + $0x30] sm:$0xff] %v3164
    %3212 = vst [vmem:[#allocation6 + $0x38] sm:$0xff] %v3193
    %3213 = vst [vmem:[#allocation6 + $0x40] sm:$0xff] %v3167
    %3214 = vst [vmem:[#allocation6 + $0x48] sm:$0xff] %v3196
    %3215 = vst [vmem:[#allocation6 + $0x50] sm:$0xff] %v3169
    %3216 = vst [vmem:[#allocation6 + $0x58] sm:$0xff] %v3198
    %3217 = vst [vmem:[#allocation6 + $0x60] sm:$0xff] %v3172
    %3218 = vst [vmem:[#allocation6 + $0x68] sm:$0xff] %v3201
    %3219 = vst [vmem:[#allocation6 + $0x70] sm:$0xff] %v3174
    %3220 = vst [vmem:[#allocation6 + $0x78] sm:$0xff] %v3203
    %s3221 = smul.u32 0, 2
    %s3222 = smul.addr %s3221, 8
    %s3223 = scalar_lea.vmem [#allocation6], %s3222
    %v3224 = vld [vmem:[%s3223] sm:$0xff]
    %s3225 = smul.u32 7, 2
    %s3226 = smul.addr %s3225, 8
    %s3227 = scalar_lea.vmem [#allocation6], %s3226
    %v3228 = vld [vmem:[%s3227 + $0x8] sm:$0xff]
    %v3229 = vadd.f32 %v3224, %v3228
    %v3230 = vld [vmem:[%s5] sm:$0x1]
    %v3232 = vperm.slane %v3230, 0
    %v3234 = vadd.f32 %v3229, %v3232
    %3235 = vst [vmem:[%s6] sm:$0xff] %v3234
    %s3236 = smul.u32 1, 2
    %s3237 = smul.addr %s3236, 8
    %s3238 = scalar_lea.vmem [#allocation6], %s3237
    %v3239 = vld [vmem:[%s3238] sm:$0xff]
    %s3240 = smul.u32 6, 2
    %s3241 = smul.addr %s3240, 8
    %s3242 = scalar_lea.vmem [#allocation6], %s3241
    %v3243 = vld [vmem:[%s3242 + $0x8] sm:$0xff]
    %v3244 = vadd.f32 %v3239, %v3243
    %v3245 = vld [vmem:[%s5] sm:$0x1]
    %v3247 = vperm.slane %v3245, 0
    %v3249 = vadd.f32 %v3244, %v3247
    %s3250 = scalar_lea.vmem %s6, 8
    %3251 = vst [vmem:[%s3250] sm:$0xff] %v3249
    %s3252 = smul.u32 2, 2
    %s3253 = smul.addr %s3252, 8
    %s3254 = scalar_lea.vmem [#allocation6], %s3253
    %v3255 = vld [vmem:[%s3254] sm:$0xff]
    %s3256 = smul.u32 5, 2
    %s3257 = smul.addr %s3256, 8
    %s3258 = scalar_lea.vmem [#allocation6], %s3257
    %v3259 = vld [vmem:[%s3258 + $0x8] sm:$0xff]
    %v3260 = vadd.f32 %v3255, %v3259
    %v3261 = vld [vmem:[%s5] sm:$0x1]
    %v3263 = vperm.slane %v3261, 0
    %v3265 = vadd.f32 %v3260, %v3263
    %s3266 = scalar_lea.vmem %s6, 16
    %3267 = vst [vmem:[%s3266] sm:$0xff] %v3265
    %s3268 = smul.u32 3, 2
    %s3269 = smul.addr %s3268, 8
    %s3270 = scalar_lea.vmem [#allocation6], %s3269
    %v3271 = vld [vmem:[%s3270] sm:$0xff]
    %s3272 = smul.u32 4, 2
    %s3273 = smul.addr %s3272, 8
    %s3274 = scalar_lea.vmem [#allocation6], %s3273
    %v3275 = vld [vmem:[%s3274 + $0x8] sm:$0xff]
    %v3276 = vadd.f32 %v3271, %v3275
    %v3277 = vld [vmem:[%s5] sm:$0x1]
    %v3279 = vperm.slane %v3277, 0
    %v3281 = vadd.f32 %v3276, %v3279
    %s3282 = scalar_lea.vmem %s6, 24
    %3283 = vst [vmem:[%s3282] sm:$0xff] %v3281
    %v3284 = vld [vmem:[%s3274] sm:$0xff]
    %v3285 = vld [vmem:[%s3270 + $0x8] sm:$0xff]
    %v3286 = vadd.f32 %v3284, %v3285
    %v3287 = vld [vmem:[%s5] sm:$0x1]
    %v3289 = vperm.slane %v3287, 0
    %v3291 = vadd.f32 %v3286, %v3289
    %s3292 = scalar_lea.vmem %s6, 32
    %3293 = vst [vmem:[%s3292] sm:$0xff] %v3291
    %v3294 = vld [vmem:[%s3258] sm:$0xff]
    %v3295 = vld [vmem:[%s3254 + $0x8] sm:$0xff]
    %v3296 = vadd.f32 %v3294, %v3295
    %v3297 = vld [vmem:[%s5] sm:$0x1]
    %v3299 = vperm.slane %v3297, 0
    %v3301 = vadd.f32 %v3296, %v3299
    %s3302 = scalar_lea.vmem %s6, 40
    %3303 = vst [vmem:[%s3302] sm:$0xff] %v3301
    %v3304 = vld [vmem:[%s3242] sm:$0xff]
    %v3305 = vld [vmem:[%s3238 + $0x8] sm:$0xff]
    %v3306 = vadd.f32 %v3304, %v3305
    %v3307 = vld [vmem:[%s5] sm:$0x1]
    %v3309 = vperm.slane %v3307, 0
    %v3311 = vadd.f32 %v3306, %v3309
    %s3312 = scalar_lea.vmem %s6, 48
    %3313 = vst [vmem:[%s3312] sm:$0xff] %v3311
    %v3314 = vld [vmem:[%s3227] sm:$0xff]
    %v3315 = vld [vmem:[%s3223 + $0x8] sm:$0xff]
    %v3316 = vadd.f32 %v3314, %v3315
    %v3317 = vld [vmem:[%s5] sm:$0x1]
    %v3319 = vperm.slane %v3317, 0
    %v3321 = vadd.f32 %v3316, %v3319
    %s3322 = scalar_lea.vmem %s6, 56
    %3323 = vst [vmem:[%s3322] sm:$0xff] %v3321
    // Predicated region
    $region34: #{bidirectional_lstm.1} parent=1 // pred_check
      _
    $region35: #{bidirectional_lstm.1} parent=1 // pred_check_branch
      %3325 = sbr.rel (0) target = $region37
    $region36: #{bidirectional_lstm.1} parent=1 // pred_region
      _
    $region37: #{bidirectional_lstm.1} parent=1 // pred_fallthru
      _
    // Predicated region
    $region38: #{bidirectional_lstm.1} parent=1 // pred_check
      _
    $region39: #{bidirectional_lstm.1} parent=1 // pred_check_branch
      %3327 = sbr.rel (0) target = $region41
    $region40: #{bidirectional_lstm.1} parent=1 // pred_region
      _
    $region41: #{bidirectional_lstm.1} parent=1 // pred_fallthru
      _
    %3328 = vsyncpa [#allocation8], 1
    %3329 = vsyncpa [#allocation10], 1

</llo_original>
